<compile_context>
chip_gen: v5e
topology: v5e:2x2
jax: 0.10.0
libtpu: 0.0.40
codegen_flags: <defaults>
</compile_context>

<pallas_src>
import jax
import jax.numpy as jnp
import numpy as np
from jax.experimental import pallas as pl
from jax.experimental.pallas import tpu as pltpu

# Make the pure-JAX f32 reference use true f32 matmuls so the f32 kernel path
# can be checked with a tight tolerance.
jax.config.update("jax_default_matmul_precision", "highest")

_SUBLANE_BF16 = 16  # keep batch tiles a multiple of 16 (bf16 sublane packing)


def _round_up(x, m):
    return ((x + m - 1) // m) * m


def _cdiv(a, b):
    return -(-a // b)


def _fused_kernel(x_ref, w1_ref, b1_ref, w2_ref, b2_ref, w3_ref, b3_ref,
                  w4b_ref, b4b_ref, sel_ref, out_ref, enc_ref):
    """One batch tile of the full forward pass; all weights VMEM-resident."""
    cdt = w1_ref.dtype  # matmul-operand dtype (bf16 fast path or f32)
    x = x_ref[...].astype(cdt)

    # --- encoder: Linear -> ReLU -> Dropout(identity) -> Linear ---
    h1 = jnp.dot(x, w1_ref[...], preferred_element_type=jnp.float32) + b1_ref[...]
    h1 = jnp.maximum(h1, 0.0)                                   # f32 VPU work
    enc = jnp.dot(h1.astype(cdt), w2_ref[...],
                  preferred_element_type=jnp.float32) + b2_ref[...]
    enc_ref[...] = enc                                          # (tb, bottleneck), un-inflated

    # --- decoder: Linear -> ReLU -> Dropout(identity) -> Linear(+basis fold) ---
    h2 = jnp.dot(enc.astype(cdt), w3_ref[...],
                 preferred_element_type=jnp.float32) + b3_ref[...]
    h2 = jnp.maximum(h2, 0.0)
    # w4b already contains (w4 @ blockdiag(basis_t)): dec->bo was linear-linear,
    # so the extra matmul is folded away on the host.
    bo = jnp.dot(h2.astype(cdt), w4b_ref[...],
                 preferred_element_type=jnp.float32) + b4b_ref[...]

    # relu then per-basis weighted sum over the bd groups, expressed as one
    # MXU matmul with sel = kron(basis_weights, I_T)  -> no lane slicing.
    ba = jnp.maximum(bo, 0.0)
    out_ref[...] = jnp.dot(ba.astype(cdt), sel_ref[...],
                           preferred_element_type=jnp.float32)


def _choose_batch_tile(batch, block_b):
    """Pick tb (multiple of 16) so the grid is >=2 and even (v7x: both TCs
    busy and balanced) while keeping b_pad close to the true batch size."""
    steps = max(2, _cdiv(batch, block_b))
    steps += steps % 2                       # round number of steps up to even
    tb = _round_up(_cdiv(batch, steps), _SUBLANE_BF16)
    tb = max(_SUBLANE_BF16, min(block_b, tb))
    return tb


def functional_autoencoder_forward(x, params, basis_eval, basis_weights, *,
                                   basis_dim, input_size,
                                   block_b=512, use_bf16=True):
    """x: (B, input_size); basis_eval: (T, input_size) as passed to __init__;
    basis_weights: (basis_dim, 1) or (basis_dim,).  Returns (output, encoded)."""
    f32 = jnp.float32
    cdt = jnp.bfloat16 if use_bf16 else jnp.float32

    B = x.shape[0]
    T = basis_eval.shape[0]
    D = input_size
    hidden = params["w1"].shape[1]
    bottleneck = params["w2"].shape[1]

    # ---- host-side preprocessing (one-time in a real deployment) ------------
    basis_t = jnp.asarray(basis_eval, f32).T                      # (D, T) == module's self.basis_eval
    bw = jnp.reshape(jnp.asarray(basis_weights, f32), (basis_dim,))

    w1 = jnp.asarray(params["w1"], f32)
    b1 = jnp.reshape(jnp.asarray(params["b1"], f32), (1, hidden))
    w2 = jnp.asarray(params["w2"], f32)
    b2 = jnp.reshape(jnp.asarray(params["b2"], f32), (1, bottleneck))
    w3 = jnp.asarray(params["w3"], f32)
    b3 = jnp.reshape(jnp.asarray(params["b3"], f32), (1, hidden))
    w4 = jnp.asarray(params["w4"], f32)                           # (hidden, bd*D)
    b4 = jnp.reshape(jnp.asarray(params["b4"], f32), (basis_dim, D))

    # Fold basis projection into the last decoder linear (exact: no
    # nonlinearity between dec and the basis matmul).
    w4b = jnp.einsum("hjd,dt->hjt", w4.reshape(hidden, basis_dim, D),
                     basis_t).reshape(hidden, basis_dim * T)      # (hidden, bd*T)
    b4b = jnp.einsum("jd,dt->jt", b4, basis_t).reshape(1, basis_dim * T)
    # weighted selector: out = relu(bo) @ kron(bw, I_T)            (bd*T, T)
    sel = jnp.kron(bw[:, None], jnp.eye(T, dtype=f32))

    # matmul operands to MXU dtype; biases / accumulators / stores stay f32
    w1c, w2c, w3c, w4bc, selc = (a.astype(cdt) for a in (w1, w2, w3, w4b, sel))
    xc = jnp.asarray(x, f32).astype(cdt)

    # ---- batch tiling --------------------------------------------------------
    tb = _choose_batch_tile(B, block_b)
    grid_n = _cdiv(B, tb)
    b_pad = grid_n * tb
    if b_pad != B:
        xc = jnp.pad(xc, ((0, b_pad - B), (0, 0)))

    def _resident(a):  # whole array as one block, same block every grid step
        return pl.BlockSpec(a.shape, lambda i: (0,) * a.ndim)

    in_specs = ([pl.BlockSpec((tb, D), lambda i: (i, 0))]
                + [_resident(a) for a in (w1c, b1, w2c, b2, w3c, b3,
                                          w4bc, b4b, selc)])
    # Un-inflated outputs: last dims equal the full array dims (valid blocks);
    # masked vst accepted -> HBM writeback is only the useful 96 B/row here.
    out_specs = (pl.BlockSpec((tb, T), lambda i: (i, 0)),
                 pl.BlockSpec((tb, bottleneck), lambda i: (i, 0)))

    flops = 2 * b_pad * (D * hidden + hidden * bottleneck
                         + bottleneck * hidden + hidden * (basis_dim * T)
                         + (basis_dim * T) * T)
    bytes_accessed = int(
        xc.size * xc.dtype.itemsize
        + sum(a.size * a.dtype.itemsize
              for a in (w1c, b1, w2c, b2, w3c, b3, w4bc, b4b, selc))
        + 4 * b_pad * (T + bottleneck))

    out_p, enc_p = pl.pallas_call(
        _fused_kernel,
        grid=(grid_n,),
        out_shape=(jax.ShapeDtypeStruct((b_pad, T), f32),
                   jax.ShapeDtypeStruct((b_pad, bottleneck), f32)),
        in_specs=in_specs,
        out_specs=out_specs,
        compiler_params=pltpu.CompilerParams(
            dimension_semantics=("parallel",),
            vmem_limit_bytes=32 * 1024 * 1024),
        cost_estimate=pl.CostEstimate(flops=int(flops), transcendentals=0,
                                      bytes_accessed=bytes_accessed),
    )(xc, w1c, b1, w2c, b2, w3c, b3, w4bc, b4b, selc)

    # strip batch padding
    return out_p[:B], enc_p[:B]


def reference_forward(x, params, basis_eval, basis_weights, *, basis_dim, input_size):
    """Pure-JAX f32 reference mirroring the PyTorch forward (eval mode)."""
    f32 = jnp.float32
    basis_t = jnp.asarray(basis_eval, f32).T
    bw = jnp.reshape(jnp.asarray(basis_weights, f32), (basis_dim,))
    h1 = jax.nn.relu(x @ params["w1"] + params["b1"].reshape(1, -1))
    enc = h1 @ params["w2"] + params["b2"].reshape(1, -1)
    h2 = jax.nn.relu(enc @ params["w3"] + params["b3"].reshape(1, -1))
    dec = h2 @ params["w4"] + params["b4"].reshape(1, -1)
    dec = dec.reshape(-1, basis_dim, input_size)
    bo = jnp.matmul(dec, basis_t)                  # (B, bd, T)
    ba = jax.nn.relu(bo)
    out = jnp.sum(ba * bw.reshape(1, basis_dim, 1), axis=1)
    return out, enc


if __name__ == "__main__":
    # Small shapes consistent with the module; B not a multiple of the batch
    # tile so the padded-tail path is exercised (tb=112 -> grid of 2 steps).
    B = 200
    input_size = 16
    hidden_size = 32
    bottleneck_size = 8
    basis_dim = 4
    T = 16

    key = jax.random.PRNGKey(0)
    ks = jax.random.split(key, 12)

    def init(k, shape, scale=0.1):
        return (scale * jax.random.normal(k, shape)).astype(jnp.float32)

    # nn.Linear params stored as (in, out); biases as (1, out).
    params = {
        "w1": init(ks[0], (input_size, hidden_size)),
        "b1": init(ks[1], (1, hidden_size)),
        "w2": init(ks[2], (hidden_size, bottleneck_size)),
        "b2": init(ks[3], (1, bottleneck_size)),
        "w3": init(ks[4], (bottleneck_size, hidden_size)),
        "b3": init(ks[5], (1, hidden_size)),
        "w4": init(ks[6], (hidden_size, input_size * basis_dim)),
        "b4": init(ks[7], (1, input_size * basis_dim)),
    }
    # basis_eval as passed to __init__: shape (T, input_size).
    basis_eval = init(ks[8], (T, input_size), scale=1.0)
    # self.weights Parameter has shape (basis_dim, 1); random so output is non-trivial.
    basis_weights = init(ks[9], (basis_dim, 1), scale=1.0)
    x = init(ks[10], (B, input_size), scale=1.0)

    out_ref, enc_ref = reference_forward(
        x, params, basis_eval, basis_weights,
        basis_dim=basis_dim, input_size=input_size)

    # f32 path: must match the module forward tightly.
    out32, enc32 = functional_autoencoder_forward(
        x, params, basis_eval, basis_weights,
        basis_dim=basis_dim, input_size=input_size, use_bf16=False)
    jax.block_until_ready((out32, enc32))
    np.testing.assert_allclose(np.asarray(out32), np.asarray(out_ref), rtol=1e-4, atol=1e-4)
    np.testing.assert_allclose(np.asarray(enc32), np.asarray(enc_ref), rtol=1e-4, atol=1e-4)

    # bf16 fast path: bf16 MXU operands, f32 accumulate (bf16-level tolerance).
    out16, enc16 = functional_autoencoder_forward(
        x, params, basis_eval, basis_weights,
        basis_dim=basis_dim, input_size=input_size, use_bf16=True)
    jax.block_until_ready((out16, enc16))
    np.testing.assert_allclose(np.asarray(out16), np.asarray(out_ref), rtol=5e-2, atol=2e-2)
    np.testing.assert_allclose(np.asarray(enc16), np.asarray(enc_ref), rtol=5e-2, atol=2e-2)

    print("KERNEL_OK")
</pallas_src>

<mosaic_0001>
module attributes {stable_mosaic.version = 11 : i64} {
  func.func @_fused_kernel(%arg0: i32, %arg1: memref<112x16xf32, #tpu.memory_space<vmem>>, %arg2: memref<16x32xf32, #tpu.memory_space<vmem>>, %arg3: memref<1x32xf32, #tpu.memory_space<vmem>>, %arg4: memref<32x8xf32, #tpu.memory_space<vmem>>, %arg5: memref<1x8xf32, #tpu.memory_space<vmem>>, %arg6: memref<8x32xf32, #tpu.memory_space<vmem>>, %arg7: memref<1x32xf32, #tpu.memory_space<vmem>>, %arg8: memref<32x64xf32, #tpu.memory_space<vmem>>, %arg9: memref<1x64xf32, #tpu.memory_space<vmem>>, %arg10: memref<64x16xf32, #tpu.memory_space<vmem>>, %arg11: memref<112x16xf32, #tpu.memory_space<vmem>>, %arg12: memref<112x8xf32, #tpu.memory_space<vmem>>) attributes {dimension_semantics = [#tpu.dimension_semantics<parallel>], iteration_bounds = array<i64: 2>, scalar_prefetch = 0 : i64, scratch_operands = 0 : i64, tpu.core_type = #tpu.core_type<tc>, window_params = [{transform_indices = @transform_0, window_bounds = array<i64: 112, 16>}, {pipeline_mode = #tpu.pipeline_mode<synchronous>, transform_indices = @transform_1, window_bounds = array<i64: 16, 32>}, {pipeline_mode = #tpu.pipeline_mode<synchronous>, transform_indices = @transform_2, window_bounds = array<i64: 1, 32>}, {pipeline_mode = #tpu.pipeline_mode<synchronous>, transform_indices = @transform_3, window_bounds = array<i64: 32, 8>}, {pipeline_mode = #tpu.pipeline_mode<synchronous>, transform_indices = @transform_4, window_bounds = array<i64: 1, 8>}, {pipeline_mode = #tpu.pipeline_mode<synchronous>, transform_indices = @transform_5, window_bounds = array<i64: 8, 32>}, {pipeline_mode = #tpu.pipeline_mode<synchronous>, transform_indices = @transform_6, window_bounds = array<i64: 1, 32>}, {pipeline_mode = #tpu.pipeline_mode<synchronous>, transform_indices = @transform_7, window_bounds = array<i64: 32, 64>}, {pipeline_mode = #tpu.pipeline_mode<synchronous>, transform_indices = @transform_8, window_bounds = array<i64: 1, 64>}, {pipeline_mode = #tpu.pipeline_mode<synchronous>, transform_indices = @transform_9, window_bounds = array<i64: 64, 16>}, {transform_indices = @transform_10, window_bounds = array<i64: 112, 16>}, {transform_indices = @transform_11, window_bounds = array<i64: 112, 8>}]} {
    %c0 = arith.constant 0 : index
    %c0_0 = arith.constant 0 : index
    %0 = vector.load %arg1[%c0, %c0_0] : memref<112x16xf32, #tpu.memory_space<vmem>>, vector<112x16xf32>
    %c0_1 = arith.constant 0 : index
    %c0_2 = arith.constant 0 : index
    %1 = vector.load %arg2[%c0_1, %c0_2] : memref<16x32xf32, #tpu.memory_space<vmem>>, vector<16x32xf32>
    %cst = arith.constant dense<0.000000e+00> : vector<112x32xf32>
    %2 = tpu.matmul %0, %1, %cst {dimension_numbers = #tpu.dot_dimension_numbers<[1], [0], [0], [1], [0, 0, 1, 1], [], []>, precision = #tpu.contract_precision<fp32>} : vector<112x16xf32>, vector<16x32xf32>, vector<112x32xf32> -> vector<112x32xf32>
    %c0_3 = arith.constant 0 : index
    %c0_4 = arith.constant 0 : index
    %3 = vector.load %arg3[%c0_3, %c0_4] : memref<1x32xf32, #tpu.memory_space<vmem>>, vector<1x32xf32>
    %4 = vector.broadcast %3 : vector<1x32xf32> to vector<112x32xf32>
    %5 = arith.addf %2, %4 : vector<112x32xf32>
    %cst_5 = arith.constant 0.000000e+00 : f32
    %6 = vector.broadcast %cst_5 : f32 to vector<112x32xf32>
    %7 = arith.maximumf %5, %6 : vector<112x32xf32>
    %c0_6 = arith.constant 0 : index
    %c0_7 = arith.constant 0 : index
    %8 = vector.load %arg4[%c0_6, %c0_7] : memref<32x8xf32, #tpu.memory_space<vmem>>, vector<32x8xf32>
    %cst_8 = arith.constant dense<0.000000e+00> : vector<112x8xf32>
    %9 = tpu.matmul %7, %8, %cst_8 {dimension_numbers = #tpu.dot_dimension_numbers<[1], [0], [0], [1], [0, 0, 1, 1], [], []>, precision = #tpu.contract_precision<fp32>} : vector<112x32xf32>, vector<32x8xf32>, vector<112x8xf32> -> vector<112x8xf32>
    %c0_9 = arith.constant 0 : index
    %c0_10 = arith.constant 0 : index
    %10 = vector.load %arg5[%c0_9, %c0_10] : memref<1x8xf32, #tpu.memory_space<vmem>>, vector<1x8xf32>
    %11 = vector.broadcast %10 : vector<1x8xf32> to vector<112x8xf32>
    %12 = arith.addf %9, %11 : vector<112x8xf32>
    %c0_11 = arith.constant 0 : index
    %c0_12 = arith.constant 0 : index
    %13 = vector.load %arg12[%c0_11, %c0_12] : memref<112x8xf32, #tpu.memory_space<vmem>>, vector<112x8xf32>
    tpu.vector_store %arg12[%c0_11, %c0_12], %12 {strides = array<i32>} : memref<112x8xf32, #tpu.memory_space<vmem>>, vector<112x8xf32>,
    %c0_13 = arith.constant 0 : index
    %c0_14 = arith.constant 0 : index
    %14 = vector.load %arg6[%c0_13, %c0_14] : memref<8x32xf32, #tpu.memory_space<vmem>>, vector<8x32xf32>
    %cst_15 = arith.constant dense<0.000000e+00> : vector<112x32xf32>
    %15 = tpu.matmul %12, %14, %cst_15 {dimension_numbers = #tpu.dot_dimension_numbers<[1], [0], [0], [1], [0, 0, 1, 1], [], []>, precision = #tpu.contract_precision<fp32>} : vector<112x8xf32>, vector<8x32xf32>, vector<112x32xf32> -> vector<112x32xf32>
    %c0_16 = arith.constant 0 : index
    %c0_17 = arith.constant 0 : index
    %16 = vector.load %arg7[%c0_16, %c0_17] : memref<1x32xf32, #tpu.memory_space<vmem>>, vector<1x32xf32>
    %17 = vector.broadcast %16 : vector<1x32xf32> to vector<112x32xf32>
    %18 = arith.addf %15, %17 : vector<112x32xf32>
    %cst_18 = arith.constant 0.000000e+00 : f32
    %19 = vector.broadcast %cst_18 : f32 to vector<112x32xf32>
    %20 = arith.maximumf %18, %19 : vector<112x32xf32>
    %c0_19 = arith.constant 0 : index
    %c0_20 = arith.constant 0 : index
    %21 = vector.load %arg8[%c0_19, %c0_20] : memref<32x64xf32, #tpu.memory_space<vmem>>, vector<32x64xf32>
    %cst_21 = arith.constant dense<0.000000e+00> : vector<112x64xf32>
    %22 = tpu.matmul %20, %21, %cst_21 {dimension_numbers = #tpu.dot_dimension_numbers<[1], [0], [0], [1], [0, 0, 1, 1], [], []>, precision = #tpu.contract_precision<fp32>} : vector<112x32xf32>, vector<32x64xf32>, vector<112x64xf32> -> vector<112x64xf32>
    %c0_22 = arith.constant 0 : index
    %c0_23 = arith.constant 0 : index
    %23 = vector.load %arg9[%c0_22, %c0_23] : memref<1x64xf32, #tpu.memory_space<vmem>>, vector<1x64xf32>
    %24 = vector.broadcast %23 : vector<1x64xf32> to vector<112x64xf32>
    %25 = arith.addf %22, %24 : vector<112x64xf32>
    %cst_24 = arith.constant 0.000000e+00 : f32
    %26 = vector.broadcast %cst_24 : f32 to vector<112x64xf32>
    %27 = arith.maximumf %25, %26 : vector<112x64xf32>
    %c0_25 = arith.constant 0 : index
    %c0_26 = arith.constant 0 : index
    %28 = vector.load %arg10[%c0_25, %c0_26] : memref<64x16xf32, #tpu.memory_space<vmem>>, vector<64x16xf32>
    %cst_27 = arith.constant dense<0.000000e+00> : vector<112x16xf32>
    %29 = tpu.matmul %27, %28, %cst_27 {dimension_numbers = #tpu.dot_dimension_numbers<[1], [0], [0], [1], [0, 0, 1, 1], [], []>, precision = #tpu.contract_precision<fp32>} : vector<112x64xf32>, vector<64x16xf32>, vector<112x16xf32> -> vector<112x16xf32>
    %c0_28 = arith.constant 0 : index
    %c0_29 = arith.constant 0 : index
    %30 = vector.load %arg11[%c0_28, %c0_29] : memref<112x16xf32, #tpu.memory_space<vmem>>, vector<112x16xf32>
    tpu.vector_store %arg11[%c0_28, %c0_29], %29 {strides = array<i32>} : memref<112x16xf32, #tpu.memory_space<vmem>>, vector<112x16xf32>,
    return
  }
  func.func @transform_0(%arg0: i32) -> (i32, i32) {
    %c0_i32 = arith.constant 0 : i32
    %c0_i32_0 = arith.constant 0 : i32
    return %arg0, %c0_i32 : i32, i32
  }
  func.func @transform_1(%arg0: i32) -> (i32, i32) {
    %c0_i32 = arith.constant 0 : i32
    %c0_i32_0 = arith.constant 0 : i32
    %c0_i32_1 = arith.constant 0 : i32
    return %c0_i32, %c0_i32_0 : i32, i32
  }
  func.func @transform_2(%arg0: i32) -> (i32, i32) {
    %c0_i32 = arith.constant 0 : i32
    %c0_i32_0 = arith.constant 0 : i32
    %c0_i32_1 = arith.constant 0 : i32
    return %c0_i32, %c0_i32_0 : i32, i32
  }
  func.func @transform_3(%arg0: i32) -> (i32, i32) {
    %c0_i32 = arith.constant 0 : i32
    %c0_i32_0 = arith.constant 0 : i32
    %c0_i32_1 = arith.constant 0 : i32
    return %c0_i32, %c0_i32_0 : i32, i32
  }
  func.func @transform_4(%arg0: i32) -> (i32, i32) {
    %c0_i32 = arith.constant 0 : i32
    %c0_i32_0 = arith.constant 0 : i32
    %c0_i32_1 = arith.constant 0 : i32
    return %c0_i32, %c0_i32_0 : i32, i32
  }
  func.func @transform_5(%arg0: i32) -> (i32, i32) {
    %c0_i32 = arith.constant 0 : i32
    %c0_i32_0 = arith.constant 0 : i32
    %c0_i32_1 = arith.constant 0 : i32
    return %c0_i32, %c0_i32_0 : i32, i32
  }
  func.func @transform_6(%arg0: i32) -> (i32, i32) {
    %c0_i32 = arith.constant 0 : i32
    %c0_i32_0 = arith.constant 0 : i32
    %c0_i32_1 = arith.constant 0 : i32
    return %c0_i32, %c0_i32_0 : i32, i32
  }
  func.func @transform_7(%arg0: i32) -> (i32, i32) {
    %c0_i32 = arith.constant 0 : i32
    %c0_i32_0 = arith.constant 0 : i32
    %c0_i32_1 = arith.constant 0 : i32
    return %c0_i32, %c0_i32_0 : i32, i32
  }
  func.func @transform_8(%arg0: i32) -> (i32, i32) {
    %c0_i32 = arith.constant 0 : i32
    %c0_i32_0 = arith.constant 0 : i32
    %c0_i32_1 = arith.constant 0 : i32
    return %c0_i32, %c0_i32_0 : i32, i32
  }
  func.func @transform_9(%arg0: i32) -> (i32, i32) {
    %c0_i32 = arith.constant 0 : i32
    %c0_i32_0 = arith.constant 0 : i32
    %c0_i32_1 = arith.constant 0 : i32
    return %c0_i32, %c0_i32_0 : i32, i32
  }
  func.func @transform_10(%arg0: i32) -> (i32, i32) {
    %c0_i32 = arith.constant 0 : i32
    %c0_i32_0 = arith.constant 0 : i32
    return %arg0, %c0_i32 : i32, i32
  }
  func.func @transform_11(%arg0: i32) -> (i32, i32) {
    %c0_i32 = arith.constant 0 : i32
    %c0_i32_0 = arith.constant 0 : i32
    return %arg0, %c0_i32 : i32, i32
  }
}

</mosaic_0001>

<llo_original>
// kernel: tpu_custom_call.1
$region0: #{tpu_custom_call.1}
  #allocation0 [shape = 'u32[]', space=smem, size = 0x4, offset = 0x4, fixed_abs, tag = 'smem constant byte address 0x4 - core index']
  #allocation1 [shape = 'u32[72,128]{1,0:T(1,128)}', space=vmem, size = 0x9000, scoped, tag = 'internal scratch']
  %s0 = inlined_call_operand.vmem [shape: f32[224,16], index: 0, kind: input, shape index: {}]
  %s1 = inlined_call_operand.vmem [shape: f32[16,32], index: 1, kind: input, shape index: {}]
  %s2 = inlined_call_operand.vmem [shape: f32[1,32], index: 2, kind: input, shape index: {}]
  %s3 = inlined_call_operand.vmem [shape: f32[32,8], index: 3, kind: input, shape index: {}]
  %s4 = inlined_call_operand.vmem [shape: f32[1,8], index: 4, kind: input, shape index: {}]
  %s5 = inlined_call_operand.vmem [shape: f32[8,32], index: 5, kind: input, shape index: {}]
  %s6 = inlined_call_operand.vmem [shape: f32[1,32], index: 6, kind: input, shape index: {}]
  %s7 = inlined_call_operand.vmem [shape: f32[32,64], index: 7, kind: input, shape index: {}]
  %s8 = inlined_call_operand.vmem [shape: f32[1,64], index: 8, kind: input, shape index: {}]
  %s9 = inlined_call_operand.vmem [shape: f32[64,16], index: 9, kind: input, shape index: {}]
  %s10 = inlined_call_operand.vmem [shape: f32[224,16], index: 10, kind: output, shape index: {0}]
  %s11 = inlined_call_operand.vmem [shape: f32[224,8], index: 11, kind: output, shape index: {1}]
  %12 = xla_tuple %s10, %s11
  %s13 = sld [smem:[#allocation0]]
  $region81: #{tpu_custom_call.1} parent=0
    _
  %s15 = ssub.s32 1, %s13
  %s16 = scalar_select 0, %s15, %s13
  loop: start=0, step=1, limit=4
  $region2: #{tpu_custom_call.1} parent=0 // loop_pre_header
    _
  $region3: #{tpu_custom_call.1} parent=0 // loop_header
    %s18 = sphi 0, %s22
    %p19 = scmp.ge.s32.totalorder %s18, 4
    %s28 = sphi 0, %s30
    %s31 = sphi 0, %s28
    %s32 = sphi 0, %s31
    %s48 = sphi 0, %s32
    %s52 = sphi 0, %s52
    %s54 = sphi 0, %s52
    %s55 = sphi 0, %s54
    %s69 = sphi 0, %s55
    %s73 = sphi 0, %s73
    %s75 = sphi 0, %s73
    %s76 = sphi 0, %s75
    %s90 = sphi 0, %s76
    %s94 = sphi 0, %s94
    %s96 = sphi 0, %s94
    %s97 = sphi 0, %s96
    %s111 = sphi 0, %s97
    %s115 = sphi 0, %s115
    %s117 = sphi 0, %s115
    %s118 = sphi 0, %s117
    %s132 = sphi 0, %s118
    %s136 = sphi 0, %s136
    %s138 = sphi 0, %s136
    %s139 = sphi 0, %s138
    %s153 = sphi 0, %s139
    %s157 = sphi 0, %s157
    %s159 = sphi 0, %s157
    %s160 = sphi 0, %s159
    %s174 = sphi 0, %s160
    %s178 = sphi 0, %s178
    %s180 = sphi 0, %s178
    %s181 = sphi 0, %s180
    %s195 = sphi 0, %s181
    %s199 = sphi 0, %s199
    %s201 = sphi 0, %s199
    %s202 = sphi 0, %s201
    %s216 = sphi 0, %s202
    %s220 = sphi 0, %s220
    %s222 = sphi 0, %s220
    %s223 = sphi 0, %s222
    %s237 = sphi 0, %s223
    %s243 = sphi 0, %s245
    %s246 = sphi 0, %s243
    %s247 = sphi 0, %s246
    %s263 = sphi 0, %s247
    %s269 = sphi 0, %s271
    %s272 = sphi 0, %s269
    %s273 = sphi 0, %s272
    %s289 = sphi 0, %s273
  $region4: #{tpu_custom_call.1} parent=0 // loop_header_branch
    %21 = sbr.rel (%p19) target = $region8
  $region5: #{tpu_custom_call.1} parent=0 // loop_body
    %s23 = ssub.s32 %s18, 1
    %s24 = ssub.s32 %s18, 2
    %s25 = sadd.s32 %s18, 1
    %s26 = ssub.s32 %s18, %s25
    %p27 = scmp.eq.s32.totalorder %s26, 0
    %s29 = sadd.s32 %s28, 1
    %s30 = scalar_select %p27, %s28, %s29
    %p33 = pneg %p27
    %p34 = scmp.eq.s32.totalorder %s18, 1
    %p35 = por %p33, %p34
    %p36 = scmp.ne.s32.totalorder %s28, %s31
    %p37 = scmp.eq.s32.totalorder %s18, 0
    %p38 = por %p36, %p37
    %p39 = scmp.ne.s32.totalorder %s28, %s31
    %p40 = scmp.eq.s32.totalorder %s23, 1
    %p41 = por %p39, %p40
    %p42 = scmp.ne.s32.totalorder %s31, %s32
    %p43 = scmp.eq.s32.totalorder %s23, 0
    %p44 = por %p42, %p43
    %p45 = scmp.ne.s32.totalorder %s31, %s32
    %p46 = scmp.eq.s32.totalorder %s24, 1
    %p47 = por %p45, %p46
    %p49 = scmp.ne.s32.totalorder %s32, %s48
    %p50 = scmp.eq.s32.totalorder %s24, 0
    %p51 = por %p49, %p50
    %s53 = sadd.s32 %s52, 1
    %p56 = scmp.eq.s32.totalorder %s18, 1
    %p57 = scmp.ne.s32.totalorder %s52, %s54
    %p58 = scmp.eq.s32.totalorder %s18, 0
    %p59 = por %p57, %p58
    %p60 = scmp.ne.s32.totalorder %s52, %s54
    %p61 = scmp.eq.s32.totalorder %s23, 1
    %p62 = por %p60, %p61
    %p63 = scmp.ne.s32.totalorder %s54, %s55
    %p64 = scmp.eq.s32.totalorder %s23, 0
    %p65 = por %p63, %p64
    %p66 = scmp.ne.s32.totalorder %s54, %s55
    %p67 = scmp.eq.s32.totalorder %s24, 1
    %p68 = por %p66, %p67
    %p70 = scmp.ne.s32.totalorder %s55, %s69
    %p71 = scmp.eq.s32.totalorder %s24, 0
    %p72 = por %p70, %p71
    %s74 = sadd.s32 %s73, 1
    %p77 = scmp.eq.s32.totalorder %s18, 1
    %p78 = scmp.ne.s32.totalorder %s73, %s75
    %p79 = scmp.eq.s32.totalorder %s18, 0
    %p80 = por %p78, %p79
    %p81 = scmp.ne.s32.totalorder %s73, %s75
    %p82 = scmp.eq.s32.totalorder %s23, 1
    %p83 = por %p81, %p82
    %p84 = scmp.ne.s32.totalorder %s75, %s76
    %p85 = scmp.eq.s32.totalorder %s23, 0
    %p86 = por %p84, %p85
    %p87 = scmp.ne.s32.totalorder %s75, %s76
    %p88 = scmp.eq.s32.totalorder %s24, 1
    %p89 = por %p87, %p88
    %p91 = scmp.ne.s32.totalorder %s76, %s90
    %p92 = scmp.eq.s32.totalorder %s24, 0
    %p93 = por %p91, %p92
    %s95 = sadd.s32 %s94, 1
    %p98 = scmp.eq.s32.totalorder %s18, 1
    %p99 = scmp.ne.s32.totalorder %s94, %s96
    %p100 = scmp.eq.s32.totalorder %s18, 0
    %p101 = por %p99, %p100
    %p102 = scmp.ne.s32.totalorder %s94, %s96
    %p103 = scmp.eq.s32.totalorder %s23, 1
    %p104 = por %p102, %p103
    %p105 = scmp.ne.s32.totalorder %s96, %s97
    %p106 = scmp.eq.s32.totalorder %s23, 0
    %p107 = por %p105, %p106
    %p108 = scmp.ne.s32.totalorder %s96, %s97
    %p109 = scmp.eq.s32.totalorder %s24, 1
    %p110 = por %p108, %p109
    %p112 = scmp.ne.s32.totalorder %s97, %s111
    %p113 = scmp.eq.s32.totalorder %s24, 0
    %p114 = por %p112, %p113
    %s116 = sadd.s32 %s115, 1
    %p119 = scmp.eq.s32.totalorder %s18, 1
    %p120 = scmp.ne.s32.totalorder %s115, %s117
    %p121 = scmp.eq.s32.totalorder %s18, 0
    %p122 = por %p120, %p121
    %p123 = scmp.ne.s32.totalorder %s115, %s117
    %p124 = scmp.eq.s32.totalorder %s23, 1
    %p125 = por %p123, %p124
    %p126 = scmp.ne.s32.totalorder %s117, %s118
    %p127 = scmp.eq.s32.totalorder %s23, 0
    %p128 = por %p126, %p127
    %p129 = scmp.ne.s32.totalorder %s117, %s118
    %p130 = scmp.eq.s32.totalorder %s24, 1
    %p131 = por %p129, %p130
    %p133 = scmp.ne.s32.totalorder %s118, %s132
    %p134 = scmp.eq.s32.totalorder %s24, 0
    %p135 = por %p133, %p134
    %s137 = sadd.s32 %s136, 1
    %p140 = scmp.eq.s32.totalorder %s18, 1
    %p141 = scmp.ne.s32.totalorder %s136, %s138
    %p142 = scmp.eq.s32.totalorder %s18, 0
    %p143 = por %p141, %p142
    %p144 = scmp.ne.s32.totalorder %s136, %s138
    %p145 = scmp.eq.s32.totalorder %s23, 1
    %p146 = por %p144, %p145
    %p147 = scmp.ne.s32.totalorder %s138, %s139
    %p148 = scmp.eq.s32.totalorder %s23, 0
    %p149 = por %p147, %p148
    %p150 = scmp.ne.s32.totalorder %s138, %s139
    %p151 = scmp.eq.s32.totalorder %s24, 1
    %p152 = por %p150, %p151
    %p154 = scmp.ne.s32.totalorder %s139, %s153
    %p155 = scmp.eq.s32.totalorder %s24, 0
    %p156 = por %p154, %p155
    %s158 = sadd.s32 %s157, 1
    %p161 = scmp.eq.s32.totalorder %s18, 1
    %p162 = scmp.ne.s32.totalorder %s157, %s159
    %p163 = scmp.eq.s32.totalorder %s18, 0
    %p164 = por %p162, %p163
    %p165 = scmp.ne.s32.totalorder %s157, %s159
    %p166 = scmp.eq.s32.totalorder %s23, 1
    %p167 = por %p165, %p166
    %p168 = scmp.ne.s32.totalorder %s159, %s160
    %p169 = scmp.eq.s32.totalorder %s23, 0
    %p170 = por %p168, %p169
    %p171 = scmp.ne.s32.totalorder %s159, %s160
    %p172 = scmp.eq.s32.totalorder %s24, 1
    %p173 = por %p171, %p172
    %p175 = scmp.ne.s32.totalorder %s160, %s174
    %p176 = scmp.eq.s32.totalorder %s24, 0
    %p177 = por %p175, %p176
    %s179 = sadd.s32 %s178, 1
    %p182 = scmp.eq.s32.totalorder %s18, 1
    %p183 = scmp.ne.s32.totalorder %s178, %s180
    %p184 = scmp.eq.s32.totalorder %s18, 0
    %p185 = por %p183, %p184
    %p186 = scmp.ne.s32.totalorder %s178, %s180
    %p187 = scmp.eq.s32.totalorder %s23, 1
    %p188 = por %p186, %p187
    %p189 = scmp.ne.s32.totalorder %s180, %s181
    %p190 = scmp.eq.s32.totalorder %s23, 0
    %p191 = por %p189, %p190
    %p192 = scmp.ne.s32.totalorder %s180, %s181
    %p193 = scmp.eq.s32.totalorder %s24, 1
    %p194 = por %p192, %p193
    %p196 = scmp.ne.s32.totalorder %s181, %s195
    %p197 = scmp.eq.s32.totalorder %s24, 0
    %p198 = por %p196, %p197
    %s200 = sadd.s32 %s199, 1
    %p203 = scmp.eq.s32.totalorder %s18, 1
    %p204 = scmp.ne.s32.totalorder %s199, %s201
    %p205 = scmp.eq.s32.totalorder %s18, 0
    %p206 = por %p204, %p205
    %p207 = scmp.ne.s32.totalorder %s199, %s201
    %p208 = scmp.eq.s32.totalorder %s23, 1
    %p209 = por %p207, %p208
    %p210 = scmp.ne.s32.totalorder %s201, %s202
    %p211 = scmp.eq.s32.totalorder %s23, 0
    %p212 = por %p210, %p211
    %p213 = scmp.ne.s32.totalorder %s201, %s202
    %p214 = scmp.eq.s32.totalorder %s24, 1
    %p215 = por %p213, %p214
    %p217 = scmp.ne.s32.totalorder %s202, %s216
    %p218 = scmp.eq.s32.totalorder %s24, 0
    %p219 = por %p217, %p218
    %s221 = sadd.s32 %s220, 1
    %p224 = scmp.eq.s32.totalorder %s18, 1
    %p225 = scmp.ne.s32.totalorder %s220, %s222
    %p226 = scmp.eq.s32.totalorder %s18, 0
    %p227 = por %p225, %p226
    %p228 = scmp.ne.s32.totalorder %s220, %s222
    %p229 = scmp.eq.s32.totalorder %s23, 1
    %p230 = por %p228, %p229
    %p231 = scmp.ne.s32.totalorder %s222, %s223
    %p232 = scmp.eq.s32.totalorder %s23, 0
    %p233 = por %p231, %p232
    %p234 = scmp.ne.s32.totalorder %s222, %s223
    %p235 = scmp.eq.s32.totalorder %s24, 1
    %p236 = por %p234, %p235
    %p238 = scmp.ne.s32.totalorder %s223, %s237
    %p239 = scmp.eq.s32.totalorder %s24, 0
    %p240 = por %p238, %p239
    %s241 = ssub.s32 %s18, %s25
    %p242 = scmp.eq.s32.totalorder %s241, 0
    %s244 = sadd.s32 %s243, 1
    %s245 = scalar_select %p242, %s243, %s244
    %p248 = pneg %p242
    %p249 = scmp.eq.s32.totalorder %s18, 1
    %p250 = por %p248, %p249
    %p251 = scmp.ne.s32.totalorder %s243, %s246
    %p252 = scmp.eq.s32.totalorder %s18, 0
    %p253 = por %p251, %p252
    %p254 = scmp.ne.s32.totalorder %s243, %s246
    %p255 = scmp.eq.s32.totalorder %s23, 1
    %p256 = por %p254, %p255
    %p257 = scmp.ne.s32.totalorder %s246, %s247
    %p258 = scmp.eq.s32.totalorder %s23, 0
    %p259 = por %p257, %p258
    %p260 = scmp.ne.s32.totalorder %s246, %s247
    %p261 = scmp.eq.s32.totalorder %s24, 1
    %p262 = por %p260, %p261
    %p264 = scmp.ne.s32.totalorder %s247, %s263
    %p265 = scmp.eq.s32.totalorder %s24, 0
    %p266 = por %p264, %p265
    %s267 = ssub.s32 %s18, %s25
    %p268 = scmp.eq.s32.totalorder %s267, 0
    %s270 = sadd.s32 %s269, 1
    %s271 = scalar_select %p268, %s269, %s270
    %p274 = pneg %p268
    %p275 = scmp.eq.s32.totalorder %s18, 1
    %p276 = por %p274, %p275
    %p277 = scmp.ne.s32.totalorder %s269, %s272
    %p278 = scmp.eq.s32.totalorder %s18, 0
    %p279 = por %p277, %p278
    %p280 = scmp.ne.s32.totalorder %s269, %s272
    %p281 = scmp.eq.s32.totalorder %s23, 1
    %p282 = por %p280, %p281
    %p283 = scmp.ne.s32.totalorder %s272, %s273
    %p284 = scmp.eq.s32.totalorder %s23, 0
    %p285 = por %p283, %p284
    %p286 = scmp.ne.s32.totalorder %s272, %s273
    %p287 = scmp.eq.s32.totalorder %s24, 1
    %p288 = por %p286, %p287
    %p290 = scmp.ne.s32.totalorder %s273, %s289
    %p291 = scmp.eq.s32.totalorder %s24, 0
    %p292 = por %p290, %p291
    %p293 = scmp.le.s32.totalorder 1, %s18
    %p294 = scmp.lt.s32.totalorder %s18, 3
    %p295 = pnand %p293, %p294
    %p296 = pneg %p295
    // Predicated region
    $region9: #{tpu_custom_call.1} parent=5 // pred_check
      _
    $region10: #{tpu_custom_call.1} parent=5 // pred_check_branch
      %298 = sbr.rel (%p295) target = $region12
    $region11: #{tpu_custom_call.1} parent=5 // pred_region
      %s299 = ssub.s32 %s18, 1
      // Predicated region
      $region13: #{tpu_custom_call.1} parent=11 // pred_check
        %p300 = pneg %p65
      $region14: #{tpu_custom_call.1} parent=11 // pred_check_branch
        %302 = sbr.rel (%p300) target = $region16
      $region15: #{tpu_custom_call.1} parent=11 // pred_region
        _
      $region16: #{tpu_custom_call.1} parent=11 // pred_fallthru
        _
      // Predicated region
      $region17: #{tpu_custom_call.1} parent=11 // pred_check
        %p303 = pneg %p86
      $region18: #{tpu_custom_call.1} parent=11 // pred_check_branch
        %305 = sbr.rel (%p303) target = $region20
      $region19: #{tpu_custom_call.1} parent=11 // pred_region
        _
      $region20: #{tpu_custom_call.1} parent=11 // pred_fallthru
        _
      // Predicated region
      $region21: #{tpu_custom_call.1} parent=11 // pred_check
        %p306 = pneg %p107
      $region22: #{tpu_custom_call.1} parent=11 // pred_check_branch
        %308 = sbr.rel (%p306) target = $region24
      $region23: #{tpu_custom_call.1} parent=11 // pred_region
        _
      $region24: #{tpu_custom_call.1} parent=11 // pred_fallthru
        _
      // Predicated region
      $region25: #{tpu_custom_call.1} parent=11 // pred_check
        %p309 = pneg %p128
      $region26: #{tpu_custom_call.1} parent=11 // pred_check_branch
        %311 = sbr.rel (%p309) target = $region28
      $region27: #{tpu_custom_call.1} parent=11 // pred_region
        _
      $region28: #{tpu_custom_call.1} parent=11 // pred_fallthru
        _
      // Predicated region
      $region29: #{tpu_custom_call.1} parent=11 // pred_check
        %p312 = pneg %p149
      $region30: #{tpu_custom_call.1} parent=11 // pred_check_branch
        %314 = sbr.rel (%p312) target = $region32
      $region31: #{tpu_custom_call.1} parent=11 // pred_region
        _
      $region32: #{tpu_custom_call.1} parent=11 // pred_fallthru
        _
      // Predicated region
      $region33: #{tpu_custom_call.1} parent=11 // pred_check
        %p315 = pneg %p170
      $region34: #{tpu_custom_call.1} parent=11 // pred_check_branch
        %317 = sbr.rel (%p315) target = $region36
      $region35: #{tpu_custom_call.1} parent=11 // pred_region
        _
      $region36: #{tpu_custom_call.1} parent=11 // pred_fallthru
        _
      // Predicated region
      $region37: #{tpu_custom_call.1} parent=11 // pred_check
        %p318 = pneg %p191
      $region38: #{tpu_custom_call.1} parent=11 // pred_check_branch
        %320 = sbr.rel (%p318) target = $region40
      $region39: #{tpu_custom_call.1} parent=11 // pred_region
        _
      $region40: #{tpu_custom_call.1} parent=11 // pred_fallthru
        _
      // Predicated region
      $region41: #{tpu_custom_call.1} parent=11 // pred_check
        %p321 = pneg %p212
      $region42: #{tpu_custom_call.1} parent=11 // pred_check_branch
        %323 = sbr.rel (%p321) target = $region44
      $region43: #{tpu_custom_call.1} parent=11 // pred_region
        _
      $region44: #{tpu_custom_call.1} parent=11 // pred_fallthru
        _
      // Predicated region
      $region45: #{tpu_custom_call.1} parent=11 // pred_check
        %p324 = pneg %p233
      $region46: #{tpu_custom_call.1} parent=11 // pred_check_branch
        %326 = sbr.rel (%p324) target = $region48
      $region47: #{tpu_custom_call.1} parent=11 // pred_region
        _
      $region48: #{tpu_custom_call.1} parent=11 // pred_fallthru
        _
    $region12: #{tpu_custom_call.1} parent=5 // pred_fallthru
      _
    %p327 = scmp.lt.s32.totalorder %s18, 2
    // Predicated region
    $region49: #{tpu_custom_call.1} parent=5 // pred_check
      %p328 = pneg %p327
    $region50: #{tpu_custom_call.1} parent=5 // pred_check_branch
      %330 = sbr.rel (%p328) target = $region52
    $region51: #{tpu_custom_call.1} parent=5 // pred_region
      // Predicated region
      $region53: #{tpu_custom_call.1} parent=51 // pred_check
        %p331 = pneg %p38
      $region54: #{tpu_custom_call.1} parent=51 // pred_check_branch
        %333 = sbr.rel (%p331) target = $region56
      $region55: #{tpu_custom_call.1} parent=51 // pred_region
        %s334 = smul.u32 14, %s18
        %p335 = scmp.lt.s32.totalorder %s334, 27
        %s336 = scalar_select %p335, %s334, 27
        %s337 = smul.addr %s336, 8
        %s338 = scalar_lea.vmem %s0, %s337
        %s339 = smul.u32 14, %s18
      $region56: #{tpu_custom_call.1} parent=51 // pred_fallthru
        _
    $region52: #{tpu_custom_call.1} parent=5 // pred_fallthru
      _
    %p340 = scmp.le.s32.totalorder 1, %s18
    %p341 = scmp.lt.s32.totalorder %s18, 3
    %p342 = pnand %p340, %p341
    %p343 = pneg %p342
    // Predicated region
    $region57: #{tpu_custom_call.1} parent=5 // pred_check
      _
    $region58: #{tpu_custom_call.1} parent=5 // pred_check_branch
      %345 = sbr.rel (%p342) target = $region60
    $region59: #{tpu_custom_call.1} parent=5 // pred_region
      %s346 = ssub.s32 %s18, 1
      %s347 = smul.u32 14, %s23
      %p348 = scmp.lt.s32.totalorder %s347, 27
      %s349 = scalar_select %p348, %s347, 27
      %s350 = smul.addr %s349, 8
      %s351 = scalar_lea.vmem %s0, %s350
      %p352 = pneg %p44
      %p353 = pneg %p41
      %p354 = pneg %p65
      %p355 = pneg %p62
      %p356 = pneg %p86
      %p357 = pneg %p83
      %p358 = pneg %p107
      %p359 = pneg %p104
      %p360 = pneg %p128
      %p361 = pneg %p125
      %p362 = pneg %p149
      %p363 = pneg %p146
      %p364 = pneg %p170
      %p365 = pneg %p167
      %p366 = pneg %p191
      %p367 = pneg %p188
      %p368 = pneg %p212
      %p369 = pneg %p209
      %p370 = pneg %p233
      %p371 = pneg %p230
      %p372 = pneg %p259
      %p373 = pneg %p256
      %s374 = smul.u32 14, %s23
      %p375 = scmp.lt.s32.totalorder %s374, 27
      %s376 = scalar_select %p375, %s374, 27
      %s377 = smul.addr %s376, 8
      %s378 = scalar_lea.vmem %s10, %s377
      %p379 = pneg %p285
      %p380 = pneg %p282
      %s381 = smul.u32 14, %s23
      %p382 = scmp.lt.s32.totalorder %s381, 27
      %s383 = scalar_select %p382, %s381, 27
      %s384 = smul.addr %s383, 8
      %s385 = scalar_lea.vmem %s11, %s384
      %s386 = smul.u32 14, %s23
      %p387 = scmp.lt.s32.totalorder %s386, 27
      %s388 = scalar_select %p387, %s386, 27
      %s389 = smul.addr %s388, 8
      %s390 = scalar_lea.vmem %s0, %s389
      %s391 = smul.u32 14, %s23
      %s392 = smul.u32 14, %s23
      %p393 = scmp.lt.s32.totalorder %s392, 27
      %s394 = scalar_select %p393, %s392, 27
      %s395 = smul.addr %s394, 8
      %s396 = scalar_lea.vmem %s10, %s395
      %s397 = smul.u32 14, %s23
      %s398 = smul.u32 14, %s23
      %p399 = scmp.lt.s32.totalorder %s398, 27
      %s400 = scalar_select %p399, %s398, 27
      %s401 = smul.addr %s400, 8
      %s402 = scalar_lea.vmem %s11, %s401
      %s403 = smul.u32 14, %s23
      %v404 = vld [vmem:[%s390] sm:$0xff]
      %v405 = vld [vmem:[%s390 + $0x8] sm:$0xff]
      %v406 = vld [vmem:[%s390 + $0x10] sm:$0xff]
      %v407 = vld [vmem:[%s390 + $0x18] sm:$0xff]
      %v408 = vld [vmem:[%s390 + $0x20] sm:$0xff]
      %v409 = vld [vmem:[%s390 + $0x28] sm:$0xff]
      %v410 = vld [vmem:[%s390 + $0x30] sm:$0xff]
      %v411 = vld [vmem:[%s390 + $0x38] sm:$0xff]
      %v412 = vld [vmem:[%s390 + $0x40] sm:$0xff]
      %v413 = vld [vmem:[%s390 + $0x48] sm:$0xff]
      %v414 = vld [vmem:[%s390 + $0x50] sm:$0xff]
      %v415 = vld [vmem:[%s390 + $0x58] sm:$0xff]
      %v416 = vld [vmem:[%s390 + $0x60] sm:$0xff]
      %v417 = vld [vmem:[%s390 + $0x68] sm:$0xff]
      %v418 = vld [vmem:[%s1] sm:$0xff]
      %v419 = vld [vmem:[%s1 + $0x8] sm:$0xff]
      %v420 = vld [vmem:[%s2] sm:$0x1]
      %v422 = vperm.slane %v420, 0
      %vm424 = vcmask 130048
      %v426 = vsel %vm424, %v404, 0
      %v429 = vsel %vm424, %v405, 0
      %v432 = vsel %vm424, %v406, 0
      %v435 = vsel %vm424, %v407, 0
      %v438 = vsel %vm424, %v408, 0
      %v441 = vsel %vm424, %v409, 0
      %v444 = vsel %vm424, %v410, 0
      %v447 = vsel %vm424, %v411, 0
      %v450 = vsel %vm424, %v412, 0
      %v453 = vsel %vm424, %v413, 0
      %v456 = vsel %vm424, %v414, 0
      %v459 = vsel %vm424, %v415, 0
      %v462 = vsel %vm424, %v416, 0
      %v465 = vsel %vm424, %v417, 0
      %467 = vmatpush.msra.mxu0 0.0
      %468 = vmatpush.msra.mxu0 0.0
      %469 = vmatpush.msra.mxu0 0.0
      %470 = vmatpush.msra.mxu0 0.0
      %471 = vmatpush.msra.mxu0 0.0
      %472 = vmatpush.msra.mxu0 0.0
      %473 = vmatpush.msra.mxu0 0.0
      %474 = vmatpush.msra.mxu0 0.0
      %475 = vmatpush.msra.mxu0 0.0
      %476 = vmatpush.msra.mxu0 0.0
      %477 = vmatpush.msra.mxu0 0.0
      %478 = vmatpush.msra.mxu0 0.0
      %479 = vmatpush.msra.mxu0 0.0
      %480 = vmatpush.msra.mxu0 0.0
      %v481 = vand.u32 %v419, 4294901760
      %482 = vmatpush.msra.mxu0 %v481
      %v483 = vand.u32 %v418, 4294901760
      %484 = vmatpush.msra.mxu0 %v483
      %v485 = vand.u32 %v426, 4294901760
      %v486 = vsub.f32 %v426, %v485
      %v487 = vand.u32 %v486, 4294901760
      %v488 = vsub.f32 %v486, %v487
      %v489 = vand.u32 %v488, 4294901760
      %490 = vmatmul.f32.gmra.mxu0 %v489
      %v491 = vpop.f32.mrf.mxu0
      %v492 = vadd.f32 %v422, %v491
      %v493 = vand.u32 %v429, 4294901760
      %v494 = vsub.f32 %v429, %v493
      %v495 = vand.u32 %v494, 4294901760
      %v496 = vsub.f32 %v494, %v495
      %v497 = vand.u32 %v496, 4294901760
      %498 = vmatmul.f32.gmra.mxu0 %v497
      %v499 = vpop.f32.mrf.mxu0
      %v500 = vadd.f32 %v422, %v499
      %v501 = vand.u32 %v432, 4294901760
      %v502 = vsub.f32 %v432, %v501
      %v503 = vand.u32 %v502, 4294901760
      %v504 = vsub.f32 %v502, %v503
      %v505 = vand.u32 %v504, 4294901760
      %506 = vmatmul.f32.gmra.mxu0 %v505
      %v507 = vpop.f32.mrf.mxu0
      %v508 = vadd.f32 %v422, %v507
      %v509 = vand.u32 %v435, 4294901760
      %v510 = vsub.f32 %v435, %v509
      %v511 = vand.u32 %v510, 4294901760
      %v512 = vsub.f32 %v510, %v511
      %v513 = vand.u32 %v512, 4294901760
      %514 = vmatmul.f32.gmra.mxu0 %v513
      %v515 = vpop.f32.mrf.mxu0
      %v516 = vadd.f32 %v422, %v515
      %v517 = vand.u32 %v438, 4294901760
      %v518 = vsub.f32 %v438, %v517
      %v519 = vand.u32 %v518, 4294901760
      %v520 = vsub.f32 %v518, %v519
      %v521 = vand.u32 %v520, 4294901760
      %522 = vmatmul.f32.gmra.mxu0 %v521
      %v523 = vpop.f32.mrf.mxu0
      %v524 = vadd.f32 %v422, %v523
      %v525 = vand.u32 %v441, 4294901760
      %v526 = vsub.f32 %v441, %v525
      %v527 = vand.u32 %v526, 4294901760
      %v528 = vsub.f32 %v526, %v527
      %v529 = vand.u32 %v528, 4294901760
      %530 = vmatmul.f32.gmra.mxu0 %v529
      %v531 = vpop.f32.mrf.mxu0
      %v532 = vadd.f32 %v422, %v531
      %v533 = vand.u32 %v444, 4294901760
      %v534 = vsub.f32 %v444, %v533
      %v535 = vand.u32 %v534, 4294901760
      %v536 = vsub.f32 %v534, %v535
      %v537 = vand.u32 %v536, 4294901760
      %538 = vmatmul.f32.gmra.mxu0 %v537
      %v539 = vpop.f32.mrf.mxu0
      %v540 = vadd.f32 %v422, %v539
      %v541 = vand.u32 %v447, 4294901760
      %v542 = vsub.f32 %v447, %v541
      %v543 = vand.u32 %v542, 4294901760
      %v544 = vsub.f32 %v542, %v543
      %v545 = vand.u32 %v544, 4294901760
      %546 = vmatmul.f32.gmra.mxu0 %v545
      %v547 = vpop.f32.mrf.mxu0
      %v548 = vadd.f32 %v422, %v547
      %v549 = vand.u32 %v450, 4294901760
      %v550 = vsub.f32 %v450, %v549
      %v551 = vand.u32 %v550, 4294901760
      %v552 = vsub.f32 %v550, %v551
      %v553 = vand.u32 %v552, 4294901760
      %554 = vmatmul.f32.gmra.mxu0 %v553
      %v555 = vpop.f32.mrf.mxu0
      %v556 = vadd.f32 %v422, %v555
      %v557 = vand.u32 %v453, 4294901760
      %v558 = vsub.f32 %v453, %v557
      %v559 = vand.u32 %v558, 4294901760
      %v560 = vsub.f32 %v558, %v559
      %v561 = vand.u32 %v560, 4294901760
      %562 = vmatmul.f32.gmra.mxu0 %v561
      %v563 = vpop.f32.mrf.mxu0
      %v564 = vadd.f32 %v422, %v563
      %v565 = vand.u32 %v456, 4294901760
      %v566 = vsub.f32 %v456, %v565
      %v567 = vand.u32 %v566, 4294901760
      %v568 = vsub.f32 %v566, %v567
      %v569 = vand.u32 %v568, 4294901760
      %570 = vmatmul.f32.gmra.mxu0 %v569
      %v571 = vpop.f32.mrf.mxu0
      %v572 = vadd.f32 %v422, %v571
      %v573 = vand.u32 %v459, 4294901760
      %v574 = vsub.f32 %v459, %v573
      %v575 = vand.u32 %v574, 4294901760
      %v576 = vsub.f32 %v574, %v575
      %v577 = vand.u32 %v576, 4294901760
      %578 = vmatmul.f32.gmra.mxu0 %v577
      %v579 = vpop.f32.mrf.mxu0
      %v580 = vadd.f32 %v422, %v579
      %v581 = vand.u32 %v462, 4294901760
      %v582 = vsub.f32 %v462, %v581
      %v583 = vand.u32 %v582, 4294901760
      %v584 = vsub.f32 %v582, %v583
      %v585 = vand.u32 %v584, 4294901760
      %586 = vmatmul.f32.gmra.mxu0 %v585
      %v587 = vpop.f32.mrf.mxu0
      %v588 = vadd.f32 %v422, %v587
      %v589 = vand.u32 %v465, 4294901760
      %v590 = vsub.f32 %v465, %v589
      %v591 = vand.u32 %v590, 4294901760
      %v592 = vsub.f32 %v590, %v591
      %v593 = vand.u32 %v592, 4294901760
      %594 = vmatmul.f32.gmra.mxu0 %v593
      %v595 = vpop.f32.mrf.mxu0
      %v596 = vadd.f32 %v422, %v595
      %597 = vdwg.mxu0
      %598 = vmatpush.msra.mxu0 0.0
      %599 = vmatpush.msra.mxu0 0.0
      %600 = vmatpush.msra.mxu0 0.0
      %601 = vmatpush.msra.mxu0 0.0
      %602 = vmatpush.msra.mxu0 0.0
      %603 = vmatpush.msra.mxu0 0.0
      %604 = vmatpush.msra.mxu0 0.0
      %605 = vmatpush.msra.mxu0 0.0
      %606 = vmatpush.msra.mxu0 0.0
      %607 = vmatpush.msra.mxu0 0.0
      %608 = vmatpush.msra.mxu0 0.0
      %609 = vmatpush.msra.mxu0 0.0
      %610 = vmatpush.msra.mxu0 0.0
      %611 = vmatpush.msra.mxu0 0.0
      %v612 = vand.u32 %v419, 4294901760
      %v613 = vsub.f32 %v419, %v612
      %v614 = vand.u32 %v613, 4294901760
      %v615 = vsub.f32 %v613, %v614
      %v616 = vand.u32 %v615, 4294901760
      %617 = vmatpush.msra.mxu0 %v616
      %v618 = vand.u32 %v418, 4294901760
      %v619 = vsub.f32 %v418, %v618
      %v620 = vand.u32 %v619, 4294901760
      %v621 = vsub.f32 %v619, %v620
      %v622 = vand.u32 %v621, 4294901760
      %623 = vmatpush.msra.mxu0 %v622
      %v624 = vand.u32 %v426, 4294901760
      %625 = vmatmul.f32.gmra.mxu0 %v624
      %v626 = vpop.f32.mrf.mxu0
      %v627 = vadd.f32 %v492, %v626
      %v628 = vand.u32 %v429, 4294901760
      %629 = vmatmul.f32.gmra.mxu0 %v628
      %v630 = vpop.f32.mrf.mxu0
      %v631 = vadd.f32 %v500, %v630
      %v632 = vand.u32 %v432, 4294901760
      %633 = vmatmul.f32.gmra.mxu0 %v632
      %v634 = vpop.f32.mrf.mxu0
      %v635 = vadd.f32 %v508, %v634
      %v636 = vand.u32 %v435, 4294901760
      %637 = vmatmul.f32.gmra.mxu0 %v636
      %v638 = vpop.f32.mrf.mxu0
      %v639 = vadd.f32 %v516, %v638
      %v640 = vand.u32 %v438, 4294901760
      %641 = vmatmul.f32.gmra.mxu0 %v640
      %v642 = vpop.f32.mrf.mxu0
      %v643 = vadd.f32 %v524, %v642
      %v644 = vand.u32 %v441, 4294901760
      %645 = vmatmul.f32.gmra.mxu0 %v644
      %v646 = vpop.f32.mrf.mxu0
      %v647 = vadd.f32 %v532, %v646
      %v648 = vand.u32 %v444, 4294901760
      %649 = vmatmul.f32.gmra.mxu0 %v648
      %v650 = vpop.f32.mrf.mxu0
      %v651 = vadd.f32 %v540, %v650
      %v652 = vand.u32 %v447, 4294901760
      %653 = vmatmul.f32.gmra.mxu0 %v652
      %v654 = vpop.f32.mrf.mxu0
      %v655 = vadd.f32 %v548, %v654
      %v656 = vand.u32 %v450, 4294901760
      %657 = vmatmul.f32.gmra.mxu0 %v656
      %v658 = vpop.f32.mrf.mxu0
      %v659 = vadd.f32 %v556, %v658
      %v660 = vand.u32 %v453, 4294901760
      %661 = vmatmul.f32.gmra.mxu0 %v660
      %v662 = vpop.f32.mrf.mxu0
      %v663 = vadd.f32 %v564, %v662
      %v664 = vand.u32 %v456, 4294901760
      %665 = vmatmul.f32.gmra.mxu0 %v664
      %v666 = vpop.f32.mrf.mxu0
      %v667 = vadd.f32 %v572, %v666
      %v668 = vand.u32 %v459, 4294901760
      %669 = vmatmul.f32.gmra.mxu0 %v668
      %v670 = vpop.f32.mrf.mxu0
      %v671 = vadd.f32 %v580, %v670
      %v672 = vand.u32 %v462, 4294901760
      %673 = vmatmul.f32.gmra.mxu0 %v672
      %v674 = vpop.f32.mrf.mxu0
      %v675 = vadd.f32 %v588, %v674
      %v676 = vand.u32 %v465, 4294901760
      %677 = vmatmul.f32.gmra.mxu0 %v676
      %v678 = vpop.f32.mrf.mxu0
      %v679 = vadd.f32 %v596, %v678
      %680 = vdwg.mxu0
      %681 = vmatpush.msra.mxu0 0.0
      %682 = vmatpush.msra.mxu0 0.0
      %683 = vmatpush.msra.mxu0 0.0
      %684 = vmatpush.msra.mxu0 0.0
      %685 = vmatpush.msra.mxu0 0.0
      %686 = vmatpush.msra.mxu0 0.0
      %687 = vmatpush.msra.mxu0 0.0
      %688 = vmatpush.msra.mxu0 0.0
      %689 = vmatpush.msra.mxu0 0.0
      %690 = vmatpush.msra.mxu0 0.0
      %691 = vmatpush.msra.mxu0 0.0
      %692 = vmatpush.msra.mxu0 0.0
      %693 = vmatpush.msra.mxu0 0.0
      %694 = vmatpush.msra.mxu0 0.0
      %v695 = vand.u32 %v419, 4294901760
      %v696 = vsub.f32 %v419, %v695
      %697 = vmatpush.msra.mxu0 %v696
      %v698 = vand.u32 %v418, 4294901760
      %v699 = vsub.f32 %v418, %v698
      %700 = vmatpush.msra.mxu0 %v699
      %v701 = vand.u32 %v426, 4294901760
      %v702 = vsub.f32 %v426, %v701
      %703 = vmatmul.f32.gmra.mxu0 %v702
      %v704 = vpop.f32.mrf.mxu0
      %v705 = vadd.f32 %v627, %v704
      %v706 = vand.u32 %v429, 4294901760
      %v707 = vsub.f32 %v429, %v706
      %708 = vmatmul.f32.gmra.mxu0 %v707
      %v709 = vpop.f32.mrf.mxu0
      %v710 = vadd.f32 %v631, %v709
      %v711 = vand.u32 %v432, 4294901760
      %v712 = vsub.f32 %v432, %v711
      %713 = vmatmul.f32.gmra.mxu0 %v712
      %v714 = vpop.f32.mrf.mxu0
      %v715 = vadd.f32 %v635, %v714
      %v716 = vand.u32 %v435, 4294901760
      %v717 = vsub.f32 %v435, %v716
      %718 = vmatmul.f32.gmra.mxu0 %v717
      %v719 = vpop.f32.mrf.mxu0
      %v720 = vadd.f32 %v639, %v719
      %v721 = vand.u32 %v438, 4294901760
      %v722 = vsub.f32 %v438, %v721
      %723 = vmatmul.f32.gmra.mxu0 %v722
      %v724 = vpop.f32.mrf.mxu0
      %v725 = vadd.f32 %v643, %v724
      %v726 = vand.u32 %v441, 4294901760
      %v727 = vsub.f32 %v441, %v726
      %728 = vmatmul.f32.gmra.mxu0 %v727
      %v729 = vpop.f32.mrf.mxu0
      %v730 = vadd.f32 %v647, %v729
      %v731 = vand.u32 %v444, 4294901760
      %v732 = vsub.f32 %v444, %v731
      %733 = vmatmul.f32.gmra.mxu0 %v732
      %v734 = vpop.f32.mrf.mxu0
      %v735 = vadd.f32 %v651, %v734
      %v736 = vand.u32 %v447, 4294901760
      %v737 = vsub.f32 %v447, %v736
      %738 = vmatmul.f32.gmra.mxu0 %v737
      %v739 = vpop.f32.mrf.mxu0
      %v740 = vadd.f32 %v655, %v739
      %v741 = vand.u32 %v450, 4294901760
      %v742 = vsub.f32 %v450, %v741
      %743 = vmatmul.f32.gmra.mxu0 %v742
      %v744 = vpop.f32.mrf.mxu0
      %v745 = vadd.f32 %v659, %v744
      %v746 = vand.u32 %v453, 4294901760
      %v747 = vsub.f32 %v453, %v746
      %748 = vmatmul.f32.gmra.mxu0 %v747
      %v749 = vpop.f32.mrf.mxu0
      %v750 = vadd.f32 %v663, %v749
      %v751 = vand.u32 %v456, 4294901760
      %v752 = vsub.f32 %v456, %v751
      %753 = vmatmul.f32.gmra.mxu0 %v752
      %v754 = vpop.f32.mrf.mxu0
      %v755 = vadd.f32 %v667, %v754
      %v756 = vand.u32 %v459, 4294901760
      %v757 = vsub.f32 %v459, %v756
      %758 = vmatmul.f32.gmra.mxu0 %v757
      %v759 = vpop.f32.mrf.mxu0
      %v760 = vadd.f32 %v671, %v759
      %v761 = vand.u32 %v462, 4294901760
      %v762 = vsub.f32 %v462, %v761
      %763 = vmatmul.f32.gmra.mxu0 %v762
      %v764 = vpop.f32.mrf.mxu0
      %v765 = vadd.f32 %v675, %v764
      %v766 = vand.u32 %v465, 4294901760
      %v767 = vsub.f32 %v465, %v766
      %768 = vmatmul.f32.gmra.mxu0 %v767
      %v769 = vpop.f32.mrf.mxu0
      %v770 = vadd.f32 %v679, %v769
      %771 = vdwg.mxu0
      %772 = vmatpush.msra.mxu0 0.0
      %773 = vmatpush.msra.mxu0 0.0
      %774 = vmatpush.msra.mxu0 0.0
      %775 = vmatpush.msra.mxu0 0.0
      %776 = vmatpush.msra.mxu0 0.0
      %777 = vmatpush.msra.mxu0 0.0
      %778 = vmatpush.msra.mxu0 0.0
      %779 = vmatpush.msra.mxu0 0.0
      %780 = vmatpush.msra.mxu0 0.0
      %781 = vmatpush.msra.mxu0 0.0
      %782 = vmatpush.msra.mxu0 0.0
      %783 = vmatpush.msra.mxu0 0.0
      %784 = vmatpush.msra.mxu0 0.0
      %785 = vmatpush.msra.mxu0 0.0
      %v786 = vand.u32 %v419, 4294901760
      %787 = vmatpush.msra.mxu0 %v786
      %v788 = vand.u32 %v418, 4294901760
      %789 = vmatpush.msra.mxu0 %v788
      %v790 = vand.u32 %v426, 4294901760
      %v791 = vsub.f32 %v426, %v790
      %v792 = vand.u32 %v791, 4294901760
      %793 = vmatmul.f32.gmra.mxu0 %v792
      %v794 = vpop.f32.mrf.mxu0
      %v795 = vadd.f32 %v705, %v794
      %v796 = vand.u32 %v429, 4294901760
      %v797 = vsub.f32 %v429, %v796
      %v798 = vand.u32 %v797, 4294901760
      %799 = vmatmul.f32.gmra.mxu0 %v798
      %v800 = vpop.f32.mrf.mxu0
      %v801 = vadd.f32 %v710, %v800
      %v802 = vand.u32 %v432, 4294901760
      %v803 = vsub.f32 %v432, %v802
      %v804 = vand.u32 %v803, 4294901760
      %805 = vmatmul.f32.gmra.mxu0 %v804
      %v806 = vpop.f32.mrf.mxu0
      %v807 = vadd.f32 %v715, %v806
      %v808 = vand.u32 %v435, 4294901760
      %v809 = vsub.f32 %v435, %v808
      %v810 = vand.u32 %v809, 4294901760
      %811 = vmatmul.f32.gmra.mxu0 %v810
      %v812 = vpop.f32.mrf.mxu0
      %v813 = vadd.f32 %v720, %v812
      %v814 = vand.u32 %v438, 4294901760
      %v815 = vsub.f32 %v438, %v814
      %v816 = vand.u32 %v815, 4294901760
      %817 = vmatmul.f32.gmra.mxu0 %v816
      %v818 = vpop.f32.mrf.mxu0
      %v819 = vadd.f32 %v725, %v818
      %v820 = vand.u32 %v441, 4294901760
      %v821 = vsub.f32 %v441, %v820
      %v822 = vand.u32 %v821, 4294901760
      %823 = vmatmul.f32.gmra.mxu0 %v822
      %v824 = vpop.f32.mrf.mxu0
      %v825 = vadd.f32 %v730, %v824
      %v826 = vand.u32 %v444, 4294901760
      %v827 = vsub.f32 %v444, %v826
      %v828 = vand.u32 %v827, 4294901760
      %829 = vmatmul.f32.gmra.mxu0 %v828
      %v830 = vpop.f32.mrf.mxu0
      %v831 = vadd.f32 %v735, %v830
      %v832 = vand.u32 %v447, 4294901760
      %v833 = vsub.f32 %v447, %v832
      %v834 = vand.u32 %v833, 4294901760
      %835 = vmatmul.f32.gmra.mxu0 %v834
      %v836 = vpop.f32.mrf.mxu0
      %v837 = vadd.f32 %v740, %v836
      %v838 = vand.u32 %v450, 4294901760
      %v839 = vsub.f32 %v450, %v838
      %v840 = vand.u32 %v839, 4294901760
      %841 = vmatmul.f32.gmra.mxu0 %v840
      %v842 = vpop.f32.mrf.mxu0
      %v843 = vadd.f32 %v745, %v842
      %v844 = vand.u32 %v453, 4294901760
      %v845 = vsub.f32 %v453, %v844
      %v846 = vand.u32 %v845, 4294901760
      %847 = vmatmul.f32.gmra.mxu0 %v846
      %v848 = vpop.f32.mrf.mxu0
      %v849 = vadd.f32 %v750, %v848
      %v850 = vand.u32 %v456, 4294901760
      %v851 = vsub.f32 %v456, %v850
      %v852 = vand.u32 %v851, 4294901760
      %853 = vmatmul.f32.gmra.mxu0 %v852
      %v854 = vpop.f32.mrf.mxu0
      %v855 = vadd.f32 %v755, %v854
      %v856 = vand.u32 %v459, 4294901760
      %v857 = vsub.f32 %v459, %v856
      %v858 = vand.u32 %v857, 4294901760
      %859 = vmatmul.f32.gmra.mxu0 %v858
      %v860 = vpop.f32.mrf.mxu0
      %v861 = vadd.f32 %v760, %v860
      %v862 = vand.u32 %v462, 4294901760
      %v863 = vsub.f32 %v462, %v862
      %v864 = vand.u32 %v863, 4294901760
      %865 = vmatmul.f32.gmra.mxu0 %v864
      %v866 = vpop.f32.mrf.mxu0
      %v867 = vadd.f32 %v765, %v866
      %v868 = vand.u32 %v465, 4294901760
      %v869 = vsub.f32 %v465, %v868
      %v870 = vand.u32 %v869, 4294901760
      %871 = vmatmul.f32.gmra.mxu0 %v870
      %v872 = vpop.f32.mrf.mxu0
      %v873 = vadd.f32 %v770, %v872
      %874 = vdwg.mxu0
      %875 = vmatpush.msra.mxu0 0.0
      %876 = vmatpush.msra.mxu0 0.0
      %877 = vmatpush.msra.mxu0 0.0
      %878 = vmatpush.msra.mxu0 0.0
      %879 = vmatpush.msra.mxu0 0.0
      %880 = vmatpush.msra.mxu0 0.0
      %881 = vmatpush.msra.mxu0 0.0
      %882 = vmatpush.msra.mxu0 0.0
      %883 = vmatpush.msra.mxu0 0.0
      %884 = vmatpush.msra.mxu0 0.0
      %885 = vmatpush.msra.mxu0 0.0
      %886 = vmatpush.msra.mxu0 0.0
      %887 = vmatpush.msra.mxu0 0.0
      %888 = vmatpush.msra.mxu0 0.0
      %v889 = vand.u32 %v419, 4294901760
      %v890 = vsub.f32 %v419, %v889
      %v891 = vand.u32 %v890, 4294901760
      %892 = vmatpush.msra.mxu0 %v891
      %v893 = vand.u32 %v418, 4294901760
      %v894 = vsub.f32 %v418, %v893
      %v895 = vand.u32 %v894, 4294901760
      %896 = vmatpush.msra.mxu0 %v895
      %v897 = vand.u32 %v426, 4294901760
      %898 = vmatmul.f32.gmra.mxu0 %v897
      %v899 = vpop.f32.mrf.mxu0
      %v900 = vadd.f32 %v795, %v899
      %v901 = vand.u32 %v429, 4294901760
      %902 = vmatmul.f32.gmra.mxu0 %v901
      %v903 = vpop.f32.mrf.mxu0
      %v904 = vadd.f32 %v801, %v903
      %v905 = vand.u32 %v432, 4294901760
      %906 = vmatmul.f32.gmra.mxu0 %v905
      %v907 = vpop.f32.mrf.mxu0
      %v908 = vadd.f32 %v807, %v907
      %v909 = vand.u32 %v435, 4294901760
      %910 = vmatmul.f32.gmra.mxu0 %v909
      %v911 = vpop.f32.mrf.mxu0
      %v912 = vadd.f32 %v813, %v911
      %v913 = vand.u32 %v438, 4294901760
      %914 = vmatmul.f32.gmra.mxu0 %v913
      %v915 = vpop.f32.mrf.mxu0
      %v916 = vadd.f32 %v819, %v915
      %v917 = vand.u32 %v441, 4294901760
      %918 = vmatmul.f32.gmra.mxu0 %v917
      %v919 = vpop.f32.mrf.mxu0
      %v920 = vadd.f32 %v825, %v919
      %v921 = vand.u32 %v444, 4294901760
      %922 = vmatmul.f32.gmra.mxu0 %v921
      %v923 = vpop.f32.mrf.mxu0
      %v924 = vadd.f32 %v831, %v923
      %v925 = vand.u32 %v447, 4294901760
      %926 = vmatmul.f32.gmra.mxu0 %v925
      %v927 = vpop.f32.mrf.mxu0
      %v928 = vadd.f32 %v837, %v927
      %v929 = vand.u32 %v450, 4294901760
      %930 = vmatmul.f32.gmra.mxu0 %v929
      %v931 = vpop.f32.mrf.mxu0
      %v932 = vadd.f32 %v843, %v931
      %v933 = vand.u32 %v453, 4294901760
      %934 = vmatmul.f32.gmra.mxu0 %v933
      %v935 = vpop.f32.mrf.mxu0
      %v936 = vadd.f32 %v849, %v935
      %v937 = vand.u32 %v456, 4294901760
      %938 = vmatmul.f32.gmra.mxu0 %v937
      %v939 = vpop.f32.mrf.mxu0
      %v940 = vadd.f32 %v855, %v939
      %v941 = vand.u32 %v459, 4294901760
      %942 = vmatmul.f32.gmra.mxu0 %v941
      %v943 = vpop.f32.mrf.mxu0
      %v944 = vadd.f32 %v861, %v943
      %v945 = vand.u32 %v462, 4294901760
      %946 = vmatmul.f32.gmra.mxu0 %v945
      %v947 = vpop.f32.mrf.mxu0
      %v948 = vadd.f32 %v867, %v947
      %v949 = vand.u32 %v465, 4294901760
      %950 = vmatmul.f32.gmra.mxu0 %v949
      %v951 = vpop.f32.mrf.mxu0
      %v952 = vadd.f32 %v873, %v951
      %953 = vdwg.mxu0
      %954 = vmatpush.msra.mxu0 0.0
      %955 = vmatpush.msra.mxu0 0.0
      %956 = vmatpush.msra.mxu0 0.0
      %957 = vmatpush.msra.mxu0 0.0
      %958 = vmatpush.msra.mxu0 0.0
      %959 = vmatpush.msra.mxu0 0.0
      %960 = vmatpush.msra.mxu0 0.0
      %961 = vmatpush.msra.mxu0 0.0
      %962 = vmatpush.msra.mxu0 0.0
      %963 = vmatpush.msra.mxu0 0.0
      %964 = vmatpush.msra.mxu0 0.0
      %965 = vmatpush.msra.mxu0 0.0
      %966 = vmatpush.msra.mxu0 0.0
      %967 = vmatpush.msra.mxu0 0.0
      %v968 = vand.u32 %v419, 4294901760
      %969 = vmatpush.msra.mxu0 %v968
      %v970 = vand.u32 %v418, 4294901760
      %971 = vmatpush.msra.mxu0 %v970
      %v972 = vand.u32 %v426, 4294901760
      %973 = vmatmul.f32.gmra.mxu0 %v972
      %v974 = vpop.f32.mrf.mxu0
      %v975 = vadd.f32 %v900, %v974
      %v976 = vand.u32 %v429, 4294901760
      %977 = vmatmul.f32.gmra.mxu0 %v976
      %v978 = vpop.f32.mrf.mxu0
      %v979 = vadd.f32 %v904, %v978
      %v980 = vand.u32 %v432, 4294901760
      %981 = vmatmul.f32.gmra.mxu0 %v980
      %v982 = vpop.f32.mrf.mxu0
      %v983 = vadd.f32 %v908, %v982
      %v984 = vand.u32 %v435, 4294901760
      %985 = vmatmul.f32.gmra.mxu0 %v984
      %v986 = vpop.f32.mrf.mxu0
      %v987 = vadd.f32 %v912, %v986
      %v988 = vand.u32 %v438, 4294901760
      %989 = vmatmul.f32.gmra.mxu0 %v988
      %v990 = vpop.f32.mrf.mxu0
      %v991 = vadd.f32 %v916, %v990
      %v992 = vand.u32 %v441, 4294901760
      %993 = vmatmul.f32.gmra.mxu0 %v992
      %v994 = vpop.f32.mrf.mxu0
      %v995 = vadd.f32 %v920, %v994
      %v996 = vand.u32 %v444, 4294901760
      %997 = vmatmul.f32.gmra.mxu0 %v996
      %v998 = vpop.f32.mrf.mxu0
      %v999 = vadd.f32 %v924, %v998
      %v1000 = vand.u32 %v447, 4294901760
      %1001 = vmatmul.f32.gmra.mxu0 %v1000
      %v1002 = vpop.f32.mrf.mxu0
      %v1003 = vadd.f32 %v928, %v1002
      %v1004 = vand.u32 %v450, 4294901760
      %1005 = vmatmul.f32.gmra.mxu0 %v1004
      %v1006 = vpop.f32.mrf.mxu0
      %v1007 = vadd.f32 %v932, %v1006
      %v1008 = vand.u32 %v453, 4294901760
      %1009 = vmatmul.f32.gmra.mxu0 %v1008
      %v1010 = vpop.f32.mrf.mxu0
      %v1011 = vadd.f32 %v936, %v1010
      %v1012 = vand.u32 %v456, 4294901760
      %1013 = vmatmul.f32.gmra.mxu0 %v1012
      %v1014 = vpop.f32.mrf.mxu0
      %v1015 = vadd.f32 %v940, %v1014
      %v1016 = vand.u32 %v459, 4294901760
      %1017 = vmatmul.f32.gmra.mxu0 %v1016
      %v1018 = vpop.f32.mrf.mxu0
      %v1019 = vadd.f32 %v944, %v1018
      %v1020 = vand.u32 %v462, 4294901760
      %1021 = vmatmul.f32.gmra.mxu0 %v1020
      %v1022 = vpop.f32.mrf.mxu0
      %v1023 = vadd.f32 %v948, %v1022
      %v1024 = vand.u32 %v465, 4294901760
      %1025 = vmatmul.f32.gmra.mxu0 %v1024
      %v1026 = vpop.f32.mrf.mxu0
      %v1027 = vadd.f32 %v952, %v1026
      %1028 = vdwg.mxu0
      %v1029 = vmax.f32 %v975, 0.0
      %v1030 = vmax.f32 %v979, 0.0
      %v1031 = vmax.f32 %v983, 0.0
      %v1032 = vmax.f32 %v987, 0.0
      %v1033 = vmax.f32 %v991, 0.0
      %v1034 = vmax.f32 %v995, 0.0
      %v1035 = vmax.f32 %v999, 0.0
      %v1036 = vmax.f32 %v1003, 0.0
      %v1037 = vmax.f32 %v1007, 0.0
      %v1038 = vmax.f32 %v1011, 0.0
      %v1039 = vmax.f32 %v1015, 0.0
      %v1040 = vmax.f32 %v1019, 0.0
      %v1041 = vmax.f32 %v1023, 0.0
      %v1042 = vmax.f32 %v1027, 0.0
      %v1043 = vld [vmem:[%s3] sm:$0xff]
      %v1044 = vld [vmem:[%s3 + $0x8] sm:$0xff]
      %v1045 = vld [vmem:[%s3 + $0x10] sm:$0xff]
      %v1046 = vld [vmem:[%s3 + $0x18] sm:$0xff]
      %v1047 = vld [vmem:[%s4] sm:$0x1]
      %v1049 = vperm.slane %v1047, 0
      %vm1051 = vcmask 261120
      %v1053 = vsel %vm1051, %v1029, 0
      %v1056 = vsel %vm1051, %v1030, 0
      %v1059 = vsel %vm1051, %v1031, 0
      %v1062 = vsel %vm1051, %v1032, 0
      %v1065 = vsel %vm1051, %v1033, 0
      %v1068 = vsel %vm1051, %v1034, 0
      %v1071 = vsel %vm1051, %v1035, 0
      %v1074 = vsel %vm1051, %v1036, 0
      %v1077 = vsel %vm1051, %v1037, 0
      %v1080 = vsel %vm1051, %v1038, 0
      %v1083 = vsel %vm1051, %v1039, 0
      %v1086 = vsel %vm1051, %v1040, 0
      %v1089 = vsel %vm1051, %v1041, 0
      %v1092 = vsel %vm1051, %v1042, 0
      %1094 = vmatpush.msra.mxu0 0.0
      %1095 = vmatpush.msra.mxu0 0.0
      %1096 = vmatpush.msra.mxu0 0.0
      %1097 = vmatpush.msra.mxu0 0.0
      %1098 = vmatpush.msra.mxu0 0.0
      %1099 = vmatpush.msra.mxu0 0.0
      %1100 = vmatpush.msra.mxu0 0.0
      %1101 = vmatpush.msra.mxu0 0.0
      %1102 = vmatpush.msra.mxu0 0.0
      %1103 = vmatpush.msra.mxu0 0.0
      %1104 = vmatpush.msra.mxu0 0.0
      %1105 = vmatpush.msra.mxu0 0.0
      %v1106 = vand.u32 %v1046, 4294901760
      %1107 = vmatpush.msra.mxu0 %v1106
      %v1108 = vand.u32 %v1045, 4294901760
      %1109 = vmatpush.msra.mxu0 %v1108
      %v1110 = vand.u32 %v1044, 4294901760
      %1111 = vmatpush.msra.mxu0 %v1110
      %v1112 = vand.u32 %v1043, 4294901760
      %1113 = vmatpush.msra.mxu0 %v1112
      %v1114 = vand.u32 %v1053, 4294901760
      %v1115 = vsub.f32 %v1053, %v1114
      %v1116 = vand.u32 %v1115, 4294901760
      %v1117 = vsub.f32 %v1115, %v1116
      %v1118 = vand.u32 %v1117, 4294901760
      %1119 = vmatmul.f32.gmra.mxu0 %v1118
      %v1120 = vpop.f32.mrf.mxu0
      %v1121 = vadd.f32 %v1049, %v1120
      %v1122 = vand.u32 %v1056, 4294901760
      %v1123 = vsub.f32 %v1056, %v1122
      %v1124 = vand.u32 %v1123, 4294901760
      %v1125 = vsub.f32 %v1123, %v1124
      %v1126 = vand.u32 %v1125, 4294901760
      %1127 = vmatmul.f32.gmra.mxu0 %v1126
      %v1128 = vpop.f32.mrf.mxu0
      %v1129 = vadd.f32 %v1049, %v1128
      %v1130 = vand.u32 %v1059, 4294901760
      %v1131 = vsub.f32 %v1059, %v1130
      %v1132 = vand.u32 %v1131, 4294901760
      %v1133 = vsub.f32 %v1131, %v1132
      %v1134 = vand.u32 %v1133, 4294901760
      %1135 = vmatmul.f32.gmra.mxu0 %v1134
      %v1136 = vpop.f32.mrf.mxu0
      %v1137 = vadd.f32 %v1049, %v1136
      %v1138 = vand.u32 %v1062, 4294901760
      %v1139 = vsub.f32 %v1062, %v1138
      %v1140 = vand.u32 %v1139, 4294901760
      %v1141 = vsub.f32 %v1139, %v1140
      %v1142 = vand.u32 %v1141, 4294901760
      %1143 = vmatmul.f32.gmra.mxu0 %v1142
      %v1144 = vpop.f32.mrf.mxu0
      %v1145 = vadd.f32 %v1049, %v1144
      %v1146 = vand.u32 %v1065, 4294901760
      %v1147 = vsub.f32 %v1065, %v1146
      %v1148 = vand.u32 %v1147, 4294901760
      %v1149 = vsub.f32 %v1147, %v1148
      %v1150 = vand.u32 %v1149, 4294901760
      %1151 = vmatmul.f32.gmra.mxu0 %v1150
      %v1152 = vpop.f32.mrf.mxu0
      %v1153 = vadd.f32 %v1049, %v1152
      %v1154 = vand.u32 %v1068, 4294901760
      %v1155 = vsub.f32 %v1068, %v1154
      %v1156 = vand.u32 %v1155, 4294901760
      %v1157 = vsub.f32 %v1155, %v1156
      %v1158 = vand.u32 %v1157, 4294901760
      %1159 = vmatmul.f32.gmra.mxu0 %v1158
      %v1160 = vpop.f32.mrf.mxu0
      %v1161 = vadd.f32 %v1049, %v1160
      %v1162 = vand.u32 %v1071, 4294901760
      %v1163 = vsub.f32 %v1071, %v1162
      %v1164 = vand.u32 %v1163, 4294901760
      %v1165 = vsub.f32 %v1163, %v1164
      %v1166 = vand.u32 %v1165, 4294901760
      %1167 = vmatmul.f32.gmra.mxu0 %v1166
      %v1168 = vpop.f32.mrf.mxu0
      %v1169 = vadd.f32 %v1049, %v1168
      %v1170 = vand.u32 %v1074, 4294901760
      %v1171 = vsub.f32 %v1074, %v1170
      %v1172 = vand.u32 %v1171, 4294901760
      %v1173 = vsub.f32 %v1171, %v1172
      %v1174 = vand.u32 %v1173, 4294901760
      %1175 = vmatmul.f32.gmra.mxu0 %v1174
      %v1176 = vpop.f32.mrf.mxu0
      %v1177 = vadd.f32 %v1049, %v1176
      %v1178 = vand.u32 %v1077, 4294901760
      %v1179 = vsub.f32 %v1077, %v1178
      %v1180 = vand.u32 %v1179, 4294901760
      %v1181 = vsub.f32 %v1179, %v1180
      %v1182 = vand.u32 %v1181, 4294901760
      %1183 = vmatmul.f32.gmra.mxu0 %v1182
      %v1184 = vpop.f32.mrf.mxu0
      %v1185 = vadd.f32 %v1049, %v1184
      %v1186 = vand.u32 %v1080, 4294901760
      %v1187 = vsub.f32 %v1080, %v1186
      %v1188 = vand.u32 %v1187, 4294901760
      %v1189 = vsub.f32 %v1187, %v1188
      %v1190 = vand.u32 %v1189, 4294901760
      %1191 = vmatmul.f32.gmra.mxu0 %v1190
      %v1192 = vpop.f32.mrf.mxu0
      %v1193 = vadd.f32 %v1049, %v1192
      %v1194 = vand.u32 %v1083, 4294901760
      %v1195 = vsub.f32 %v1083, %v1194
      %v1196 = vand.u32 %v1195, 4294901760
      %v1197 = vsub.f32 %v1195, %v1196
      %v1198 = vand.u32 %v1197, 4294901760
      %1199 = vmatmul.f32.gmra.mxu0 %v1198
      %v1200 = vpop.f32.mrf.mxu0
      %v1201 = vadd.f32 %v1049, %v1200
      %v1202 = vand.u32 %v1086, 4294901760
      %v1203 = vsub.f32 %v1086, %v1202
      %v1204 = vand.u32 %v1203, 4294901760
      %v1205 = vsub.f32 %v1203, %v1204
      %v1206 = vand.u32 %v1205, 4294901760
      %1207 = vmatmul.f32.gmra.mxu0 %v1206
      %v1208 = vpop.f32.mrf.mxu0
      %v1209 = vadd.f32 %v1049, %v1208
      %v1210 = vand.u32 %v1089, 4294901760
      %v1211 = vsub.f32 %v1089, %v1210
      %v1212 = vand.u32 %v1211, 4294901760
      %v1213 = vsub.f32 %v1211, %v1212
      %v1214 = vand.u32 %v1213, 4294901760
      %1215 = vmatmul.f32.gmra.mxu0 %v1214
      %v1216 = vpop.f32.mrf.mxu0
      %v1217 = vadd.f32 %v1049, %v1216
      %v1218 = vand.u32 %v1092, 4294901760
      %v1219 = vsub.f32 %v1092, %v1218
      %v1220 = vand.u32 %v1219, 4294901760
      %v1221 = vsub.f32 %v1219, %v1220
      %v1222 = vand.u32 %v1221, 4294901760
      %1223 = vmatmul.f32.gmra.mxu0 %v1222
      %v1224 = vpop.f32.mrf.mxu0
      %v1225 = vadd.f32 %v1049, %v1224
      %1226 = vdwg.mxu0
      %1227 = vmatpush.msra.mxu0 0.0
      %1228 = vmatpush.msra.mxu0 0.0
      %1229 = vmatpush.msra.mxu0 0.0
      %1230 = vmatpush.msra.mxu0 0.0
      %1231 = vmatpush.msra.mxu0 0.0
      %1232 = vmatpush.msra.mxu0 0.0
      %1233 = vmatpush.msra.mxu0 0.0
      %1234 = vmatpush.msra.mxu0 0.0
      %1235 = vmatpush.msra.mxu0 0.0
      %1236 = vmatpush.msra.mxu0 0.0
      %1237 = vmatpush.msra.mxu0 0.0
      %1238 = vmatpush.msra.mxu0 0.0
      %v1239 = vand.u32 %v1046, 4294901760
      %v1240 = vsub.f32 %v1046, %v1239
      %v1241 = vand.u32 %v1240, 4294901760
      %v1242 = vsub.f32 %v1240, %v1241
      %v1243 = vand.u32 %v1242, 4294901760
      %1244 = vmatpush.msra.mxu0 %v1243
      %v1245 = vand.u32 %v1045, 4294901760
      %v1246 = vsub.f32 %v1045, %v1245
      %v1247 = vand.u32 %v1246, 4294901760
      %v1248 = vsub.f32 %v1246, %v1247
      %v1249 = vand.u32 %v1248, 4294901760
      %1250 = vmatpush.msra.mxu0 %v1249
      %v1251 = vand.u32 %v1044, 4294901760
      %v1252 = vsub.f32 %v1044, %v1251
      %v1253 = vand.u32 %v1252, 4294901760
      %v1254 = vsub.f32 %v1252, %v1253
      %v1255 = vand.u32 %v1254, 4294901760
      %1256 = vmatpush.msra.mxu0 %v1255
      %v1257 = vand.u32 %v1043, 4294901760
      %v1258 = vsub.f32 %v1043, %v1257
      %v1259 = vand.u32 %v1258, 4294901760
      %v1260 = vsub.f32 %v1258, %v1259
      %v1261 = vand.u32 %v1260, 4294901760
      %1262 = vmatpush.msra.mxu0 %v1261
      %v1263 = vand.u32 %v1053, 4294901760
      %1264 = vmatmul.f32.gmra.mxu0 %v1263
      %v1265 = vpop.f32.mrf.mxu0
      %v1266 = vadd.f32 %v1121, %v1265
      %v1267 = vand.u32 %v1056, 4294901760
      %1268 = vmatmul.f32.gmra.mxu0 %v1267
      %v1269 = vpop.f32.mrf.mxu0
      %v1270 = vadd.f32 %v1129, %v1269
      %v1271 = vand.u32 %v1059, 4294901760
      %1272 = vmatmul.f32.gmra.mxu0 %v1271
      %v1273 = vpop.f32.mrf.mxu0
      %v1274 = vadd.f32 %v1137, %v1273
      %v1275 = vand.u32 %v1062, 4294901760
      %1276 = vmatmul.f32.gmra.mxu0 %v1275
      %v1277 = vpop.f32.mrf.mxu0
      %v1278 = vadd.f32 %v1145, %v1277
      %v1279 = vand.u32 %v1065, 4294901760
      %1280 = vmatmul.f32.gmra.mxu0 %v1279
      %v1281 = vpop.f32.mrf.mxu0
      %v1282 = vadd.f32 %v1153, %v1281
      %v1283 = vand.u32 %v1068, 4294901760
      %1284 = vmatmul.f32.gmra.mxu0 %v1283
      %v1285 = vpop.f32.mrf.mxu0
      %v1286 = vadd.f32 %v1161, %v1285
      %v1287 = vand.u32 %v1071, 4294901760
      %1288 = vmatmul.f32.gmra.mxu0 %v1287
      %v1289 = vpop.f32.mrf.mxu0
      %v1290 = vadd.f32 %v1169, %v1289
      %v1291 = vand.u32 %v1074, 4294901760
      %1292 = vmatmul.f32.gmra.mxu0 %v1291
      %v1293 = vpop.f32.mrf.mxu0
      %v1294 = vadd.f32 %v1177, %v1293
      %v1295 = vand.u32 %v1077, 4294901760
      %1296 = vmatmul.f32.gmra.mxu0 %v1295
      %v1297 = vpop.f32.mrf.mxu0
      %v1298 = vadd.f32 %v1185, %v1297
      %v1299 = vand.u32 %v1080, 4294901760
      %1300 = vmatmul.f32.gmra.mxu0 %v1299
      %v1301 = vpop.f32.mrf.mxu0
      %v1302 = vadd.f32 %v1193, %v1301
      %v1303 = vand.u32 %v1083, 4294901760
      %1304 = vmatmul.f32.gmra.mxu0 %v1303
      %v1305 = vpop.f32.mrf.mxu0
      %v1306 = vadd.f32 %v1201, %v1305
      %v1307 = vand.u32 %v1086, 4294901760
      %1308 = vmatmul.f32.gmra.mxu0 %v1307
      %v1309 = vpop.f32.mrf.mxu0
      %v1310 = vadd.f32 %v1209, %v1309
      %v1311 = vand.u32 %v1089, 4294901760
      %1312 = vmatmul.f32.gmra.mxu0 %v1311
      %v1313 = vpop.f32.mrf.mxu0
      %v1314 = vadd.f32 %v1217, %v1313
      %v1315 = vand.u32 %v1092, 4294901760
      %1316 = vmatmul.f32.gmra.mxu0 %v1315
      %v1317 = vpop.f32.mrf.mxu0
      %v1318 = vadd.f32 %v1225, %v1317
      %1319 = vdwg.mxu0
      %1320 = vmatpush.msra.mxu0 0.0
      %1321 = vmatpush.msra.mxu0 0.0
      %1322 = vmatpush.msra.mxu0 0.0
      %1323 = vmatpush.msra.mxu0 0.0
      %1324 = vmatpush.msra.mxu0 0.0
      %1325 = vmatpush.msra.mxu0 0.0
      %1326 = vmatpush.msra.mxu0 0.0
      %1327 = vmatpush.msra.mxu0 0.0
      %1328 = vmatpush.msra.mxu0 0.0
      %1329 = vmatpush.msra.mxu0 0.0
      %1330 = vmatpush.msra.mxu0 0.0
      %1331 = vmatpush.msra.mxu0 0.0
      %v1332 = vand.u32 %v1046, 4294901760
      %v1333 = vsub.f32 %v1046, %v1332
      %1334 = vmatpush.msra.mxu0 %v1333
      %v1335 = vand.u32 %v1045, 4294901760
      %v1336 = vsub.f32 %v1045, %v1335
      %1337 = vmatpush.msra.mxu0 %v1336
      %v1338 = vand.u32 %v1044, 4294901760
      %v1339 = vsub.f32 %v1044, %v1338
      %1340 = vmatpush.msra.mxu0 %v1339
      %v1341 = vand.u32 %v1043, 4294901760
      %v1342 = vsub.f32 %v1043, %v1341
      %1343 = vmatpush.msra.mxu0 %v1342
      %v1344 = vand.u32 %v1053, 4294901760
      %v1345 = vsub.f32 %v1053, %v1344
      %1346 = vmatmul.f32.gmra.mxu0 %v1345
      %v1347 = vpop.f32.mrf.mxu0
      %v1348 = vadd.f32 %v1266, %v1347
      %v1349 = vand.u32 %v1056, 4294901760
      %v1350 = vsub.f32 %v1056, %v1349
      %1351 = vmatmul.f32.gmra.mxu0 %v1350
      %v1352 = vpop.f32.mrf.mxu0
      %v1353 = vadd.f32 %v1270, %v1352
      %v1354 = vand.u32 %v1059, 4294901760
      %v1355 = vsub.f32 %v1059, %v1354
      %1356 = vmatmul.f32.gmra.mxu0 %v1355
      %v1357 = vpop.f32.mrf.mxu0
      %v1358 = vadd.f32 %v1274, %v1357
      %v1359 = vand.u32 %v1062, 4294901760
      %v1360 = vsub.f32 %v1062, %v1359
      %1361 = vmatmul.f32.gmra.mxu0 %v1360
      %v1362 = vpop.f32.mrf.mxu0
      %v1363 = vadd.f32 %v1278, %v1362
      %v1364 = vand.u32 %v1065, 4294901760
      %v1365 = vsub.f32 %v1065, %v1364
      %1366 = vmatmul.f32.gmra.mxu0 %v1365
      %v1367 = vpop.f32.mrf.mxu0
      %v1368 = vadd.f32 %v1282, %v1367
      %v1369 = vand.u32 %v1068, 4294901760
      %v1370 = vsub.f32 %v1068, %v1369
      %1371 = vmatmul.f32.gmra.mxu0 %v1370
      %v1372 = vpop.f32.mrf.mxu0
      %v1373 = vadd.f32 %v1286, %v1372
      %v1374 = vand.u32 %v1071, 4294901760
      %v1375 = vsub.f32 %v1071, %v1374
      %1376 = vmatmul.f32.gmra.mxu0 %v1375
      %v1377 = vpop.f32.mrf.mxu0
      %v1378 = vadd.f32 %v1290, %v1377
      %v1379 = vand.u32 %v1074, 4294901760
      %v1380 = vsub.f32 %v1074, %v1379
      %1381 = vmatmul.f32.gmra.mxu0 %v1380
      %v1382 = vpop.f32.mrf.mxu0
      %v1383 = vadd.f32 %v1294, %v1382
      %v1384 = vand.u32 %v1077, 4294901760
      %v1385 = vsub.f32 %v1077, %v1384
      %1386 = vmatmul.f32.gmra.mxu0 %v1385
      %v1387 = vpop.f32.mrf.mxu0
      %v1388 = vadd.f32 %v1298, %v1387
      %v1389 = vand.u32 %v1080, 4294901760
      %v1390 = vsub.f32 %v1080, %v1389
      %1391 = vmatmul.f32.gmra.mxu0 %v1390
      %v1392 = vpop.f32.mrf.mxu0
      %v1393 = vadd.f32 %v1302, %v1392
      %v1394 = vand.u32 %v1083, 4294901760
      %v1395 = vsub.f32 %v1083, %v1394
      %1396 = vmatmul.f32.gmra.mxu0 %v1395
      %v1397 = vpop.f32.mrf.mxu0
      %v1398 = vadd.f32 %v1306, %v1397
      %v1399 = vand.u32 %v1086, 4294901760
      %v1400 = vsub.f32 %v1086, %v1399
      %1401 = vmatmul.f32.gmra.mxu0 %v1400
      %v1402 = vpop.f32.mrf.mxu0
      %v1403 = vadd.f32 %v1310, %v1402
      %v1404 = vand.u32 %v1089, 4294901760
      %v1405 = vsub.f32 %v1089, %v1404
      %1406 = vmatmul.f32.gmra.mxu0 %v1405
      %v1407 = vpop.f32.mrf.mxu0
      %v1408 = vadd.f32 %v1314, %v1407
      %v1409 = vand.u32 %v1092, 4294901760
      %v1410 = vsub.f32 %v1092, %v1409
      %1411 = vmatmul.f32.gmra.mxu0 %v1410
      %v1412 = vpop.f32.mrf.mxu0
      %v1413 = vadd.f32 %v1318, %v1412
      %1414 = vdwg.mxu0
      %1415 = vmatpush.msra.mxu0 0.0
      %1416 = vmatpush.msra.mxu0 0.0
      %1417 = vmatpush.msra.mxu0 0.0
      %1418 = vmatpush.msra.mxu0 0.0
      %1419 = vmatpush.msra.mxu0 0.0
      %1420 = vmatpush.msra.mxu0 0.0
      %1421 = vmatpush.msra.mxu0 0.0
      %1422 = vmatpush.msra.mxu0 0.0
      %1423 = vmatpush.msra.mxu0 0.0
      %1424 = vmatpush.msra.mxu0 0.0
      %1425 = vmatpush.msra.mxu0 0.0
      %1426 = vmatpush.msra.mxu0 0.0
      %v1427 = vand.u32 %v1046, 4294901760
      %1428 = vmatpush.msra.mxu0 %v1427
      %v1429 = vand.u32 %v1045, 4294901760
      %1430 = vmatpush.msra.mxu0 %v1429
      %v1431 = vand.u32 %v1044, 4294901760
      %1432 = vmatpush.msra.mxu0 %v1431
      %v1433 = vand.u32 %v1043, 4294901760
      %1434 = vmatpush.msra.mxu0 %v1433
      %v1435 = vand.u32 %v1053, 4294901760
      %v1436 = vsub.f32 %v1053, %v1435
      %v1437 = vand.u32 %v1436, 4294901760
      %1438 = vmatmul.f32.gmra.mxu0 %v1437
      %v1439 = vpop.f32.mrf.mxu0
      %v1440 = vadd.f32 %v1348, %v1439
      %v1441 = vand.u32 %v1056, 4294901760
      %v1442 = vsub.f32 %v1056, %v1441
      %v1443 = vand.u32 %v1442, 4294901760
      %1444 = vmatmul.f32.gmra.mxu0 %v1443
      %v1445 = vpop.f32.mrf.mxu0
      %v1446 = vadd.f32 %v1353, %v1445
      %v1447 = vand.u32 %v1059, 4294901760
      %v1448 = vsub.f32 %v1059, %v1447
      %v1449 = vand.u32 %v1448, 4294901760
      %1450 = vmatmul.f32.gmra.mxu0 %v1449
      %v1451 = vpop.f32.mrf.mxu0
      %v1452 = vadd.f32 %v1358, %v1451
      %v1453 = vand.u32 %v1062, 4294901760
      %v1454 = vsub.f32 %v1062, %v1453
      %v1455 = vand.u32 %v1454, 4294901760
      %1456 = vmatmul.f32.gmra.mxu0 %v1455
      %v1457 = vpop.f32.mrf.mxu0
      %v1458 = vadd.f32 %v1363, %v1457
      %v1459 = vand.u32 %v1065, 4294901760
      %v1460 = vsub.f32 %v1065, %v1459
      %v1461 = vand.u32 %v1460, 4294901760
      %1462 = vmatmul.f32.gmra.mxu0 %v1461
      %v1463 = vpop.f32.mrf.mxu0
      %v1464 = vadd.f32 %v1368, %v1463
      %v1465 = vand.u32 %v1068, 4294901760
      %v1466 = vsub.f32 %v1068, %v1465
      %v1467 = vand.u32 %v1466, 4294901760
      %1468 = vmatmul.f32.gmra.mxu0 %v1467
      %v1469 = vpop.f32.mrf.mxu0
      %v1470 = vadd.f32 %v1373, %v1469
      %v1471 = vand.u32 %v1071, 4294901760
      %v1472 = vsub.f32 %v1071, %v1471
      %v1473 = vand.u32 %v1472, 4294901760
      %1474 = vmatmul.f32.gmra.mxu0 %v1473
      %v1475 = vpop.f32.mrf.mxu0
      %v1476 = vadd.f32 %v1378, %v1475
      %v1477 = vand.u32 %v1074, 4294901760
      %v1478 = vsub.f32 %v1074, %v1477
      %v1479 = vand.u32 %v1478, 4294901760
      %1480 = vmatmul.f32.gmra.mxu0 %v1479
      %v1481 = vpop.f32.mrf.mxu0
      %v1482 = vadd.f32 %v1383, %v1481
      %v1483 = vand.u32 %v1077, 4294901760
      %v1484 = vsub.f32 %v1077, %v1483
      %v1485 = vand.u32 %v1484, 4294901760
      %1486 = vmatmul.f32.gmra.mxu0 %v1485
      %v1487 = vpop.f32.mrf.mxu0
      %v1488 = vadd.f32 %v1388, %v1487
      %v1489 = vand.u32 %v1080, 4294901760
      %v1490 = vsub.f32 %v1080, %v1489
      %v1491 = vand.u32 %v1490, 4294901760
      %1492 = vmatmul.f32.gmra.mxu0 %v1491
      %v1493 = vpop.f32.mrf.mxu0
      %v1494 = vadd.f32 %v1393, %v1493
      %v1495 = vand.u32 %v1083, 4294901760
      %v1496 = vsub.f32 %v1083, %v1495
      %v1497 = vand.u32 %v1496, 4294901760
      %1498 = vmatmul.f32.gmra.mxu0 %v1497
      %v1499 = vpop.f32.mrf.mxu0
      %v1500 = vadd.f32 %v1398, %v1499
      %v1501 = vand.u32 %v1086, 4294901760
      %v1502 = vsub.f32 %v1086, %v1501
      %v1503 = vand.u32 %v1502, 4294901760
      %1504 = vmatmul.f32.gmra.mxu0 %v1503
      %v1505 = vpop.f32.mrf.mxu0
      %v1506 = vadd.f32 %v1403, %v1505
      %v1507 = vand.u32 %v1089, 4294901760
      %v1508 = vsub.f32 %v1089, %v1507
      %v1509 = vand.u32 %v1508, 4294901760
      %1510 = vmatmul.f32.gmra.mxu0 %v1509
      %v1511 = vpop.f32.mrf.mxu0
      %v1512 = vadd.f32 %v1408, %v1511
      %v1513 = vand.u32 %v1092, 4294901760
      %v1514 = vsub.f32 %v1092, %v1513
      %v1515 = vand.u32 %v1514, 4294901760
      %1516 = vmatmul.f32.gmra.mxu0 %v1515
      %v1517 = vpop.f32.mrf.mxu0
      %v1518 = vadd.f32 %v1413, %v1517
      %1519 = vdwg.mxu0
      %1520 = vmatpush.msra.mxu0 0.0
      %1521 = vmatpush.msra.mxu0 0.0
      %1522 = vmatpush.msra.mxu0 0.0
      %1523 = vmatpush.msra.mxu0 0.0
      %1524 = vmatpush.msra.mxu0 0.0
      %1525 = vmatpush.msra.mxu0 0.0
      %1526 = vmatpush.msra.mxu0 0.0
      %1527 = vmatpush.msra.mxu0 0.0
      %1528 = vmatpush.msra.mxu0 0.0
      %1529 = vmatpush.msra.mxu0 0.0
      %1530 = vmatpush.msra.mxu0 0.0
      %1531 = vmatpush.msra.mxu0 0.0
      %v1532 = vand.u32 %v1046, 4294901760
      %v1533 = vsub.f32 %v1046, %v1532
      %v1534 = vand.u32 %v1533, 4294901760
      %1535 = vmatpush.msra.mxu0 %v1534
      %v1536 = vand.u32 %v1045, 4294901760
      %v1537 = vsub.f32 %v1045, %v1536
      %v1538 = vand.u32 %v1537, 4294901760
      %1539 = vmatpush.msra.mxu0 %v1538
      %v1540 = vand.u32 %v1044, 4294901760
      %v1541 = vsub.f32 %v1044, %v1540
      %v1542 = vand.u32 %v1541, 4294901760
      %1543 = vmatpush.msra.mxu0 %v1542
      %v1544 = vand.u32 %v1043, 4294901760
      %v1545 = vsub.f32 %v1043, %v1544
      %v1546 = vand.u32 %v1545, 4294901760
      %1547 = vmatpush.msra.mxu0 %v1546
      %v1548 = vand.u32 %v1053, 4294901760
      %1549 = vmatmul.f32.gmra.mxu0 %v1548
      %v1550 = vpop.f32.mrf.mxu0
      %v1551 = vadd.f32 %v1440, %v1550
      %v1552 = vand.u32 %v1056, 4294901760
      %1553 = vmatmul.f32.gmra.mxu0 %v1552
      %v1554 = vpop.f32.mrf.mxu0
      %v1555 = vadd.f32 %v1446, %v1554
      %v1556 = vand.u32 %v1059, 4294901760
      %1557 = vmatmul.f32.gmra.mxu0 %v1556
      %v1558 = vpop.f32.mrf.mxu0
      %v1559 = vadd.f32 %v1452, %v1558
      %v1560 = vand.u32 %v1062, 4294901760
      %1561 = vmatmul.f32.gmra.mxu0 %v1560
      %v1562 = vpop.f32.mrf.mxu0
      %v1563 = vadd.f32 %v1458, %v1562
      %v1564 = vand.u32 %v1065, 4294901760
      %1565 = vmatmul.f32.gmra.mxu0 %v1564
      %v1566 = vpop.f32.mrf.mxu0
      %v1567 = vadd.f32 %v1464, %v1566
      %v1568 = vand.u32 %v1068, 4294901760
      %1569 = vmatmul.f32.gmra.mxu0 %v1568
      %v1570 = vpop.f32.mrf.mxu0
      %v1571 = vadd.f32 %v1470, %v1570
      %v1572 = vand.u32 %v1071, 4294901760
      %1573 = vmatmul.f32.gmra.mxu0 %v1572
      %v1574 = vpop.f32.mrf.mxu0
      %v1575 = vadd.f32 %v1476, %v1574
      %v1576 = vand.u32 %v1074, 4294901760
      %1577 = vmatmul.f32.gmra.mxu0 %v1576
      %v1578 = vpop.f32.mrf.mxu0
      %v1579 = vadd.f32 %v1482, %v1578
      %v1580 = vand.u32 %v1077, 4294901760
      %1581 = vmatmul.f32.gmra.mxu0 %v1580
      %v1582 = vpop.f32.mrf.mxu0
      %v1583 = vadd.f32 %v1488, %v1582
      %v1584 = vand.u32 %v1080, 4294901760
      %1585 = vmatmul.f32.gmra.mxu0 %v1584
      %v1586 = vpop.f32.mrf.mxu0
      %v1587 = vadd.f32 %v1494, %v1586
      %v1588 = vand.u32 %v1083, 4294901760
      %1589 = vmatmul.f32.gmra.mxu0 %v1588
      %v1590 = vpop.f32.mrf.mxu0
      %v1591 = vadd.f32 %v1500, %v1590
      %v1592 = vand.u32 %v1086, 4294901760
      %1593 = vmatmul.f32.gmra.mxu0 %v1592
      %v1594 = vpop.f32.mrf.mxu0
      %v1595 = vadd.f32 %v1506, %v1594
      %v1596 = vand.u32 %v1089, 4294901760
      %1597 = vmatmul.f32.gmra.mxu0 %v1596
      %v1598 = vpop.f32.mrf.mxu0
      %v1599 = vadd.f32 %v1512, %v1598
      %v1600 = vand.u32 %v1092, 4294901760
      %1601 = vmatmul.f32.gmra.mxu0 %v1600
      %v1602 = vpop.f32.mrf.mxu0
      %v1603 = vadd.f32 %v1518, %v1602
      %1604 = vdwg.mxu0
      %1605 = vmatpush.msra.mxu0 0.0
      %1606 = vmatpush.msra.mxu0 0.0
      %1607 = vmatpush.msra.mxu0 0.0
      %1608 = vmatpush.msra.mxu0 0.0
      %1609 = vmatpush.msra.mxu0 0.0
      %1610 = vmatpush.msra.mxu0 0.0
      %1611 = vmatpush.msra.mxu0 0.0
      %1612 = vmatpush.msra.mxu0 0.0
      %1613 = vmatpush.msra.mxu0 0.0
      %1614 = vmatpush.msra.mxu0 0.0
      %1615 = vmatpush.msra.mxu0 0.0
      %1616 = vmatpush.msra.mxu0 0.0
      %v1617 = vand.u32 %v1046, 4294901760
      %1618 = vmatpush.msra.mxu0 %v1617
      %v1619 = vand.u32 %v1045, 4294901760
      %1620 = vmatpush.msra.mxu0 %v1619
      %v1621 = vand.u32 %v1044, 4294901760
      %1622 = vmatpush.msra.mxu0 %v1621
      %v1623 = vand.u32 %v1043, 4294901760
      %1624 = vmatpush.msra.mxu0 %v1623
      %v1625 = vand.u32 %v1053, 4294901760
      %1626 = vmatmul.f32.gmra.mxu0 %v1625
      %v1627 = vpop.f32.mrf.mxu0
      %v1628 = vadd.f32 %v1551, %v1627
      %v1629 = vand.u32 %v1056, 4294901760
      %1630 = vmatmul.f32.gmra.mxu0 %v1629
      %v1631 = vpop.f32.mrf.mxu0
      %v1632 = vadd.f32 %v1555, %v1631
      %v1633 = vand.u32 %v1059, 4294901760
      %1634 = vmatmul.f32.gmra.mxu0 %v1633
      %v1635 = vpop.f32.mrf.mxu0
      %v1636 = vadd.f32 %v1559, %v1635
      %v1637 = vand.u32 %v1062, 4294901760
      %1638 = vmatmul.f32.gmra.mxu0 %v1637
      %v1639 = vpop.f32.mrf.mxu0
      %v1640 = vadd.f32 %v1563, %v1639
      %v1641 = vand.u32 %v1065, 4294901760
      %1642 = vmatmul.f32.gmra.mxu0 %v1641
      %v1643 = vpop.f32.mrf.mxu0
      %v1644 = vadd.f32 %v1567, %v1643
      %v1645 = vand.u32 %v1068, 4294901760
      %1646 = vmatmul.f32.gmra.mxu0 %v1645
      %v1647 = vpop.f32.mrf.mxu0
      %v1648 = vadd.f32 %v1571, %v1647
      %v1649 = vand.u32 %v1071, 4294901760
      %1650 = vmatmul.f32.gmra.mxu0 %v1649
      %v1651 = vpop.f32.mrf.mxu0
      %v1652 = vadd.f32 %v1575, %v1651
      %v1653 = vand.u32 %v1074, 4294901760
      %1654 = vmatmul.f32.gmra.mxu0 %v1653
      %v1655 = vpop.f32.mrf.mxu0
      %v1656 = vadd.f32 %v1579, %v1655
      %v1657 = vand.u32 %v1077, 4294901760
      %1658 = vmatmul.f32.gmra.mxu0 %v1657
      %v1659 = vpop.f32.mrf.mxu0
      %v1660 = vadd.f32 %v1583, %v1659
      %v1661 = vand.u32 %v1080, 4294901760
      %1662 = vmatmul.f32.gmra.mxu0 %v1661
      %v1663 = vpop.f32.mrf.mxu0
      %v1664 = vadd.f32 %v1587, %v1663
      %v1665 = vand.u32 %v1083, 4294901760
      %1666 = vmatmul.f32.gmra.mxu0 %v1665
      %v1667 = vpop.f32.mrf.mxu0
      %v1668 = vadd.f32 %v1591, %v1667
      %v1669 = vand.u32 %v1086, 4294901760
      %1670 = vmatmul.f32.gmra.mxu0 %v1669
      %v1671 = vpop.f32.mrf.mxu0
      %v1672 = vadd.f32 %v1595, %v1671
      %v1673 = vand.u32 %v1089, 4294901760
      %1674 = vmatmul.f32.gmra.mxu0 %v1673
      %v1675 = vpop.f32.mrf.mxu0
      %v1676 = vadd.f32 %v1599, %v1675
      %v1677 = vand.u32 %v1092, 4294901760
      %1678 = vmatmul.f32.gmra.mxu0 %v1677
      %v1679 = vpop.f32.mrf.mxu0
      %v1680 = vadd.f32 %v1603, %v1679
      %1681 = vdwg.mxu0
      %vm1682 = vcmask 64512
      %1683 = vst.msk [vmem:[%s402] sm:$0xff] %vm1682, %v1628
      %1684 = vst.msk [vmem:[%s402 + $0x8] sm:$0xff] %vm1682, %v1632
      %1685 = vst.msk [vmem:[%s402 + $0x10] sm:$0xff] %vm1682, %v1636
      %1686 = vst.msk [vmem:[%s402 + $0x18] sm:$0xff] %vm1682, %v1640
      %1687 = vst.msk [vmem:[%s402 + $0x20] sm:$0xff] %vm1682, %v1644
      %1688 = vst.msk [vmem:[%s402 + $0x28] sm:$0xff] %vm1682, %v1648
      %1689 = vst.msk [vmem:[%s402 + $0x30] sm:$0xff] %vm1682, %v1652
      %1690 = vst.msk [vmem:[%s402 + $0x38] sm:$0xff] %vm1682, %v1656
      %1691 = vst.msk [vmem:[%s402 + $0x40] sm:$0xff] %vm1682, %v1660
      %1692 = vst.msk [vmem:[%s402 + $0x48] sm:$0xff] %vm1682, %v1664
      %1693 = vst.msk [vmem:[%s402 + $0x50] sm:$0xff] %vm1682, %v1668
      %1694 = vst.msk [vmem:[%s402 + $0x58] sm:$0xff] %vm1682, %v1672
      %1695 = vst.msk [vmem:[%s402 + $0x60] sm:$0xff] %vm1682, %v1676
      %1696 = vst.msk [vmem:[%s402 + $0x68] sm:$0xff] %vm1682, %v1680
      %v1697 = vld [vmem:[%s5] sm:$0xff]
      %v1698 = vld [vmem:[%s6] sm:$0x1]
      %v1700 = vperm.slane %v1698, 0
      %v1703 = vsel %vm1682, %v1628, 0
      %v1706 = vsel %vm1682, %v1632, 0
      %v1709 = vsel %vm1682, %v1636, 0
      %v1712 = vsel %vm1682, %v1640, 0
      %v1715 = vsel %vm1682, %v1644, 0
      %v1718 = vsel %vm1682, %v1648, 0
      %v1721 = vsel %vm1682, %v1652, 0
      %v1724 = vsel %vm1682, %v1656, 0
      %v1727 = vsel %vm1682, %v1660, 0
      %v1730 = vsel %vm1682, %v1664, 0
      %v1733 = vsel %vm1682, %v1668, 0
      %v1736 = vsel %vm1682, %v1672, 0
      %v1739 = vsel %vm1682, %v1676, 0
      %v1742 = vsel %vm1682, %v1680, 0
      %1744 = vmatpush.msra.mxu0 0.0
      %1745 = vmatpush.msra.mxu0 0.0
      %1746 = vmatpush.msra.mxu0 0.0
      %1747 = vmatpush.msra.mxu0 0.0
      %1748 = vmatpush.msra.mxu0 0.0
      %1749 = vmatpush.msra.mxu0 0.0
      %1750 = vmatpush.msra.mxu0 0.0
      %1751 = vmatpush.msra.mxu0 0.0
      %1752 = vmatpush.msra.mxu0 0.0
      %1753 = vmatpush.msra.mxu0 0.0
      %1754 = vmatpush.msra.mxu0 0.0
      %1755 = vmatpush.msra.mxu0 0.0
      %1756 = vmatpush.msra.mxu0 0.0
      %1757 = vmatpush.msra.mxu0 0.0
      %1758 = vmatpush.msra.mxu0 0.0
      %v1759 = vand.u32 %v1697, 4294901760
      %1760 = vmatpush.msra.mxu0 %v1759
      %v1761 = vand.u32 %v1703, 4294901760
      %v1762 = vsub.f32 %v1703, %v1761
      %v1763 = vand.u32 %v1762, 4294901760
      %v1764 = vsub.f32 %v1762, %v1763
      %v1765 = vand.u32 %v1764, 4294901760
      %1766 = vmatmul.f32.gmra.mxu0 %v1765
      %v1767 = vpop.f32.mrf.mxu0
      %v1768 = vadd.f32 %v1700, %v1767
      %v1769 = vand.u32 %v1706, 4294901760
      %v1770 = vsub.f32 %v1706, %v1769
      %v1771 = vand.u32 %v1770, 4294901760
      %v1772 = vsub.f32 %v1770, %v1771
      %v1773 = vand.u32 %v1772, 4294901760
      %1774 = vmatmul.f32.gmra.mxu0 %v1773
      %v1775 = vpop.f32.mrf.mxu0
      %v1776 = vadd.f32 %v1700, %v1775
      %v1777 = vand.u32 %v1709, 4294901760
      %v1778 = vsub.f32 %v1709, %v1777
      %v1779 = vand.u32 %v1778, 4294901760
      %v1780 = vsub.f32 %v1778, %v1779
      %v1781 = vand.u32 %v1780, 4294901760
      %1782 = vmatmul.f32.gmra.mxu0 %v1781
      %v1783 = vpop.f32.mrf.mxu0
      %v1784 = vadd.f32 %v1700, %v1783
      %v1785 = vand.u32 %v1712, 4294901760
      %v1786 = vsub.f32 %v1712, %v1785
      %v1787 = vand.u32 %v1786, 4294901760
      %v1788 = vsub.f32 %v1786, %v1787
      %v1789 = vand.u32 %v1788, 4294901760
      %1790 = vmatmul.f32.gmra.mxu0 %v1789
      %v1791 = vpop.f32.mrf.mxu0
      %v1792 = vadd.f32 %v1700, %v1791
      %v1793 = vand.u32 %v1715, 4294901760
      %v1794 = vsub.f32 %v1715, %v1793
      %v1795 = vand.u32 %v1794, 4294901760
      %v1796 = vsub.f32 %v1794, %v1795
      %v1797 = vand.u32 %v1796, 4294901760
      %1798 = vmatmul.f32.gmra.mxu0 %v1797
      %v1799 = vpop.f32.mrf.mxu0
      %v1800 = vadd.f32 %v1700, %v1799
      %v1801 = vand.u32 %v1718, 4294901760
      %v1802 = vsub.f32 %v1718, %v1801
      %v1803 = vand.u32 %v1802, 4294901760
      %v1804 = vsub.f32 %v1802, %v1803
      %v1805 = vand.u32 %v1804, 4294901760
      %1806 = vmatmul.f32.gmra.mxu0 %v1805
      %v1807 = vpop.f32.mrf.mxu0
      %v1808 = vadd.f32 %v1700, %v1807
      %v1809 = vand.u32 %v1721, 4294901760
      %v1810 = vsub.f32 %v1721, %v1809
      %v1811 = vand.u32 %v1810, 4294901760
      %v1812 = vsub.f32 %v1810, %v1811
      %v1813 = vand.u32 %v1812, 4294901760
      %1814 = vmatmul.f32.gmra.mxu0 %v1813
      %v1815 = vpop.f32.mrf.mxu0
      %v1816 = vadd.f32 %v1700, %v1815
      %v1817 = vand.u32 %v1724, 4294901760
      %v1818 = vsub.f32 %v1724, %v1817
      %v1819 = vand.u32 %v1818, 4294901760
      %v1820 = vsub.f32 %v1818, %v1819
      %v1821 = vand.u32 %v1820, 4294901760
      %1822 = vmatmul.f32.gmra.mxu0 %v1821
      %v1823 = vpop.f32.mrf.mxu0
      %v1824 = vadd.f32 %v1700, %v1823
      %v1825 = vand.u32 %v1727, 4294901760
      %v1826 = vsub.f32 %v1727, %v1825
      %v1827 = vand.u32 %v1826, 4294901760
      %v1828 = vsub.f32 %v1826, %v1827
      %v1829 = vand.u32 %v1828, 4294901760
      %1830 = vmatmul.f32.gmra.mxu0 %v1829
      %v1831 = vpop.f32.mrf.mxu0
      %v1832 = vadd.f32 %v1700, %v1831
      %v1833 = vand.u32 %v1730, 4294901760
      %v1834 = vsub.f32 %v1730, %v1833
      %v1835 = vand.u32 %v1834, 4294901760
      %v1836 = vsub.f32 %v1834, %v1835
      %v1837 = vand.u32 %v1836, 4294901760
      %1838 = vmatmul.f32.gmra.mxu0 %v1837
      %v1839 = vpop.f32.mrf.mxu0
      %v1840 = vadd.f32 %v1700, %v1839
      %v1841 = vand.u32 %v1733, 4294901760
      %v1842 = vsub.f32 %v1733, %v1841
      %v1843 = vand.u32 %v1842, 4294901760
      %v1844 = vsub.f32 %v1842, %v1843
      %v1845 = vand.u32 %v1844, 4294901760
      %1846 = vmatmul.f32.gmra.mxu0 %v1845
      %v1847 = vpop.f32.mrf.mxu0
      %v1848 = vadd.f32 %v1700, %v1847
      %v1849 = vand.u32 %v1736, 4294901760
      %v1850 = vsub.f32 %v1736, %v1849
      %v1851 = vand.u32 %v1850, 4294901760
      %v1852 = vsub.f32 %v1850, %v1851
      %v1853 = vand.u32 %v1852, 4294901760
      %1854 = vmatmul.f32.gmra.mxu0 %v1853
      %v1855 = vpop.f32.mrf.mxu0
      %v1856 = vadd.f32 %v1700, %v1855
      %v1857 = vand.u32 %v1739, 4294901760
      %v1858 = vsub.f32 %v1739, %v1857
      %v1859 = vand.u32 %v1858, 4294901760
      %v1860 = vsub.f32 %v1858, %v1859
      %v1861 = vand.u32 %v1860, 4294901760
      %1862 = vmatmul.f32.gmra.mxu0 %v1861
      %v1863 = vpop.f32.mrf.mxu0
      %v1864 = vadd.f32 %v1700, %v1863
      %v1865 = vand.u32 %v1742, 4294901760
      %v1866 = vsub.f32 %v1742, %v1865
      %v1867 = vand.u32 %v1866, 4294901760
      %v1868 = vsub.f32 %v1866, %v1867
      %v1869 = vand.u32 %v1868, 4294901760
      %1870 = vmatmul.f32.gmra.mxu0 %v1869
      %v1871 = vpop.f32.mrf.mxu0
      %v1872 = vadd.f32 %v1700, %v1871
      %1873 = vdwg.mxu0
      %1874 = vmatpush.msra.mxu0 0.0
      %1875 = vmatpush.msra.mxu0 0.0
      %1876 = vmatpush.msra.mxu0 0.0
      %1877 = vmatpush.msra.mxu0 0.0
      %1878 = vmatpush.msra.mxu0 0.0
      %1879 = vmatpush.msra.mxu0 0.0
      %1880 = vmatpush.msra.mxu0 0.0
      %1881 = vmatpush.msra.mxu0 0.0
      %1882 = vmatpush.msra.mxu0 0.0
      %1883 = vmatpush.msra.mxu0 0.0
      %1884 = vmatpush.msra.mxu0 0.0
      %1885 = vmatpush.msra.mxu0 0.0
      %1886 = vmatpush.msra.mxu0 0.0
      %1887 = vmatpush.msra.mxu0 0.0
      %1888 = vmatpush.msra.mxu0 0.0
      %v1889 = vand.u32 %v1697, 4294901760
      %v1890 = vsub.f32 %v1697, %v1889
      %v1891 = vand.u32 %v1890, 4294901760
      %v1892 = vsub.f32 %v1890, %v1891
      %v1893 = vand.u32 %v1892, 4294901760
      %1894 = vmatpush.msra.mxu0 %v1893
      %v1895 = vand.u32 %v1703, 4294901760
      %1896 = vmatmul.f32.gmra.mxu0 %v1895
      %v1897 = vpop.f32.mrf.mxu0
      %v1898 = vadd.f32 %v1768, %v1897
      %v1899 = vand.u32 %v1706, 4294901760
      %1900 = vmatmul.f32.gmra.mxu0 %v1899
      %v1901 = vpop.f32.mrf.mxu0
      %v1902 = vadd.f32 %v1776, %v1901
      %v1903 = vand.u32 %v1709, 4294901760
      %1904 = vmatmul.f32.gmra.mxu0 %v1903
      %v1905 = vpop.f32.mrf.mxu0
      %v1906 = vadd.f32 %v1784, %v1905
      %v1907 = vand.u32 %v1712, 4294901760
      %1908 = vmatmul.f32.gmra.mxu0 %v1907
      %v1909 = vpop.f32.mrf.mxu0
      %v1910 = vadd.f32 %v1792, %v1909
      %v1911 = vand.u32 %v1715, 4294901760
      %1912 = vmatmul.f32.gmra.mxu0 %v1911
      %v1913 = vpop.f32.mrf.mxu0
      %v1914 = vadd.f32 %v1800, %v1913
      %v1915 = vand.u32 %v1718, 4294901760
      %1916 = vmatmul.f32.gmra.mxu0 %v1915
      %v1917 = vpop.f32.mrf.mxu0
      %v1918 = vadd.f32 %v1808, %v1917
      %v1919 = vand.u32 %v1721, 4294901760
      %1920 = vmatmul.f32.gmra.mxu0 %v1919
      %v1921 = vpop.f32.mrf.mxu0
      %v1922 = vadd.f32 %v1816, %v1921
      %v1923 = vand.u32 %v1724, 4294901760
      %1924 = vmatmul.f32.gmra.mxu0 %v1923
      %v1925 = vpop.f32.mrf.mxu0
      %v1926 = vadd.f32 %v1824, %v1925
      %v1927 = vand.u32 %v1727, 4294901760
      %1928 = vmatmul.f32.gmra.mxu0 %v1927
      %v1929 = vpop.f32.mrf.mxu0
      %v1930 = vadd.f32 %v1832, %v1929
      %v1931 = vand.u32 %v1730, 4294901760
      %1932 = vmatmul.f32.gmra.mxu0 %v1931
      %v1933 = vpop.f32.mrf.mxu0
      %v1934 = vadd.f32 %v1840, %v1933
      %v1935 = vand.u32 %v1733, 4294901760
      %1936 = vmatmul.f32.gmra.mxu0 %v1935
      %v1937 = vpop.f32.mrf.mxu0
      %v1938 = vadd.f32 %v1848, %v1937
      %v1939 = vand.u32 %v1736, 4294901760
      %1940 = vmatmul.f32.gmra.mxu0 %v1939
      %v1941 = vpop.f32.mrf.mxu0
      %v1942 = vadd.f32 %v1856, %v1941
      %v1943 = vand.u32 %v1739, 4294901760
      %1944 = vmatmul.f32.gmra.mxu0 %v1943
      %v1945 = vpop.f32.mrf.mxu0
      %v1946 = vadd.f32 %v1864, %v1945
      %v1947 = vand.u32 %v1742, 4294901760
      %1948 = vmatmul.f32.gmra.mxu0 %v1947
      %v1949 = vpop.f32.mrf.mxu0
      %v1950 = vadd.f32 %v1872, %v1949
      %1951 = vdwg.mxu0
      %1952 = vmatpush.msra.mxu0 0.0
      %1953 = vmatpush.msra.mxu0 0.0
      %1954 = vmatpush.msra.mxu0 0.0
      %1955 = vmatpush.msra.mxu0 0.0
      %1956 = vmatpush.msra.mxu0 0.0
      %1957 = vmatpush.msra.mxu0 0.0
      %1958 = vmatpush.msra.mxu0 0.0
      %1959 = vmatpush.msra.mxu0 0.0
      %1960 = vmatpush.msra.mxu0 0.0
      %1961 = vmatpush.msra.mxu0 0.0
      %1962 = vmatpush.msra.mxu0 0.0
      %1963 = vmatpush.msra.mxu0 0.0
      %1964 = vmatpush.msra.mxu0 0.0
      %1965 = vmatpush.msra.mxu0 0.0
      %1966 = vmatpush.msra.mxu0 0.0
      %v1967 = vand.u32 %v1697, 4294901760
      %v1968 = vsub.f32 %v1697, %v1967
      %1969 = vmatpush.msra.mxu0 %v1968
      %v1970 = vand.u32 %v1703, 4294901760
      %v1971 = vsub.f32 %v1703, %v1970
      %1972 = vmatmul.f32.gmra.mxu0 %v1971
      %v1973 = vpop.f32.mrf.mxu0
      %v1974 = vadd.f32 %v1898, %v1973
      %v1975 = vand.u32 %v1706, 4294901760
      %v1976 = vsub.f32 %v1706, %v1975
      %1977 = vmatmul.f32.gmra.mxu0 %v1976
      %v1978 = vpop.f32.mrf.mxu0
      %v1979 = vadd.f32 %v1902, %v1978
      %v1980 = vand.u32 %v1709, 4294901760
      %v1981 = vsub.f32 %v1709, %v1980
      %1982 = vmatmul.f32.gmra.mxu0 %v1981
      %v1983 = vpop.f32.mrf.mxu0
      %v1984 = vadd.f32 %v1906, %v1983
      %v1985 = vand.u32 %v1712, 4294901760
      %v1986 = vsub.f32 %v1712, %v1985
      %1987 = vmatmul.f32.gmra.mxu0 %v1986
      %v1988 = vpop.f32.mrf.mxu0
      %v1989 = vadd.f32 %v1910, %v1988
      %v1990 = vand.u32 %v1715, 4294901760
      %v1991 = vsub.f32 %v1715, %v1990
      %1992 = vmatmul.f32.gmra.mxu0 %v1991
      %v1993 = vpop.f32.mrf.mxu0
      %v1994 = vadd.f32 %v1914, %v1993
      %v1995 = vand.u32 %v1718, 4294901760
      %v1996 = vsub.f32 %v1718, %v1995
      %1997 = vmatmul.f32.gmra.mxu0 %v1996
      %v1998 = vpop.f32.mrf.mxu0
      %v1999 = vadd.f32 %v1918, %v1998
      %v2000 = vand.u32 %v1721, 4294901760
      %v2001 = vsub.f32 %v1721, %v2000
      %2002 = vmatmul.f32.gmra.mxu0 %v2001
      %v2003 = vpop.f32.mrf.mxu0
      %v2004 = vadd.f32 %v1922, %v2003
      %v2005 = vand.u32 %v1724, 4294901760
      %v2006 = vsub.f32 %v1724, %v2005
      %2007 = vmatmul.f32.gmra.mxu0 %v2006
      %v2008 = vpop.f32.mrf.mxu0
      %v2009 = vadd.f32 %v1926, %v2008
      %v2010 = vand.u32 %v1727, 4294901760
      %v2011 = vsub.f32 %v1727, %v2010
      %2012 = vmatmul.f32.gmra.mxu0 %v2011
      %v2013 = vpop.f32.mrf.mxu0
      %v2014 = vadd.f32 %v1930, %v2013
      %v2015 = vand.u32 %v1730, 4294901760
      %v2016 = vsub.f32 %v1730, %v2015
      %2017 = vmatmul.f32.gmra.mxu0 %v2016
      %v2018 = vpop.f32.mrf.mxu0
      %v2019 = vadd.f32 %v1934, %v2018
      %v2020 = vand.u32 %v1733, 4294901760
      %v2021 = vsub.f32 %v1733, %v2020
      %2022 = vmatmul.f32.gmra.mxu0 %v2021
      %v2023 = vpop.f32.mrf.mxu0
      %v2024 = vadd.f32 %v1938, %v2023
      %v2025 = vand.u32 %v1736, 4294901760
      %v2026 = vsub.f32 %v1736, %v2025
      %2027 = vmatmul.f32.gmra.mxu0 %v2026
      %v2028 = vpop.f32.mrf.mxu0
      %v2029 = vadd.f32 %v1942, %v2028
      %v2030 = vand.u32 %v1739, 4294901760
      %v2031 = vsub.f32 %v1739, %v2030
      %2032 = vmatmul.f32.gmra.mxu0 %v2031
      %v2033 = vpop.f32.mrf.mxu0
      %v2034 = vadd.f32 %v1946, %v2033
      %v2035 = vand.u32 %v1742, 4294901760
      %v2036 = vsub.f32 %v1742, %v2035
      %2037 = vmatmul.f32.gmra.mxu0 %v2036
      %v2038 = vpop.f32.mrf.mxu0
      %v2039 = vadd.f32 %v1950, %v2038
      %2040 = vdwg.mxu0
      %2041 = vmatpush.msra.mxu0 0.0
      %2042 = vmatpush.msra.mxu0 0.0
      %2043 = vmatpush.msra.mxu0 0.0
      %2044 = vmatpush.msra.mxu0 0.0
      %2045 = vmatpush.msra.mxu0 0.0
      %2046 = vmatpush.msra.mxu0 0.0
      %2047 = vmatpush.msra.mxu0 0.0
      %2048 = vmatpush.msra.mxu0 0.0
      %2049 = vmatpush.msra.mxu0 0.0
      %2050 = vmatpush.msra.mxu0 0.0
      %2051 = vmatpush.msra.mxu0 0.0
      %2052 = vmatpush.msra.mxu0 0.0
      %2053 = vmatpush.msra.mxu0 0.0
      %2054 = vmatpush.msra.mxu0 0.0
      %2055 = vmatpush.msra.mxu0 0.0
      %v2056 = vand.u32 %v1697, 4294901760
      %2057 = vmatpush.msra.mxu0 %v2056
      %v2058 = vand.u32 %v1703, 4294901760
      %v2059 = vsub.f32 %v1703, %v2058
      %v2060 = vand.u32 %v2059, 4294901760
      %2061 = vmatmul.f32.gmra.mxu0 %v2060
      %v2062 = vpop.f32.mrf.mxu0
      %v2063 = vadd.f32 %v1974, %v2062
      %v2064 = vand.u32 %v1706, 4294901760
      %v2065 = vsub.f32 %v1706, %v2064
      %v2066 = vand.u32 %v2065, 4294901760
      %2067 = vmatmul.f32.gmra.mxu0 %v2066
      %v2068 = vpop.f32.mrf.mxu0
      %v2069 = vadd.f32 %v1979, %v2068
      %v2070 = vand.u32 %v1709, 4294901760
      %v2071 = vsub.f32 %v1709, %v2070
      %v2072 = vand.u32 %v2071, 4294901760
      %2073 = vmatmul.f32.gmra.mxu0 %v2072
      %v2074 = vpop.f32.mrf.mxu0
      %v2075 = vadd.f32 %v1984, %v2074
      %v2076 = vand.u32 %v1712, 4294901760
      %v2077 = vsub.f32 %v1712, %v2076
      %v2078 = vand.u32 %v2077, 4294901760
      %2079 = vmatmul.f32.gmra.mxu0 %v2078
      %v2080 = vpop.f32.mrf.mxu0
      %v2081 = vadd.f32 %v1989, %v2080
      %v2082 = vand.u32 %v1715, 4294901760
      %v2083 = vsub.f32 %v1715, %v2082
      %v2084 = vand.u32 %v2083, 4294901760
      %2085 = vmatmul.f32.gmra.mxu0 %v2084
      %v2086 = vpop.f32.mrf.mxu0
      %v2087 = vadd.f32 %v1994, %v2086
      %v2088 = vand.u32 %v1718, 4294901760
      %v2089 = vsub.f32 %v1718, %v2088
      %v2090 = vand.u32 %v2089, 4294901760
      %2091 = vmatmul.f32.gmra.mxu0 %v2090
      %v2092 = vpop.f32.mrf.mxu0
      %v2093 = vadd.f32 %v1999, %v2092
      %v2094 = vand.u32 %v1721, 4294901760
      %v2095 = vsub.f32 %v1721, %v2094
      %v2096 = vand.u32 %v2095, 4294901760
      %2097 = vmatmul.f32.gmra.mxu0 %v2096
      %v2098 = vpop.f32.mrf.mxu0
      %v2099 = vadd.f32 %v2004, %v2098
      %v2100 = vand.u32 %v1724, 4294901760
      %v2101 = vsub.f32 %v1724, %v2100
      %v2102 = vand.u32 %v2101, 4294901760
      %2103 = vmatmul.f32.gmra.mxu0 %v2102
      %v2104 = vpop.f32.mrf.mxu0
      %v2105 = vadd.f32 %v2009, %v2104
      %v2106 = vand.u32 %v1727, 4294901760
      %v2107 = vsub.f32 %v1727, %v2106
      %v2108 = vand.u32 %v2107, 4294901760
      %2109 = vmatmul.f32.gmra.mxu0 %v2108
      %v2110 = vpop.f32.mrf.mxu0
      %v2111 = vadd.f32 %v2014, %v2110
      %v2112 = vand.u32 %v1730, 4294901760
      %v2113 = vsub.f32 %v1730, %v2112
      %v2114 = vand.u32 %v2113, 4294901760
      %2115 = vmatmul.f32.gmra.mxu0 %v2114
      %v2116 = vpop.f32.mrf.mxu0
      %v2117 = vadd.f32 %v2019, %v2116
      %v2118 = vand.u32 %v1733, 4294901760
      %v2119 = vsub.f32 %v1733, %v2118
      %v2120 = vand.u32 %v2119, 4294901760
      %2121 = vmatmul.f32.gmra.mxu0 %v2120
      %v2122 = vpop.f32.mrf.mxu0
      %v2123 = vadd.f32 %v2024, %v2122
      %v2124 = vand.u32 %v1736, 4294901760
      %v2125 = vsub.f32 %v1736, %v2124
      %v2126 = vand.u32 %v2125, 4294901760
      %2127 = vmatmul.f32.gmra.mxu0 %v2126
      %v2128 = vpop.f32.mrf.mxu0
      %v2129 = vadd.f32 %v2029, %v2128
      %v2130 = vand.u32 %v1739, 4294901760
      %v2131 = vsub.f32 %v1739, %v2130
      %v2132 = vand.u32 %v2131, 4294901760
      %2133 = vmatmul.f32.gmra.mxu0 %v2132
      %v2134 = vpop.f32.mrf.mxu0
      %v2135 = vadd.f32 %v2034, %v2134
      %v2136 = vand.u32 %v1742, 4294901760
      %v2137 = vsub.f32 %v1742, %v2136
      %v2138 = vand.u32 %v2137, 4294901760
      %2139 = vmatmul.f32.gmra.mxu0 %v2138
      %v2140 = vpop.f32.mrf.mxu0
      %v2141 = vadd.f32 %v2039, %v2140
      %2142 = vdwg.mxu0
      %2143 = vmatpush.msra.mxu0 0.0
      %2144 = vmatpush.msra.mxu0 0.0
      %2145 = vmatpush.msra.mxu0 0.0
      %2146 = vmatpush.msra.mxu0 0.0
      %2147 = vmatpush.msra.mxu0 0.0
      %2148 = vmatpush.msra.mxu0 0.0
      %2149 = vmatpush.msra.mxu0 0.0
      %2150 = vmatpush.msra.mxu0 0.0
      %2151 = vmatpush.msra.mxu0 0.0
      %2152 = vmatpush.msra.mxu0 0.0
      %2153 = vmatpush.msra.mxu0 0.0
      %2154 = vmatpush.msra.mxu0 0.0
      %2155 = vmatpush.msra.mxu0 0.0
      %2156 = vmatpush.msra.mxu0 0.0
      %2157 = vmatpush.msra.mxu0 0.0
      %v2158 = vand.u32 %v1697, 4294901760
      %v2159 = vsub.f32 %v1697, %v2158
      %v2160 = vand.u32 %v2159, 4294901760
      %2161 = vmatpush.msra.mxu0 %v2160
      %v2162 = vand.u32 %v1703, 4294901760
      %2163 = vmatmul.f32.gmra.mxu0 %v2162
      %v2164 = vpop.f32.mrf.mxu0
      %v2165 = vadd.f32 %v2063, %v2164
      %v2166 = vand.u32 %v1706, 4294901760
      %2167 = vmatmul.f32.gmra.mxu0 %v2166
      %v2168 = vpop.f32.mrf.mxu0
      %v2169 = vadd.f32 %v2069, %v2168
      %v2170 = vand.u32 %v1709, 4294901760
      %2171 = vmatmul.f32.gmra.mxu0 %v2170
      %v2172 = vpop.f32.mrf.mxu0
      %v2173 = vadd.f32 %v2075, %v2172
      %v2174 = vand.u32 %v1712, 4294901760
      %2175 = vmatmul.f32.gmra.mxu0 %v2174
      %v2176 = vpop.f32.mrf.mxu0
      %v2177 = vadd.f32 %v2081, %v2176
      %v2178 = vand.u32 %v1715, 4294901760
      %2179 = vmatmul.f32.gmra.mxu0 %v2178
      %v2180 = vpop.f32.mrf.mxu0
      %v2181 = vadd.f32 %v2087, %v2180
      %v2182 = vand.u32 %v1718, 4294901760
      %2183 = vmatmul.f32.gmra.mxu0 %v2182
      %v2184 = vpop.f32.mrf.mxu0
      %v2185 = vadd.f32 %v2093, %v2184
      %v2186 = vand.u32 %v1721, 4294901760
      %2187 = vmatmul.f32.gmra.mxu0 %v2186
      %v2188 = vpop.f32.mrf.mxu0
      %v2189 = vadd.f32 %v2099, %v2188
      %v2190 = vand.u32 %v1724, 4294901760
      %2191 = vmatmul.f32.gmra.mxu0 %v2190
      %v2192 = vpop.f32.mrf.mxu0
      %v2193 = vadd.f32 %v2105, %v2192
      %v2194 = vand.u32 %v1727, 4294901760
      %2195 = vmatmul.f32.gmra.mxu0 %v2194
      %v2196 = vpop.f32.mrf.mxu0
      %v2197 = vadd.f32 %v2111, %v2196
      %v2198 = vand.u32 %v1730, 4294901760
      %2199 = vmatmul.f32.gmra.mxu0 %v2198
      %v2200 = vpop.f32.mrf.mxu0
      %v2201 = vadd.f32 %v2117, %v2200
      %v2202 = vand.u32 %v1733, 4294901760
      %2203 = vmatmul.f32.gmra.mxu0 %v2202
      %v2204 = vpop.f32.mrf.mxu0
      %v2205 = vadd.f32 %v2123, %v2204
      %v2206 = vand.u32 %v1736, 4294901760
      %2207 = vmatmul.f32.gmra.mxu0 %v2206
      %v2208 = vpop.f32.mrf.mxu0
      %v2209 = vadd.f32 %v2129, %v2208
      %v2210 = vand.u32 %v1739, 4294901760
      %2211 = vmatmul.f32.gmra.mxu0 %v2210
      %v2212 = vpop.f32.mrf.mxu0
      %v2213 = vadd.f32 %v2135, %v2212
      %v2214 = vand.u32 %v1742, 4294901760
      %2215 = vmatmul.f32.gmra.mxu0 %v2214
      %v2216 = vpop.f32.mrf.mxu0
      %v2217 = vadd.f32 %v2141, %v2216
      %2218 = vdwg.mxu0
      %2219 = vmatpush.msra.mxu0 0.0
      %2220 = vmatpush.msra.mxu0 0.0
      %2221 = vmatpush.msra.mxu0 0.0
      %2222 = vmatpush.msra.mxu0 0.0
      %2223 = vmatpush.msra.mxu0 0.0
      %2224 = vmatpush.msra.mxu0 0.0
      %2225 = vmatpush.msra.mxu0 0.0
      %2226 = vmatpush.msra.mxu0 0.0
      %2227 = vmatpush.msra.mxu0 0.0
      %2228 = vmatpush.msra.mxu0 0.0
      %2229 = vmatpush.msra.mxu0 0.0
      %2230 = vmatpush.msra.mxu0 0.0
      %2231 = vmatpush.msra.mxu0 0.0
      %2232 = vmatpush.msra.mxu0 0.0
      %2233 = vmatpush.msra.mxu0 0.0
      %v2234 = vand.u32 %v1697, 4294901760
      %2235 = vmatpush.msra.mxu0 %v2234
      %v2236 = vand.u32 %v1703, 4294901760
      %2237 = vmatmul.f32.gmra.mxu0 %v2236
      %v2238 = vpop.f32.mrf.mxu0
      %v2239 = vadd.f32 %v2165, %v2238
      %v2240 = vand.u32 %v1706, 4294901760
      %2241 = vmatmul.f32.gmra.mxu0 %v2240
      %v2242 = vpop.f32.mrf.mxu0
      %v2243 = vadd.f32 %v2169, %v2242
      %v2244 = vand.u32 %v1709, 4294901760
      %2245 = vmatmul.f32.gmra.mxu0 %v2244
      %v2246 = vpop.f32.mrf.mxu0
      %v2247 = vadd.f32 %v2173, %v2246
      %v2248 = vand.u32 %v1712, 4294901760
      %2249 = vmatmul.f32.gmra.mxu0 %v2248
      %v2250 = vpop.f32.mrf.mxu0
      %v2251 = vadd.f32 %v2177, %v2250
      %v2252 = vand.u32 %v1715, 4294901760
      %2253 = vmatmul.f32.gmra.mxu0 %v2252
      %v2254 = vpop.f32.mrf.mxu0
      %v2255 = vadd.f32 %v2181, %v2254
      %v2256 = vand.u32 %v1718, 4294901760
      %2257 = vmatmul.f32.gmra.mxu0 %v2256
      %v2258 = vpop.f32.mrf.mxu0
      %v2259 = vadd.f32 %v2185, %v2258
      %v2260 = vand.u32 %v1721, 4294901760
      %2261 = vmatmul.f32.gmra.mxu0 %v2260
      %v2262 = vpop.f32.mrf.mxu0
      %v2263 = vadd.f32 %v2189, %v2262
      %v2264 = vand.u32 %v1724, 4294901760
      %2265 = vmatmul.f32.gmra.mxu0 %v2264
      %v2266 = vpop.f32.mrf.mxu0
      %v2267 = vadd.f32 %v2193, %v2266
      %v2268 = vand.u32 %v1727, 4294901760
      %2269 = vmatmul.f32.gmra.mxu0 %v2268
      %v2270 = vpop.f32.mrf.mxu0
      %v2271 = vadd.f32 %v2197, %v2270
      %v2272 = vand.u32 %v1730, 4294901760
      %2273 = vmatmul.f32.gmra.mxu0 %v2272
      %v2274 = vpop.f32.mrf.mxu0
      %v2275 = vadd.f32 %v2201, %v2274
      %v2276 = vand.u32 %v1733, 4294901760
      %2277 = vmatmul.f32.gmra.mxu0 %v2276
      %v2278 = vpop.f32.mrf.mxu0
      %v2279 = vadd.f32 %v2205, %v2278
      %v2280 = vand.u32 %v1736, 4294901760
      %2281 = vmatmul.f32.gmra.mxu0 %v2280
      %v2282 = vpop.f32.mrf.mxu0
      %v2283 = vadd.f32 %v2209, %v2282
      %v2284 = vand.u32 %v1739, 4294901760
      %2285 = vmatmul.f32.gmra.mxu0 %v2284
      %v2286 = vpop.f32.mrf.mxu0
      %v2287 = vadd.f32 %v2213, %v2286
      %v2288 = vand.u32 %v1742, 4294901760
      %2289 = vmatmul.f32.gmra.mxu0 %v2288
      %v2290 = vpop.f32.mrf.mxu0
      %v2291 = vadd.f32 %v2217, %v2290
      %2292 = vdwg.mxu0
      %v2293 = vmax.f32 %v2239, 0.0
      %v2294 = vmax.f32 %v2243, 0.0
      %v2295 = vmax.f32 %v2247, 0.0
      %v2296 = vmax.f32 %v2251, 0.0
      %v2297 = vmax.f32 %v2255, 0.0
      %v2298 = vmax.f32 %v2259, 0.0
      %v2299 = vmax.f32 %v2263, 0.0
      %v2300 = vmax.f32 %v2267, 0.0
      %v2301 = vmax.f32 %v2271, 0.0
      %v2302 = vmax.f32 %v2275, 0.0
      %v2303 = vmax.f32 %v2279, 0.0
      %v2304 = vmax.f32 %v2283, 0.0
      %v2305 = vmax.f32 %v2287, 0.0
      %v2306 = vmax.f32 %v2291, 0.0
      %v2307 = vld [vmem:[%s7] sm:$0xff]
      %v2308 = vld [vmem:[%s7 + $0x8] sm:$0xff]
      %v2309 = vld [vmem:[%s7 + $0x10] sm:$0xff]
      %v2310 = vld [vmem:[%s7 + $0x18] sm:$0xff]
      %v2311 = vld [vmem:[%s8] sm:$0x1]
      %v2313 = vperm.slane %v2311, 0
      %v2316 = vsel %vm1051, %v2293, 0
      %v2319 = vsel %vm1051, %v2294, 0
      %v2322 = vsel %vm1051, %v2295, 0
      %v2325 = vsel %vm1051, %v2296, 0
      %v2328 = vsel %vm1051, %v2297, 0
      %v2331 = vsel %vm1051, %v2298, 0
      %v2334 = vsel %vm1051, %v2299, 0
      %v2337 = vsel %vm1051, %v2300, 0
      %v2340 = vsel %vm1051, %v2301, 0
      %v2343 = vsel %vm1051, %v2302, 0
      %v2346 = vsel %vm1051, %v2303, 0
      %v2349 = vsel %vm1051, %v2304, 0
      %v2352 = vsel %vm1051, %v2305, 0
      %v2355 = vsel %vm1051, %v2306, 0
      %2357 = vmatpush.msra.mxu0 0.0
      %2358 = vmatpush.msra.mxu0 0.0
      %2359 = vmatpush.msra.mxu0 0.0
      %2360 = vmatpush.msra.mxu0 0.0
      %2361 = vmatpush.msra.mxu0 0.0
      %2362 = vmatpush.msra.mxu0 0.0
      %2363 = vmatpush.msra.mxu0 0.0
      %2364 = vmatpush.msra.mxu0 0.0
      %2365 = vmatpush.msra.mxu0 0.0
      %2366 = vmatpush.msra.mxu0 0.0
      %2367 = vmatpush.msra.mxu0 0.0
      %2368 = vmatpush.msra.mxu0 0.0
      %v2369 = vand.u32 %v2310, 4294901760
      %2370 = vmatpush.msra.mxu0 %v2369
      %v2371 = vand.u32 %v2309, 4294901760
      %2372 = vmatpush.msra.mxu0 %v2371
      %v2373 = vand.u32 %v2308, 4294901760
      %2374 = vmatpush.msra.mxu0 %v2373
      %v2375 = vand.u32 %v2307, 4294901760
      %2376 = vmatpush.msra.mxu0 %v2375
      %v2377 = vand.u32 %v2316, 4294901760
      %v2378 = vsub.f32 %v2316, %v2377
      %v2379 = vand.u32 %v2378, 4294901760
      %v2380 = vsub.f32 %v2378, %v2379
      %v2381 = vand.u32 %v2380, 4294901760
      %2382 = vmatmul.f32.gmra.mxu0 %v2381
      %v2383 = vpop.f32.mrf.mxu0
      %v2384 = vadd.f32 %v2313, %v2383
      %v2385 = vand.u32 %v2319, 4294901760
      %v2386 = vsub.f32 %v2319, %v2385
      %v2387 = vand.u32 %v2386, 4294901760
      %v2388 = vsub.f32 %v2386, %v2387
      %v2389 = vand.u32 %v2388, 4294901760
      %2390 = vmatmul.f32.gmra.mxu0 %v2389
      %v2391 = vpop.f32.mrf.mxu0
      %v2392 = vadd.f32 %v2313, %v2391
      %v2393 = vand.u32 %v2322, 4294901760
      %v2394 = vsub.f32 %v2322, %v2393
      %v2395 = vand.u32 %v2394, 4294901760
      %v2396 = vsub.f32 %v2394, %v2395
      %v2397 = vand.u32 %v2396, 4294901760
      %2398 = vmatmul.f32.gmra.mxu0 %v2397
      %v2399 = vpop.f32.mrf.mxu0
      %v2400 = vadd.f32 %v2313, %v2399
      %v2401 = vand.u32 %v2325, 4294901760
      %v2402 = vsub.f32 %v2325, %v2401
      %v2403 = vand.u32 %v2402, 4294901760
      %v2404 = vsub.f32 %v2402, %v2403
      %v2405 = vand.u32 %v2404, 4294901760
      %2406 = vmatmul.f32.gmra.mxu0 %v2405
      %v2407 = vpop.f32.mrf.mxu0
      %v2408 = vadd.f32 %v2313, %v2407
      %v2409 = vand.u32 %v2328, 4294901760
      %v2410 = vsub.f32 %v2328, %v2409
      %v2411 = vand.u32 %v2410, 4294901760
      %v2412 = vsub.f32 %v2410, %v2411
      %v2413 = vand.u32 %v2412, 4294901760
      %2414 = vmatmul.f32.gmra.mxu0 %v2413
      %v2415 = vpop.f32.mrf.mxu0
      %v2416 = vadd.f32 %v2313, %v2415
      %v2417 = vand.u32 %v2331, 4294901760
      %v2418 = vsub.f32 %v2331, %v2417
      %v2419 = vand.u32 %v2418, 4294901760
      %v2420 = vsub.f32 %v2418, %v2419
      %v2421 = vand.u32 %v2420, 4294901760
      %2422 = vmatmul.f32.gmra.mxu0 %v2421
      %v2423 = vpop.f32.mrf.mxu0
      %v2424 = vadd.f32 %v2313, %v2423
      %v2425 = vand.u32 %v2334, 4294901760
      %v2426 = vsub.f32 %v2334, %v2425
      %v2427 = vand.u32 %v2426, 4294901760
      %v2428 = vsub.f32 %v2426, %v2427
      %v2429 = vand.u32 %v2428, 4294901760
      %2430 = vmatmul.f32.gmra.mxu0 %v2429
      %v2431 = vpop.f32.mrf.mxu0
      %v2432 = vadd.f32 %v2313, %v2431
      %v2433 = vand.u32 %v2337, 4294901760
      %v2434 = vsub.f32 %v2337, %v2433
      %v2435 = vand.u32 %v2434, 4294901760
      %v2436 = vsub.f32 %v2434, %v2435
      %v2437 = vand.u32 %v2436, 4294901760
      %2438 = vmatmul.f32.gmra.mxu0 %v2437
      %v2439 = vpop.f32.mrf.mxu0
      %v2440 = vadd.f32 %v2313, %v2439
      %v2441 = vand.u32 %v2340, 4294901760
      %v2442 = vsub.f32 %v2340, %v2441
      %v2443 = vand.u32 %v2442, 4294901760
      %v2444 = vsub.f32 %v2442, %v2443
      %v2445 = vand.u32 %v2444, 4294901760
      %2446 = vmatmul.f32.gmra.mxu0 %v2445
      %v2447 = vpop.f32.mrf.mxu0
      %v2448 = vadd.f32 %v2313, %v2447
      %v2449 = vand.u32 %v2343, 4294901760
      %v2450 = vsub.f32 %v2343, %v2449
      %v2451 = vand.u32 %v2450, 4294901760
      %v2452 = vsub.f32 %v2450, %v2451
      %v2453 = vand.u32 %v2452, 4294901760
      %2454 = vmatmul.f32.gmra.mxu0 %v2453
      %v2455 = vpop.f32.mrf.mxu0
      %v2456 = vadd.f32 %v2313, %v2455
      %v2457 = vand.u32 %v2346, 4294901760
      %v2458 = vsub.f32 %v2346, %v2457
      %v2459 = vand.u32 %v2458, 4294901760
      %v2460 = vsub.f32 %v2458, %v2459
      %v2461 = vand.u32 %v2460, 4294901760
      %2462 = vmatmul.f32.gmra.mxu0 %v2461
      %v2463 = vpop.f32.mrf.mxu0
      %v2464 = vadd.f32 %v2313, %v2463
      %v2465 = vand.u32 %v2349, 4294901760
      %v2466 = vsub.f32 %v2349, %v2465
      %v2467 = vand.u32 %v2466, 4294901760
      %v2468 = vsub.f32 %v2466, %v2467
      %v2469 = vand.u32 %v2468, 4294901760
      %2470 = vmatmul.f32.gmra.mxu0 %v2469
      %v2471 = vpop.f32.mrf.mxu0
      %v2472 = vadd.f32 %v2313, %v2471
      %v2473 = vand.u32 %v2352, 4294901760
      %v2474 = vsub.f32 %v2352, %v2473
      %v2475 = vand.u32 %v2474, 4294901760
      %v2476 = vsub.f32 %v2474, %v2475
      %v2477 = vand.u32 %v2476, 4294901760
      %2478 = vmatmul.f32.gmra.mxu0 %v2477
      %v2479 = vpop.f32.mrf.mxu0
      %v2480 = vadd.f32 %v2313, %v2479
      %v2481 = vand.u32 %v2355, 4294901760
      %v2482 = vsub.f32 %v2355, %v2481
      %v2483 = vand.u32 %v2482, 4294901760
      %v2484 = vsub.f32 %v2482, %v2483
      %v2485 = vand.u32 %v2484, 4294901760
      %2486 = vmatmul.f32.gmra.mxu0 %v2485
      %v2487 = vpop.f32.mrf.mxu0
      %v2488 = vadd.f32 %v2313, %v2487
      %2489 = vdwg.mxu0
      %2490 = vmatpush.msra.mxu0 0.0
      %2491 = vmatpush.msra.mxu0 0.0
      %2492 = vmatpush.msra.mxu0 0.0
      %2493 = vmatpush.msra.mxu0 0.0
      %2494 = vmatpush.msra.mxu0 0.0
      %2495 = vmatpush.msra.mxu0 0.0
      %2496 = vmatpush.msra.mxu0 0.0
      %2497 = vmatpush.msra.mxu0 0.0
      %2498 = vmatpush.msra.mxu0 0.0
      %2499 = vmatpush.msra.mxu0 0.0
      %2500 = vmatpush.msra.mxu0 0.0
      %2501 = vmatpush.msra.mxu0 0.0
      %v2502 = vand.u32 %v2310, 4294901760
      %v2503 = vsub.f32 %v2310, %v2502
      %v2504 = vand.u32 %v2503, 4294901760
      %v2505 = vsub.f32 %v2503, %v2504
      %v2506 = vand.u32 %v2505, 4294901760
      %2507 = vmatpush.msra.mxu0 %v2506
      %v2508 = vand.u32 %v2309, 4294901760
      %v2509 = vsub.f32 %v2309, %v2508
      %v2510 = vand.u32 %v2509, 4294901760
      %v2511 = vsub.f32 %v2509, %v2510
      %v2512 = vand.u32 %v2511, 4294901760
      %2513 = vmatpush.msra.mxu0 %v2512
      %v2514 = vand.u32 %v2308, 4294901760
      %v2515 = vsub.f32 %v2308, %v2514
      %v2516 = vand.u32 %v2515, 4294901760
      %v2517 = vsub.f32 %v2515, %v2516
      %v2518 = vand.u32 %v2517, 4294901760
      %2519 = vmatpush.msra.mxu0 %v2518
      %v2520 = vand.u32 %v2307, 4294901760
      %v2521 = vsub.f32 %v2307, %v2520
      %v2522 = vand.u32 %v2521, 4294901760
      %v2523 = vsub.f32 %v2521, %v2522
      %v2524 = vand.u32 %v2523, 4294901760
      %2525 = vmatpush.msra.mxu0 %v2524
      %v2526 = vand.u32 %v2316, 4294901760
      %2527 = vmatmul.f32.gmra.mxu0 %v2526
      %v2528 = vpop.f32.mrf.mxu0
      %v2529 = vadd.f32 %v2384, %v2528
      %v2530 = vand.u32 %v2319, 4294901760
      %2531 = vmatmul.f32.gmra.mxu0 %v2530
      %v2532 = vpop.f32.mrf.mxu0
      %v2533 = vadd.f32 %v2392, %v2532
      %v2534 = vand.u32 %v2322, 4294901760
      %2535 = vmatmul.f32.gmra.mxu0 %v2534
      %v2536 = vpop.f32.mrf.mxu0
      %v2537 = vadd.f32 %v2400, %v2536
      %v2538 = vand.u32 %v2325, 4294901760
      %2539 = vmatmul.f32.gmra.mxu0 %v2538
      %v2540 = vpop.f32.mrf.mxu0
      %v2541 = vadd.f32 %v2408, %v2540
      %v2542 = vand.u32 %v2328, 4294901760
      %2543 = vmatmul.f32.gmra.mxu0 %v2542
      %v2544 = vpop.f32.mrf.mxu0
      %v2545 = vadd.f32 %v2416, %v2544
      %v2546 = vand.u32 %v2331, 4294901760
      %2547 = vmatmul.f32.gmra.mxu0 %v2546
      %v2548 = vpop.f32.mrf.mxu0
      %v2549 = vadd.f32 %v2424, %v2548
      %v2550 = vand.u32 %v2334, 4294901760
      %2551 = vmatmul.f32.gmra.mxu0 %v2550
      %v2552 = vpop.f32.mrf.mxu0
      %v2553 = vadd.f32 %v2432, %v2552
      %v2554 = vand.u32 %v2337, 4294901760
      %2555 = vmatmul.f32.gmra.mxu0 %v2554
      %v2556 = vpop.f32.mrf.mxu0
      %v2557 = vadd.f32 %v2440, %v2556
      %v2558 = vand.u32 %v2340, 4294901760
      %2559 = vmatmul.f32.gmra.mxu0 %v2558
      %v2560 = vpop.f32.mrf.mxu0
      %v2561 = vadd.f32 %v2448, %v2560
      %v2562 = vand.u32 %v2343, 4294901760
      %2563 = vmatmul.f32.gmra.mxu0 %v2562
      %v2564 = vpop.f32.mrf.mxu0
      %v2565 = vadd.f32 %v2456, %v2564
      %v2566 = vand.u32 %v2346, 4294901760
      %2567 = vmatmul.f32.gmra.mxu0 %v2566
      %v2568 = vpop.f32.mrf.mxu0
      %v2569 = vadd.f32 %v2464, %v2568
      %v2570 = vand.u32 %v2349, 4294901760
      %2571 = vmatmul.f32.gmra.mxu0 %v2570
      %v2572 = vpop.f32.mrf.mxu0
      %v2573 = vadd.f32 %v2472, %v2572
      %v2574 = vand.u32 %v2352, 4294901760
      %2575 = vmatmul.f32.gmra.mxu0 %v2574
      %v2576 = vpop.f32.mrf.mxu0
      %v2577 = vadd.f32 %v2480, %v2576
      %v2578 = vand.u32 %v2355, 4294901760
      %2579 = vmatmul.f32.gmra.mxu0 %v2578
      %v2580 = vpop.f32.mrf.mxu0
      %v2581 = vadd.f32 %v2488, %v2580
      %2582 = vdwg.mxu0
      %2583 = vmatpush.msra.mxu0 0.0
      %2584 = vmatpush.msra.mxu0 0.0
      %2585 = vmatpush.msra.mxu0 0.0
      %2586 = vmatpush.msra.mxu0 0.0
      %2587 = vmatpush.msra.mxu0 0.0
      %2588 = vmatpush.msra.mxu0 0.0
      %2589 = vmatpush.msra.mxu0 0.0
      %2590 = vmatpush.msra.mxu0 0.0
      %2591 = vmatpush.msra.mxu0 0.0
      %2592 = vmatpush.msra.mxu0 0.0
      %2593 = vmatpush.msra.mxu0 0.0
      %2594 = vmatpush.msra.mxu0 0.0
      %v2595 = vand.u32 %v2310, 4294901760
      %v2596 = vsub.f32 %v2310, %v2595
      %2597 = vmatpush.msra.mxu0 %v2596
      %v2598 = vand.u32 %v2309, 4294901760
      %v2599 = vsub.f32 %v2309, %v2598
      %2600 = vmatpush.msra.mxu0 %v2599
      %v2601 = vand.u32 %v2308, 4294901760
      %v2602 = vsub.f32 %v2308, %v2601
      %2603 = vmatpush.msra.mxu0 %v2602
      %v2604 = vand.u32 %v2307, 4294901760
      %v2605 = vsub.f32 %v2307, %v2604
      %2606 = vmatpush.msra.mxu0 %v2605
      %v2607 = vand.u32 %v2316, 4294901760
      %v2608 = vsub.f32 %v2316, %v2607
      %2609 = vmatmul.f32.gmra.mxu0 %v2608
      %v2610 = vpop.f32.mrf.mxu0
      %v2611 = vadd.f32 %v2529, %v2610
      %v2612 = vand.u32 %v2319, 4294901760
      %v2613 = vsub.f32 %v2319, %v2612
      %2614 = vmatmul.f32.gmra.mxu0 %v2613
      %v2615 = vpop.f32.mrf.mxu0
      %v2616 = vadd.f32 %v2533, %v2615
      %v2617 = vand.u32 %v2322, 4294901760
      %v2618 = vsub.f32 %v2322, %v2617
      %2619 = vmatmul.f32.gmra.mxu0 %v2618
      %v2620 = vpop.f32.mrf.mxu0
      %v2621 = vadd.f32 %v2537, %v2620
      %v2622 = vand.u32 %v2325, 4294901760
      %v2623 = vsub.f32 %v2325, %v2622
      %2624 = vmatmul.f32.gmra.mxu0 %v2623
      %v2625 = vpop.f32.mrf.mxu0
      %v2626 = vadd.f32 %v2541, %v2625
      %v2627 = vand.u32 %v2328, 4294901760
      %v2628 = vsub.f32 %v2328, %v2627
      %2629 = vmatmul.f32.gmra.mxu0 %v2628
      %v2630 = vpop.f32.mrf.mxu0
      %v2631 = vadd.f32 %v2545, %v2630
      %v2632 = vand.u32 %v2331, 4294901760
      %v2633 = vsub.f32 %v2331, %v2632
      %2634 = vmatmul.f32.gmra.mxu0 %v2633
      %v2635 = vpop.f32.mrf.mxu0
      %v2636 = vadd.f32 %v2549, %v2635
      %v2637 = vand.u32 %v2334, 4294901760
      %v2638 = vsub.f32 %v2334, %v2637
      %2639 = vmatmul.f32.gmra.mxu0 %v2638
      %v2640 = vpop.f32.mrf.mxu0
      %v2641 = vadd.f32 %v2553, %v2640
      %v2642 = vand.u32 %v2337, 4294901760
      %v2643 = vsub.f32 %v2337, %v2642
      %2644 = vmatmul.f32.gmra.mxu0 %v2643
      %v2645 = vpop.f32.mrf.mxu0
      %v2646 = vadd.f32 %v2557, %v2645
      %v2647 = vand.u32 %v2340, 4294901760
      %v2648 = vsub.f32 %v2340, %v2647
      %2649 = vmatmul.f32.gmra.mxu0 %v2648
      %v2650 = vpop.f32.mrf.mxu0
      %v2651 = vadd.f32 %v2561, %v2650
      %v2652 = vand.u32 %v2343, 4294901760
      %v2653 = vsub.f32 %v2343, %v2652
      %2654 = vmatmul.f32.gmra.mxu0 %v2653
      %v2655 = vpop.f32.mrf.mxu0
      %v2656 = vadd.f32 %v2565, %v2655
      %v2657 = vand.u32 %v2346, 4294901760
      %v2658 = vsub.f32 %v2346, %v2657
      %2659 = vmatmul.f32.gmra.mxu0 %v2658
      %v2660 = vpop.f32.mrf.mxu0
      %v2661 = vadd.f32 %v2569, %v2660
      %v2662 = vand.u32 %v2349, 4294901760
      %v2663 = vsub.f32 %v2349, %v2662
      %2664 = vmatmul.f32.gmra.mxu0 %v2663
      %v2665 = vpop.f32.mrf.mxu0
      %v2666 = vadd.f32 %v2573, %v2665
      %v2667 = vand.u32 %v2352, 4294901760
      %v2668 = vsub.f32 %v2352, %v2667
      %2669 = vmatmul.f32.gmra.mxu0 %v2668
      %v2670 = vpop.f32.mrf.mxu0
      %v2671 = vadd.f32 %v2577, %v2670
      %v2672 = vand.u32 %v2355, 4294901760
      %v2673 = vsub.f32 %v2355, %v2672
      %2674 = vmatmul.f32.gmra.mxu0 %v2673
      %v2675 = vpop.f32.mrf.mxu0
      %v2676 = vadd.f32 %v2581, %v2675
      %2677 = vdwg.mxu0
      %2678 = vmatpush.msra.mxu0 0.0
      %2679 = vmatpush.msra.mxu0 0.0
      %2680 = vmatpush.msra.mxu0 0.0
      %2681 = vmatpush.msra.mxu0 0.0
      %2682 = vmatpush.msra.mxu0 0.0
      %2683 = vmatpush.msra.mxu0 0.0
      %2684 = vmatpush.msra.mxu0 0.0
      %2685 = vmatpush.msra.mxu0 0.0
      %2686 = vmatpush.msra.mxu0 0.0
      %2687 = vmatpush.msra.mxu0 0.0
      %2688 = vmatpush.msra.mxu0 0.0
      %2689 = vmatpush.msra.mxu0 0.0
      %v2690 = vand.u32 %v2310, 4294901760
      %2691 = vmatpush.msra.mxu0 %v2690
      %v2692 = vand.u32 %v2309, 4294901760
      %2693 = vmatpush.msra.mxu0 %v2692
      %v2694 = vand.u32 %v2308, 4294901760
      %2695 = vmatpush.msra.mxu0 %v2694
      %v2696 = vand.u32 %v2307, 4294901760
      %2697 = vmatpush.msra.mxu0 %v2696
      %v2698 = vand.u32 %v2316, 4294901760
      %v2699 = vsub.f32 %v2316, %v2698
      %v2700 = vand.u32 %v2699, 4294901760
      %2701 = vmatmul.f32.gmra.mxu0 %v2700
      %v2702 = vpop.f32.mrf.mxu0
      %v2703 = vadd.f32 %v2611, %v2702
      %v2704 = vand.u32 %v2319, 4294901760
      %v2705 = vsub.f32 %v2319, %v2704
      %v2706 = vand.u32 %v2705, 4294901760
      %2707 = vmatmul.f32.gmra.mxu0 %v2706
      %v2708 = vpop.f32.mrf.mxu0
      %v2709 = vadd.f32 %v2616, %v2708
      %v2710 = vand.u32 %v2322, 4294901760
      %v2711 = vsub.f32 %v2322, %v2710
      %v2712 = vand.u32 %v2711, 4294901760
      %2713 = vmatmul.f32.gmra.mxu0 %v2712
      %v2714 = vpop.f32.mrf.mxu0
      %v2715 = vadd.f32 %v2621, %v2714
      %v2716 = vand.u32 %v2325, 4294901760
      %v2717 = vsub.f32 %v2325, %v2716
      %v2718 = vand.u32 %v2717, 4294901760
      %2719 = vmatmul.f32.gmra.mxu0 %v2718
      %v2720 = vpop.f32.mrf.mxu0
      %v2721 = vadd.f32 %v2626, %v2720
      %v2722 = vand.u32 %v2328, 4294901760
      %v2723 = vsub.f32 %v2328, %v2722
      %v2724 = vand.u32 %v2723, 4294901760
      %2725 = vmatmul.f32.gmra.mxu0 %v2724
      %v2726 = vpop.f32.mrf.mxu0
      %v2727 = vadd.f32 %v2631, %v2726
      %v2728 = vand.u32 %v2331, 4294901760
      %v2729 = vsub.f32 %v2331, %v2728
      %v2730 = vand.u32 %v2729, 4294901760
      %2731 = vmatmul.f32.gmra.mxu0 %v2730
      %v2732 = vpop.f32.mrf.mxu0
      %v2733 = vadd.f32 %v2636, %v2732
      %v2734 = vand.u32 %v2334, 4294901760
      %v2735 = vsub.f32 %v2334, %v2734
      %v2736 = vand.u32 %v2735, 4294901760
      %2737 = vmatmul.f32.gmra.mxu0 %v2736
      %v2738 = vpop.f32.mrf.mxu0
      %v2739 = vadd.f32 %v2641, %v2738
      %v2740 = vand.u32 %v2337, 4294901760
      %v2741 = vsub.f32 %v2337, %v2740
      %v2742 = vand.u32 %v2741, 4294901760
      %2743 = vmatmul.f32.gmra.mxu0 %v2742
      %v2744 = vpop.f32.mrf.mxu0
      %v2745 = vadd.f32 %v2646, %v2744
      %v2746 = vand.u32 %v2340, 4294901760
      %v2747 = vsub.f32 %v2340, %v2746
      %v2748 = vand.u32 %v2747, 4294901760
      %2749 = vmatmul.f32.gmra.mxu0 %v2748
      %v2750 = vpop.f32.mrf.mxu0
      %v2751 = vadd.f32 %v2651, %v2750
      %v2752 = vand.u32 %v2343, 4294901760
      %v2753 = vsub.f32 %v2343, %v2752
      %v2754 = vand.u32 %v2753, 4294901760
      %2755 = vmatmul.f32.gmra.mxu0 %v2754
      %v2756 = vpop.f32.mrf.mxu0
      %v2757 = vadd.f32 %v2656, %v2756
      %v2758 = vand.u32 %v2346, 4294901760
      %v2759 = vsub.f32 %v2346, %v2758
      %v2760 = vand.u32 %v2759, 4294901760
      %2761 = vmatmul.f32.gmra.mxu0 %v2760
      %v2762 = vpop.f32.mrf.mxu0
      %v2763 = vadd.f32 %v2661, %v2762
      %v2764 = vand.u32 %v2349, 4294901760
      %v2765 = vsub.f32 %v2349, %v2764
      %v2766 = vand.u32 %v2765, 4294901760
      %2767 = vmatmul.f32.gmra.mxu0 %v2766
      %v2768 = vpop.f32.mrf.mxu0
      %v2769 = vadd.f32 %v2666, %v2768
      %v2770 = vand.u32 %v2352, 4294901760
      %v2771 = vsub.f32 %v2352, %v2770
      %v2772 = vand.u32 %v2771, 4294901760
      %2773 = vmatmul.f32.gmra.mxu0 %v2772
      %v2774 = vpop.f32.mrf.mxu0
      %v2775 = vadd.f32 %v2671, %v2774
      %v2776 = vand.u32 %v2355, 4294901760
      %v2777 = vsub.f32 %v2355, %v2776
      %v2778 = vand.u32 %v2777, 4294901760
      %2779 = vmatmul.f32.gmra.mxu0 %v2778
      %v2780 = vpop.f32.mrf.mxu0
      %v2781 = vadd.f32 %v2676, %v2780
      %2782 = vdwg.mxu0
      %2783 = vmatpush.msra.mxu0 0.0
      %2784 = vmatpush.msra.mxu0 0.0
      %2785 = vmatpush.msra.mxu0 0.0
      %2786 = vmatpush.msra.mxu0 0.0
      %2787 = vmatpush.msra.mxu0 0.0
      %2788 = vmatpush.msra.mxu0 0.0
      %2789 = vmatpush.msra.mxu0 0.0
      %2790 = vmatpush.msra.mxu0 0.0
      %2791 = vmatpush.msra.mxu0 0.0
      %2792 = vmatpush.msra.mxu0 0.0
      %2793 = vmatpush.msra.mxu0 0.0
      %2794 = vmatpush.msra.mxu0 0.0
      %v2795 = vand.u32 %v2310, 4294901760
      %v2796 = vsub.f32 %v2310, %v2795
      %v2797 = vand.u32 %v2796, 4294901760
      %2798 = vmatpush.msra.mxu0 %v2797
      %v2799 = vand.u32 %v2309, 4294901760
      %v2800 = vsub.f32 %v2309, %v2799
      %v2801 = vand.u32 %v2800, 4294901760
      %2802 = vmatpush.msra.mxu0 %v2801
      %v2803 = vand.u32 %v2308, 4294901760
      %v2804 = vsub.f32 %v2308, %v2803
      %v2805 = vand.u32 %v2804, 4294901760
      %2806 = vmatpush.msra.mxu0 %v2805
      %v2807 = vand.u32 %v2307, 4294901760
      %v2808 = vsub.f32 %v2307, %v2807
      %v2809 = vand.u32 %v2808, 4294901760
      %2810 = vmatpush.msra.mxu0 %v2809
      %v2811 = vand.u32 %v2316, 4294901760
      %2812 = vmatmul.f32.gmra.mxu0 %v2811
      %v2813 = vpop.f32.mrf.mxu0
      %v2814 = vadd.f32 %v2703, %v2813
      %v2815 = vand.u32 %v2319, 4294901760
      %2816 = vmatmul.f32.gmra.mxu0 %v2815
      %v2817 = vpop.f32.mrf.mxu0
      %v2818 = vadd.f32 %v2709, %v2817
      %v2819 = vand.u32 %v2322, 4294901760
      %2820 = vmatmul.f32.gmra.mxu0 %v2819
      %v2821 = vpop.f32.mrf.mxu0
      %v2822 = vadd.f32 %v2715, %v2821
      %v2823 = vand.u32 %v2325, 4294901760
      %2824 = vmatmul.f32.gmra.mxu0 %v2823
      %v2825 = vpop.f32.mrf.mxu0
      %v2826 = vadd.f32 %v2721, %v2825
      %v2827 = vand.u32 %v2328, 4294901760
      %2828 = vmatmul.f32.gmra.mxu0 %v2827
      %v2829 = vpop.f32.mrf.mxu0
      %v2830 = vadd.f32 %v2727, %v2829
      %v2831 = vand.u32 %v2331, 4294901760
      %2832 = vmatmul.f32.gmra.mxu0 %v2831
      %v2833 = vpop.f32.mrf.mxu0
      %v2834 = vadd.f32 %v2733, %v2833
      %v2835 = vand.u32 %v2334, 4294901760
      %2836 = vmatmul.f32.gmra.mxu0 %v2835
      %v2837 = vpop.f32.mrf.mxu0
      %v2838 = vadd.f32 %v2739, %v2837
      %v2839 = vand.u32 %v2337, 4294901760
      %2840 = vmatmul.f32.gmra.mxu0 %v2839
      %v2841 = vpop.f32.mrf.mxu0
      %v2842 = vadd.f32 %v2745, %v2841
      %v2843 = vand.u32 %v2340, 4294901760
      %2844 = vmatmul.f32.gmra.mxu0 %v2843
      %v2845 = vpop.f32.mrf.mxu0
      %v2846 = vadd.f32 %v2751, %v2845
      %v2847 = vand.u32 %v2343, 4294901760
      %2848 = vmatmul.f32.gmra.mxu0 %v2847
      %v2849 = vpop.f32.mrf.mxu0
      %v2850 = vadd.f32 %v2757, %v2849
      %v2851 = vand.u32 %v2346, 4294901760
      %2852 = vmatmul.f32.gmra.mxu0 %v2851
      %v2853 = vpop.f32.mrf.mxu0
      %v2854 = vadd.f32 %v2763, %v2853
      %v2855 = vand.u32 %v2349, 4294901760
      %2856 = vmatmul.f32.gmra.mxu0 %v2855
      %v2857 = vpop.f32.mrf.mxu0
      %v2858 = vadd.f32 %v2769, %v2857
      %v2859 = vand.u32 %v2352, 4294901760
      %2860 = vmatmul.f32.gmra.mxu0 %v2859
      %v2861 = vpop.f32.mrf.mxu0
      %v2862 = vadd.f32 %v2775, %v2861
      %v2863 = vand.u32 %v2355, 4294901760
      %2864 = vmatmul.f32.gmra.mxu0 %v2863
      %v2865 = vpop.f32.mrf.mxu0
      %v2866 = vadd.f32 %v2781, %v2865
      %2867 = vdwg.mxu0
      %2868 = vmatpush.msra.mxu0 0.0
      %2869 = vmatpush.msra.mxu0 0.0
      %2870 = vmatpush.msra.mxu0 0.0
      %2871 = vmatpush.msra.mxu0 0.0
      %2872 = vmatpush.msra.mxu0 0.0
      %2873 = vmatpush.msra.mxu0 0.0
      %2874 = vmatpush.msra.mxu0 0.0
      %2875 = vmatpush.msra.mxu0 0.0
      %2876 = vmatpush.msra.mxu0 0.0
      %2877 = vmatpush.msra.mxu0 0.0
      %2878 = vmatpush.msra.mxu0 0.0
      %2879 = vmatpush.msra.mxu0 0.0
      %v2880 = vand.u32 %v2310, 4294901760
      %2881 = vmatpush.msra.mxu0 %v2880
      %v2882 = vand.u32 %v2309, 4294901760
      %2883 = vmatpush.msra.mxu0 %v2882
      %v2884 = vand.u32 %v2308, 4294901760
      %2885 = vmatpush.msra.mxu0 %v2884
      %v2886 = vand.u32 %v2307, 4294901760
      %2887 = vmatpush.msra.mxu0 %v2886
      %v2888 = vand.u32 %v2316, 4294901760
      %2889 = vmatmul.f32.gmra.mxu0 %v2888
      %v2890 = vpop.f32.mrf.mxu0
      %v2891 = vadd.f32 %v2814, %v2890
      %v2892 = vand.u32 %v2319, 4294901760
      %2893 = vmatmul.f32.gmra.mxu0 %v2892
      %v2894 = vpop.f32.mrf.mxu0
      %v2895 = vadd.f32 %v2818, %v2894
      %v2896 = vand.u32 %v2322, 4294901760
      %2897 = vmatmul.f32.gmra.mxu0 %v2896
      %v2898 = vpop.f32.mrf.mxu0
      %v2899 = vadd.f32 %v2822, %v2898
      %v2900 = vand.u32 %v2325, 4294901760
      %2901 = vmatmul.f32.gmra.mxu0 %v2900
      %v2902 = vpop.f32.mrf.mxu0
      %v2903 = vadd.f32 %v2826, %v2902
      %v2904 = vand.u32 %v2328, 4294901760
      %2905 = vmatmul.f32.gmra.mxu0 %v2904
      %v2906 = vpop.f32.mrf.mxu0
      %v2907 = vadd.f32 %v2830, %v2906
      %v2908 = vand.u32 %v2331, 4294901760
      %2909 = vmatmul.f32.gmra.mxu0 %v2908
      %v2910 = vpop.f32.mrf.mxu0
      %v2911 = vadd.f32 %v2834, %v2910
      %v2912 = vand.u32 %v2334, 4294901760
      %2913 = vmatmul.f32.gmra.mxu0 %v2912
      %v2914 = vpop.f32.mrf.mxu0
      %v2915 = vadd.f32 %v2838, %v2914
      %v2916 = vand.u32 %v2337, 4294901760
      %2917 = vmatmul.f32.gmra.mxu0 %v2916
      %v2918 = vpop.f32.mrf.mxu0
      %v2919 = vadd.f32 %v2842, %v2918
      %v2920 = vand.u32 %v2340, 4294901760
      %2921 = vmatmul.f32.gmra.mxu0 %v2920
      %v2922 = vpop.f32.mrf.mxu0
      %v2923 = vadd.f32 %v2846, %v2922
      %v2924 = vand.u32 %v2343, 4294901760
      %2925 = vmatmul.f32.gmra.mxu0 %v2924
      %v2926 = vpop.f32.mrf.mxu0
      %v2927 = vadd.f32 %v2850, %v2926
      %v2928 = vand.u32 %v2346, 4294901760
      %2929 = vmatmul.f32.gmra.mxu0 %v2928
      %v2930 = vpop.f32.mrf.mxu0
      %v2931 = vadd.f32 %v2854, %v2930
      %v2932 = vand.u32 %v2349, 4294901760
      %2933 = vmatmul.f32.gmra.mxu0 %v2932
      %v2934 = vpop.f32.mrf.mxu0
      %v2935 = vadd.f32 %v2858, %v2934
      %v2936 = vand.u32 %v2352, 4294901760
      %2937 = vmatmul.f32.gmra.mxu0 %v2936
      %v2938 = vpop.f32.mrf.mxu0
      %v2939 = vadd.f32 %v2862, %v2938
      %v2940 = vand.u32 %v2355, 4294901760
      %2941 = vmatmul.f32.gmra.mxu0 %v2940
      %v2942 = vpop.f32.mrf.mxu0
      %v2943 = vadd.f32 %v2866, %v2942
      %2944 = vdwg.mxu0
      %v2945 = vmax.f32 %v2891, 0.0
      %v2946 = vmax.f32 %v2895, 0.0
      %v2947 = vmax.f32 %v2899, 0.0
      %v2948 = vmax.f32 %v2903, 0.0
      %v2949 = vmax.f32 %v2907, 0.0
      %v2950 = vmax.f32 %v2911, 0.0
      %v2951 = vmax.f32 %v2915, 0.0
      %v2952 = vmax.f32 %v2919, 0.0
      %v2953 = vmax.f32 %v2923, 0.0
      %v2954 = vmax.f32 %v2927, 0.0
      %v2955 = vmax.f32 %v2931, 0.0
      %v2956 = vmax.f32 %v2935, 0.0
      %v2957 = vmax.f32 %v2939, 0.0
      %v2958 = vmax.f32 %v2943, 0.0
      %v2959 = vld [vmem:[%s9] sm:$0xff]
      %v2960 = vld [vmem:[%s9 + $0x8] sm:$0xff]
      %v2961 = vld [vmem:[%s9 + $0x10] sm:$0xff]
      %v2962 = vld [vmem:[%s9 + $0x18] sm:$0xff]
      %v2963 = vld [vmem:[%s9 + $0x20] sm:$0xff]
      %v2964 = vld [vmem:[%s9 + $0x28] sm:$0xff]
      %v2965 = vld [vmem:[%s9 + $0x30] sm:$0xff]
      %v2966 = vld [vmem:[%s9 + $0x38] sm:$0xff]
      %vm2967 = vcmask 523264
      %v2969 = vsel %vm2967, %v2945, 0
      %v2972 = vsel %vm2967, %v2946, 0
      %v2975 = vsel %vm2967, %v2947, 0
      %v2978 = vsel %vm2967, %v2948, 0
      %v2981 = vsel %vm2967, %v2949, 0
      %v2984 = vsel %vm2967, %v2950, 0
      %v2987 = vsel %vm2967, %v2951, 0
      %v2990 = vsel %vm2967, %v2952, 0
      %v2993 = vsel %vm2967, %v2953, 0
      %v2996 = vsel %vm2967, %v2954, 0
      %v2999 = vsel %vm2967, %v2955, 0
      %v3002 = vsel %vm2967, %v2956, 0
      %v3005 = vsel %vm2967, %v2957, 0
      %v3008 = vsel %vm2967, %v2958, 0
      %3010 = vmatpush.msra.mxu0 0.0
      %3011 = vmatpush.msra.mxu0 0.0
      %3012 = vmatpush.msra.mxu0 0.0
      %3013 = vmatpush.msra.mxu0 0.0
      %3014 = vmatpush.msra.mxu0 0.0
      %3015 = vmatpush.msra.mxu0 0.0
      %3016 = vmatpush.msra.mxu0 0.0
      %3017 = vmatpush.msra.mxu0 0.0
      %v3018 = vand.u32 %v2966, 4294901760
      %3019 = vmatpush.msra.mxu0 %v3018
      %v3020 = vand.u32 %v2965, 4294901760
      %3021 = vmatpush.msra.mxu0 %v3020
      %v3022 = vand.u32 %v2964, 4294901760
      %3023 = vmatpush.msra.mxu0 %v3022
      %v3024 = vand.u32 %v2963, 4294901760
      %3025 = vmatpush.msra.mxu0 %v3024
      %v3026 = vand.u32 %v2962, 4294901760
      %3027 = vmatpush.msra.mxu0 %v3026
      %v3028 = vand.u32 %v2961, 4294901760
      %3029 = vmatpush.msra.mxu0 %v3028
      %v3030 = vand.u32 %v2960, 4294901760
      %3031 = vmatpush.msra.mxu0 %v3030
      %v3032 = vand.u32 %v2959, 4294901760
      %3033 = vmatpush.msra.mxu0 %v3032
      %v3034 = vand.u32 %v2969, 4294901760
      %v3035 = vsub.f32 %v2969, %v3034
      %v3036 = vand.u32 %v3035, 4294901760
      %v3037 = vsub.f32 %v3035, %v3036
      %v3038 = vand.u32 %v3037, 4294901760
      %3039 = vmatmul.f32.gmra.mxu0 %v3038
      %v3040 = vpop.f32.mrf.mxu0
      %v3041 = vadd.f32 0.0, %v3040
      %v3042 = vand.u32 %v2972, 4294901760
      %v3043 = vsub.f32 %v2972, %v3042
      %v3044 = vand.u32 %v3043, 4294901760
      %v3045 = vsub.f32 %v3043, %v3044
      %v3046 = vand.u32 %v3045, 4294901760
      %3047 = vmatmul.f32.gmra.mxu0 %v3046
      %v3048 = vpop.f32.mrf.mxu0
      %v3049 = vadd.f32 0.0, %v3048
      %v3050 = vand.u32 %v2975, 4294901760
      %v3051 = vsub.f32 %v2975, %v3050
      %v3052 = vand.u32 %v3051, 4294901760
      %v3053 = vsub.f32 %v3051, %v3052
      %v3054 = vand.u32 %v3053, 4294901760
      %3055 = vmatmul.f32.gmra.mxu0 %v3054
      %v3056 = vpop.f32.mrf.mxu0
      %v3057 = vadd.f32 0.0, %v3056
      %v3058 = vand.u32 %v2978, 4294901760
      %v3059 = vsub.f32 %v2978, %v3058
      %v3060 = vand.u32 %v3059, 4294901760
      %v3061 = vsub.f32 %v3059, %v3060
      %v3062 = vand.u32 %v3061, 4294901760
      %3063 = vmatmul.f32.gmra.mxu0 %v3062
      %v3064 = vpop.f32.mrf.mxu0
      %v3065 = vadd.f32 0.0, %v3064
      %v3066 = vand.u32 %v2981, 4294901760
      %v3067 = vsub.f32 %v2981, %v3066
      %v3068 = vand.u32 %v3067, 4294901760
      %v3069 = vsub.f32 %v3067, %v3068
      %v3070 = vand.u32 %v3069, 4294901760
      %3071 = vmatmul.f32.gmra.mxu0 %v3070
      %v3072 = vpop.f32.mrf.mxu0
      %v3073 = vadd.f32 0.0, %v3072
      %v3074 = vand.u32 %v2984, 4294901760
      %v3075 = vsub.f32 %v2984, %v3074
      %v3076 = vand.u32 %v3075, 4294901760
      %v3077 = vsub.f32 %v3075, %v3076
      %v3078 = vand.u32 %v3077, 4294901760
      %3079 = vmatmul.f32.gmra.mxu0 %v3078
      %v3080 = vpop.f32.mrf.mxu0
      %v3081 = vadd.f32 0.0, %v3080
      %v3082 = vand.u32 %v2987, 4294901760
      %v3083 = vsub.f32 %v2987, %v3082
      %v3084 = vand.u32 %v3083, 4294901760
      %v3085 = vsub.f32 %v3083, %v3084
      %v3086 = vand.u32 %v3085, 4294901760
      %3087 = vmatmul.f32.gmra.mxu0 %v3086
      %v3088 = vpop.f32.mrf.mxu0
      %v3089 = vadd.f32 0.0, %v3088
      %v3090 = vand.u32 %v2990, 4294901760
      %v3091 = vsub.f32 %v2990, %v3090
      %v3092 = vand.u32 %v3091, 4294901760
      %v3093 = vsub.f32 %v3091, %v3092
      %v3094 = vand.u32 %v3093, 4294901760
      %3095 = vmatmul.f32.gmra.mxu0 %v3094
      %v3096 = vpop.f32.mrf.mxu0
      %v3097 = vadd.f32 0.0, %v3096
      %v3098 = vand.u32 %v2993, 4294901760
      %v3099 = vsub.f32 %v2993, %v3098
      %v3100 = vand.u32 %v3099, 4294901760
      %v3101 = vsub.f32 %v3099, %v3100
      %v3102 = vand.u32 %v3101, 4294901760
      %3103 = vmatmul.f32.gmra.mxu0 %v3102
      %v3104 = vpop.f32.mrf.mxu0
      %v3105 = vadd.f32 0.0, %v3104
      %v3106 = vand.u32 %v2996, 4294901760
      %v3107 = vsub.f32 %v2996, %v3106
      %v3108 = vand.u32 %v3107, 4294901760
      %v3109 = vsub.f32 %v3107, %v3108
      %v3110 = vand.u32 %v3109, 4294901760
      %3111 = vmatmul.f32.gmra.mxu0 %v3110
      %v3112 = vpop.f32.mrf.mxu0
      %v3113 = vadd.f32 0.0, %v3112
      %v3114 = vand.u32 %v2999, 4294901760
      %v3115 = vsub.f32 %v2999, %v3114
      %v3116 = vand.u32 %v3115, 4294901760
      %v3117 = vsub.f32 %v3115, %v3116
      %v3118 = vand.u32 %v3117, 4294901760
      %3119 = vmatmul.f32.gmra.mxu0 %v3118
      %v3120 = vpop.f32.mrf.mxu0
      %v3121 = vadd.f32 0.0, %v3120
      %v3122 = vand.u32 %v3002, 4294901760
      %v3123 = vsub.f32 %v3002, %v3122
      %v3124 = vand.u32 %v3123, 4294901760
      %v3125 = vsub.f32 %v3123, %v3124
      %v3126 = vand.u32 %v3125, 4294901760
      %3127 = vmatmul.f32.gmra.mxu0 %v3126
      %v3128 = vpop.f32.mrf.mxu0
      %v3129 = vadd.f32 0.0, %v3128
      %v3130 = vand.u32 %v3005, 4294901760
      %v3131 = vsub.f32 %v3005, %v3130
      %v3132 = vand.u32 %v3131, 4294901760
      %v3133 = vsub.f32 %v3131, %v3132
      %v3134 = vand.u32 %v3133, 4294901760
      %3135 = vmatmul.f32.gmra.mxu0 %v3134
      %v3136 = vpop.f32.mrf.mxu0
      %v3137 = vadd.f32 0.0, %v3136
      %v3138 = vand.u32 %v3008, 4294901760
      %v3139 = vsub.f32 %v3008, %v3138
      %v3140 = vand.u32 %v3139, 4294901760
      %v3141 = vsub.f32 %v3139, %v3140
      %v3142 = vand.u32 %v3141, 4294901760
      %3143 = vmatmul.f32.gmra.mxu0 %v3142
      %v3144 = vpop.f32.mrf.mxu0
      %v3145 = vadd.f32 0.0, %v3144
      %3146 = vdwg.mxu0
      %3147 = vmatpush.msra.mxu0 0.0
      %3148 = vmatpush.msra.mxu0 0.0
      %3149 = vmatpush.msra.mxu0 0.0
      %3150 = vmatpush.msra.mxu0 0.0
      %3151 = vmatpush.msra.mxu0 0.0
      %3152 = vmatpush.msra.mxu0 0.0
      %3153 = vmatpush.msra.mxu0 0.0
      %3154 = vmatpush.msra.mxu0 0.0
      %v3155 = vand.u32 %v2966, 4294901760
      %v3156 = vsub.f32 %v2966, %v3155
      %v3157 = vand.u32 %v3156, 4294901760
      %v3158 = vsub.f32 %v3156, %v3157
      %v3159 = vand.u32 %v3158, 4294901760
      %3160 = vmatpush.msra.mxu0 %v3159
      %v3161 = vand.u32 %v2965, 4294901760
      %v3162 = vsub.f32 %v2965, %v3161
      %v3163 = vand.u32 %v3162, 4294901760
      %v3164 = vsub.f32 %v3162, %v3163
      %v3165 = vand.u32 %v3164, 4294901760
      %3166 = vmatpush.msra.mxu0 %v3165
      %v3167 = vand.u32 %v2964, 4294901760
      %v3168 = vsub.f32 %v2964, %v3167
      %v3169 = vand.u32 %v3168, 4294901760
      %v3170 = vsub.f32 %v3168, %v3169
      %v3171 = vand.u32 %v3170, 4294901760
      %3172 = vmatpush.msra.mxu0 %v3171
      %v3173 = vand.u32 %v2963, 4294901760
      %v3174 = vsub.f32 %v2963, %v3173
      %v3175 = vand.u32 %v3174, 4294901760
      %v3176 = vsub.f32 %v3174, %v3175
      %v3177 = vand.u32 %v3176, 4294901760
      %3178 = vmatpush.msra.mxu0 %v3177
      %v3179 = vand.u32 %v2962, 4294901760
      %v3180 = vsub.f32 %v2962, %v3179
      %v3181 = vand.u32 %v3180, 4294901760
      %v3182 = vsub.f32 %v3180, %v3181
      %v3183 = vand.u32 %v3182, 4294901760
      %3184 = vmatpush.msra.mxu0 %v3183
      %v3185 = vand.u32 %v2961, 4294901760
      %v3186 = vsub.f32 %v2961, %v3185
      %v3187 = vand.u32 %v3186, 4294901760
      %v3188 = vsub.f32 %v3186, %v3187
      %v3189 = vand.u32 %v3188, 4294901760
      %3190 = vmatpush.msra.mxu0 %v3189
      %v3191 = vand.u32 %v2960, 4294901760
      %v3192 = vsub.f32 %v2960, %v3191
      %v3193 = vand.u32 %v3192, 4294901760
      %v3194 = vsub.f32 %v3192, %v3193
      %v3195 = vand.u32 %v3194, 4294901760
      %3196 = vmatpush.msra.mxu0 %v3195
      %v3197 = vand.u32 %v2959, 4294901760
      %v3198 = vsub.f32 %v2959, %v3197
      %v3199 = vand.u32 %v3198, 4294901760
      %v3200 = vsub.f32 %v3198, %v3199
      %v3201 = vand.u32 %v3200, 4294901760
      %3202 = vmatpush.msra.mxu0 %v3201
      %v3203 = vand.u32 %v2969, 4294901760
      %3204 = vmatmul.f32.gmra.mxu0 %v3203
      %v3205 = vpop.f32.mrf.mxu0
      %v3206 = vadd.f32 %v3041, %v3205
      %v3207 = vand.u32 %v2972, 4294901760
      %3208 = vmatmul.f32.gmra.mxu0 %v3207
      %v3209 = vpop.f32.mrf.mxu0
      %v3210 = vadd.f32 %v3049, %v3209
      %v3211 = vand.u32 %v2975, 4294901760
      %3212 = vmatmul.f32.gmra.mxu0 %v3211
      %v3213 = vpop.f32.mrf.mxu0
      %v3214 = vadd.f32 %v3057, %v3213
      %v3215 = vand.u32 %v2978, 4294901760
      %3216 = vmatmul.f32.gmra.mxu0 %v3215
      %v3217 = vpop.f32.mrf.mxu0
      %v3218 = vadd.f32 %v3065, %v3217
      %v3219 = vand.u32 %v2981, 4294901760
      %3220 = vmatmul.f32.gmra.mxu0 %v3219
      %v3221 = vpop.f32.mrf.mxu0
      %v3222 = vadd.f32 %v3073, %v3221
      %v3223 = vand.u32 %v2984, 4294901760
      %3224 = vmatmul.f32.gmra.mxu0 %v3223
      %v3225 = vpop.f32.mrf.mxu0
      %v3226 = vadd.f32 %v3081, %v3225
      %v3227 = vand.u32 %v2987, 4294901760
      %3228 = vmatmul.f32.gmra.mxu0 %v3227
      %v3229 = vpop.f32.mrf.mxu0
      %v3230 = vadd.f32 %v3089, %v3229
      %v3231 = vand.u32 %v2990, 4294901760
      %3232 = vmatmul.f32.gmra.mxu0 %v3231
      %v3233 = vpop.f32.mrf.mxu0
      %v3234 = vadd.f32 %v3097, %v3233
      %v3235 = vand.u32 %v2993, 4294901760
      %3236 = vmatmul.f32.gmra.mxu0 %v3235
      %v3237 = vpop.f32.mrf.mxu0
      %v3238 = vadd.f32 %v3105, %v3237
      %v3239 = vand.u32 %v2996, 4294901760
      %3240 = vmatmul.f32.gmra.mxu0 %v3239
      %v3241 = vpop.f32.mrf.mxu0
      %v3242 = vadd.f32 %v3113, %v3241
      %v3243 = vand.u32 %v2999, 4294901760
      %3244 = vmatmul.f32.gmra.mxu0 %v3243
      %v3245 = vpop.f32.mrf.mxu0
      %v3246 = vadd.f32 %v3121, %v3245
      %v3247 = vand.u32 %v3002, 4294901760
      %3248 = vmatmul.f32.gmra.mxu0 %v3247
      %v3249 = vpop.f32.mrf.mxu0
      %v3250 = vadd.f32 %v3129, %v3249
      %v3251 = vand.u32 %v3005, 4294901760
      %3252 = vmatmul.f32.gmra.mxu0 %v3251
      %v3253 = vpop.f32.mrf.mxu0
      %v3254 = vadd.f32 %v3137, %v3253
      %v3255 = vand.u32 %v3008, 4294901760
      %3256 = vmatmul.f32.gmra.mxu0 %v3255
      %v3257 = vpop.f32.mrf.mxu0
      %v3258 = vadd.f32 %v3145, %v3257
      %3259 = vdwg.mxu0
      %3260 = vmatpush.msra.mxu0 0.0
      %3261 = vmatpush.msra.mxu0 0.0
      %3262 = vmatpush.msra.mxu0 0.0
      %3263 = vmatpush.msra.mxu0 0.0
      %3264 = vmatpush.msra.mxu0 0.0
      %3265 = vmatpush.msra.mxu0 0.0
      %3266 = vmatpush.msra.mxu0 0.0
      %3267 = vmatpush.msra.mxu0 0.0
      %v3268 = vand.u32 %v2966, 4294901760
      %v3269 = vsub.f32 %v2966, %v3268
      %3270 = vmatpush.msra.mxu0 %v3269
      %v3271 = vand.u32 %v2965, 4294901760
      %v3272 = vsub.f32 %v2965, %v3271
      %3273 = vmatpush.msra.mxu0 %v3272
      %v3274 = vand.u32 %v2964, 4294901760
      %v3275 = vsub.f32 %v2964, %v3274
      %3276 = vmatpush.msra.mxu0 %v3275
      %v3277 = vand.u32 %v2963, 4294901760
      %v3278 = vsub.f32 %v2963, %v3277
      %3279 = vmatpush.msra.mxu0 %v3278
      %v3280 = vand.u32 %v2962, 4294901760
      %v3281 = vsub.f32 %v2962, %v3280
      %3282 = vmatpush.msra.mxu0 %v3281
      %v3283 = vand.u32 %v2961, 4294901760
      %v3284 = vsub.f32 %v2961, %v3283
      %3285 = vmatpush.msra.mxu0 %v3284
      %v3286 = vand.u32 %v2960, 4294901760
      %v3287 = vsub.f32 %v2960, %v3286
      %3288 = vmatpush.msra.mxu0 %v3287
      %v3289 = vand.u32 %v2959, 4294901760
      %v3290 = vsub.f32 %v2959, %v3289
      %3291 = vmatpush.msra.mxu0 %v3290
      %v3292 = vand.u32 %v2969, 4294901760
      %v3293 = vsub.f32 %v2969, %v3292
      %3294 = vmatmul.f32.gmra.mxu0 %v3293
      %v3295 = vpop.f32.mrf.mxu0
      %v3296 = vadd.f32 %v3206, %v3295
      %v3297 = vand.u32 %v2972, 4294901760
      %v3298 = vsub.f32 %v2972, %v3297
      %3299 = vmatmul.f32.gmra.mxu0 %v3298
      %v3300 = vpop.f32.mrf.mxu0
      %v3301 = vadd.f32 %v3210, %v3300
      %v3302 = vand.u32 %v2975, 4294901760
      %v3303 = vsub.f32 %v2975, %v3302
      %3304 = vmatmul.f32.gmra.mxu0 %v3303
      %v3305 = vpop.f32.mrf.mxu0
      %v3306 = vadd.f32 %v3214, %v3305
      %v3307 = vand.u32 %v2978, 4294901760
      %v3308 = vsub.f32 %v2978, %v3307
      %3309 = vmatmul.f32.gmra.mxu0 %v3308
      %v3310 = vpop.f32.mrf.mxu0
      %v3311 = vadd.f32 %v3218, %v3310
      %v3312 = vand.u32 %v2981, 4294901760
      %v3313 = vsub.f32 %v2981, %v3312
      %3314 = vmatmul.f32.gmra.mxu0 %v3313
      %v3315 = vpop.f32.mrf.mxu0
      %v3316 = vadd.f32 %v3222, %v3315
      %v3317 = vand.u32 %v2984, 4294901760
      %v3318 = vsub.f32 %v2984, %v3317
      %3319 = vmatmul.f32.gmra.mxu0 %v3318
      %v3320 = vpop.f32.mrf.mxu0
      %v3321 = vadd.f32 %v3226, %v3320
      %v3322 = vand.u32 %v2987, 4294901760
      %v3323 = vsub.f32 %v2987, %v3322
      %3324 = vmatmul.f32.gmra.mxu0 %v3323
      %v3325 = vpop.f32.mrf.mxu0
      %v3326 = vadd.f32 %v3230, %v3325
      %v3327 = vand.u32 %v2990, 4294901760
      %v3328 = vsub.f32 %v2990, %v3327
      %3329 = vmatmul.f32.gmra.mxu0 %v3328
      %v3330 = vpop.f32.mrf.mxu0
      %v3331 = vadd.f32 %v3234, %v3330
      %v3332 = vand.u32 %v2993, 4294901760
      %v3333 = vsub.f32 %v2993, %v3332
      %3334 = vmatmul.f32.gmra.mxu0 %v3333
      %v3335 = vpop.f32.mrf.mxu0
      %v3336 = vadd.f32 %v3238, %v3335
      %v3337 = vand.u32 %v2996, 4294901760
      %v3338 = vsub.f32 %v2996, %v3337
      %3339 = vmatmul.f32.gmra.mxu0 %v3338
      %v3340 = vpop.f32.mrf.mxu0
      %v3341 = vadd.f32 %v3242, %v3340
      %v3342 = vand.u32 %v2999, 4294901760
      %v3343 = vsub.f32 %v2999, %v3342
      %3344 = vmatmul.f32.gmra.mxu0 %v3343
      %v3345 = vpop.f32.mrf.mxu0
      %v3346 = vadd.f32 %v3246, %v3345
      %v3347 = vand.u32 %v3002, 4294901760
      %v3348 = vsub.f32 %v3002, %v3347
      %3349 = vmatmul.f32.gmra.mxu0 %v3348
      %v3350 = vpop.f32.mrf.mxu0
      %v3351 = vadd.f32 %v3250, %v3350
      %v3352 = vand.u32 %v3005, 4294901760
      %v3353 = vsub.f32 %v3005, %v3352
      %3354 = vmatmul.f32.gmra.mxu0 %v3353
      %v3355 = vpop.f32.mrf.mxu0
      %v3356 = vadd.f32 %v3254, %v3355
      %v3357 = vand.u32 %v3008, 4294901760
      %v3358 = vsub.f32 %v3008, %v3357
      %3359 = vmatmul.f32.gmra.mxu0 %v3358
      %v3360 = vpop.f32.mrf.mxu0
      %v3361 = vadd.f32 %v3258, %v3360
      %3362 = vdwg.mxu0
      %3363 = vmatpush.msra.mxu0 0.0
      %3364 = vmatpush.msra.mxu0 0.0
      %3365 = vmatpush.msra.mxu0 0.0
      %3366 = vmatpush.msra.mxu0 0.0
      %3367 = vmatpush.msra.mxu0 0.0
      %3368 = vmatpush.msra.mxu0 0.0
      %3369 = vmatpush.msra.mxu0 0.0
      %3370 = vmatpush.msra.mxu0 0.0
      %v3371 = vand.u32 %v2966, 4294901760
      %3372 = vmatpush.msra.mxu0 %v3371
      %v3373 = vand.u32 %v2965, 4294901760
      %3374 = vmatpush.msra.mxu0 %v3373
      %v3375 = vand.u32 %v2964, 4294901760
      %3376 = vmatpush.msra.mxu0 %v3375
      %v3377 = vand.u32 %v2963, 4294901760
      %3378 = vmatpush.msra.mxu0 %v3377
      %v3379 = vand.u32 %v2962, 4294901760
      %3380 = vmatpush.msra.mxu0 %v3379
      %v3381 = vand.u32 %v2961, 4294901760
      %3382 = vmatpush.msra.mxu0 %v3381
      %v3383 = vand.u32 %v2960, 4294901760
      %3384 = vmatpush.msra.mxu0 %v3383
      %v3385 = vand.u32 %v2959, 4294901760
      %3386 = vmatpush.msra.mxu0 %v3385
      %v3387 = vand.u32 %v2969, 4294901760
      %v3388 = vsub.f32 %v2969, %v3387
      %v3389 = vand.u32 %v3388, 4294901760
      %3390 = vmatmul.f32.gmra.mxu0 %v3389
      %v3391 = vpop.f32.mrf.mxu0
      %v3392 = vadd.f32 %v3296, %v3391
      %v3393 = vand.u32 %v2972, 4294901760
      %v3394 = vsub.f32 %v2972, %v3393
      %v3395 = vand.u32 %v3394, 4294901760
      %3396 = vmatmul.f32.gmra.mxu0 %v3395
      %v3397 = vpop.f32.mrf.mxu0
      %v3398 = vadd.f32 %v3301, %v3397
      %v3399 = vand.u32 %v2975, 4294901760
      %v3400 = vsub.f32 %v2975, %v3399
      %v3401 = vand.u32 %v3400, 4294901760
      %3402 = vmatmul.f32.gmra.mxu0 %v3401
      %v3403 = vpop.f32.mrf.mxu0
      %v3404 = vadd.f32 %v3306, %v3403
      %v3405 = vand.u32 %v2978, 4294901760
      %v3406 = vsub.f32 %v2978, %v3405
      %v3407 = vand.u32 %v3406, 4294901760
      %3408 = vmatmul.f32.gmra.mxu0 %v3407
      %v3409 = vpop.f32.mrf.mxu0
      %v3410 = vadd.f32 %v3311, %v3409
      %v3411 = vand.u32 %v2981, 4294901760
      %v3412 = vsub.f32 %v2981, %v3411
      %v3413 = vand.u32 %v3412, 4294901760
      %3414 = vmatmul.f32.gmra.mxu0 %v3413
      %v3415 = vpop.f32.mrf.mxu0
      %v3416 = vadd.f32 %v3316, %v3415
      %v3417 = vand.u32 %v2984, 4294901760
      %v3418 = vsub.f32 %v2984, %v3417
      %v3419 = vand.u32 %v3418, 4294901760
      %3420 = vmatmul.f32.gmra.mxu0 %v3419
      %v3421 = vpop.f32.mrf.mxu0
      %v3422 = vadd.f32 %v3321, %v3421
      %v3423 = vand.u32 %v2987, 4294901760
      %v3424 = vsub.f32 %v2987, %v3423
      %v3425 = vand.u32 %v3424, 4294901760
      %3426 = vmatmul.f32.gmra.mxu0 %v3425
      %v3427 = vpop.f32.mrf.mxu0
      %v3428 = vadd.f32 %v3326, %v3427
      %v3429 = vand.u32 %v2990, 4294901760
      %v3430 = vsub.f32 %v2990, %v3429
      %v3431 = vand.u32 %v3430, 4294901760
      %3432 = vmatmul.f32.gmra.mxu0 %v3431
      %v3433 = vpop.f32.mrf.mxu0
      %v3434 = vadd.f32 %v3331, %v3433
      %v3435 = vand.u32 %v2993, 4294901760
      %v3436 = vsub.f32 %v2993, %v3435
      %v3437 = vand.u32 %v3436, 4294901760
      %3438 = vmatmul.f32.gmra.mxu0 %v3437
      %v3439 = vpop.f32.mrf.mxu0
      %v3440 = vadd.f32 %v3336, %v3439
      %v3441 = vand.u32 %v2996, 4294901760
      %v3442 = vsub.f32 %v2996, %v3441
      %v3443 = vand.u32 %v3442, 4294901760
      %3444 = vmatmul.f32.gmra.mxu0 %v3443
      %v3445 = vpop.f32.mrf.mxu0
      %v3446 = vadd.f32 %v3341, %v3445
      %v3447 = vand.u32 %v2999, 4294901760
      %v3448 = vsub.f32 %v2999, %v3447
      %v3449 = vand.u32 %v3448, 4294901760
      %3450 = vmatmul.f32.gmra.mxu0 %v3449
      %v3451 = vpop.f32.mrf.mxu0
      %v3452 = vadd.f32 %v3346, %v3451
      %v3453 = vand.u32 %v3002, 4294901760
      %v3454 = vsub.f32 %v3002, %v3453
      %v3455 = vand.u32 %v3454, 4294901760
      %3456 = vmatmul.f32.gmra.mxu0 %v3455
      %v3457 = vpop.f32.mrf.mxu0
      %v3458 = vadd.f32 %v3351, %v3457
      %v3459 = vand.u32 %v3005, 4294901760
      %v3460 = vsub.f32 %v3005, %v3459
      %v3461 = vand.u32 %v3460, 4294901760
      %3462 = vmatmul.f32.gmra.mxu0 %v3461
      %v3463 = vpop.f32.mrf.mxu0
      %v3464 = vadd.f32 %v3356, %v3463
      %v3465 = vand.u32 %v3008, 4294901760
      %v3466 = vsub.f32 %v3008, %v3465
      %v3467 = vand.u32 %v3466, 4294901760
      %3468 = vmatmul.f32.gmra.mxu0 %v3467
      %v3469 = vpop.f32.mrf.mxu0
      %v3470 = vadd.f32 %v3361, %v3469
      %3471 = vdwg.mxu0
      %3472 = vmatpush.msra.mxu0 0.0
      %3473 = vmatpush.msra.mxu0 0.0
      %3474 = vmatpush.msra.mxu0 0.0
      %3475 = vmatpush.msra.mxu0 0.0
      %3476 = vmatpush.msra.mxu0 0.0
      %3477 = vmatpush.msra.mxu0 0.0
      %3478 = vmatpush.msra.mxu0 0.0
      %3479 = vmatpush.msra.mxu0 0.0
      %v3480 = vand.u32 %v2966, 4294901760
      %v3481 = vsub.f32 %v2966, %v3480
      %v3482 = vand.u32 %v3481, 4294901760
      %3483 = vmatpush.msra.mxu0 %v3482
      %v3484 = vand.u32 %v2965, 4294901760
      %v3485 = vsub.f32 %v2965, %v3484
      %v3486 = vand.u32 %v3485, 4294901760
      %3487 = vmatpush.msra.mxu0 %v3486
      %v3488 = vand.u32 %v2964, 4294901760
      %v3489 = vsub.f32 %v2964, %v3488
      %v3490 = vand.u32 %v3489, 4294901760
      %3491 = vmatpush.msra.mxu0 %v3490
      %v3492 = vand.u32 %v2963, 4294901760
      %v3493 = vsub.f32 %v2963, %v3492
      %v3494 = vand.u32 %v3493, 4294901760
      %3495 = vmatpush.msra.mxu0 %v3494
      %v3496 = vand.u32 %v2962, 4294901760
      %v3497 = vsub.f32 %v2962, %v3496
      %v3498 = vand.u32 %v3497, 4294901760
      %3499 = vmatpush.msra.mxu0 %v3498
      %v3500 = vand.u32 %v2961, 4294901760
      %v3501 = vsub.f32 %v2961, %v3500
      %v3502 = vand.u32 %v3501, 4294901760
      %3503 = vmatpush.msra.mxu0 %v3502
      %v3504 = vand.u32 %v2960, 4294901760
      %v3505 = vsub.f32 %v2960, %v3504
      %v3506 = vand.u32 %v3505, 4294901760
      %3507 = vmatpush.msra.mxu0 %v3506
      %v3508 = vand.u32 %v2959, 4294901760
      %v3509 = vsub.f32 %v2959, %v3508
      %v3510 = vand.u32 %v3509, 4294901760
      %3511 = vmatpush.msra.mxu0 %v3510
      %v3512 = vand.u32 %v2969, 4294901760
      %3513 = vmatmul.f32.gmra.mxu0 %v3512
      %v3514 = vpop.f32.mrf.mxu0
      %v3515 = vadd.f32 %v3392, %v3514
      %v3516 = vand.u32 %v2972, 4294901760
      %3517 = vmatmul.f32.gmra.mxu0 %v3516
      %v3518 = vpop.f32.mrf.mxu0
      %v3519 = vadd.f32 %v3398, %v3518
      %v3520 = vand.u32 %v2975, 4294901760
      %3521 = vmatmul.f32.gmra.mxu0 %v3520
      %v3522 = vpop.f32.mrf.mxu0
      %v3523 = vadd.f32 %v3404, %v3522
      %v3524 = vand.u32 %v2978, 4294901760
      %3525 = vmatmul.f32.gmra.mxu0 %v3524
      %v3526 = vpop.f32.mrf.mxu0
      %v3527 = vadd.f32 %v3410, %v3526
      %v3528 = vand.u32 %v2981, 4294901760
      %3529 = vmatmul.f32.gmra.mxu0 %v3528
      %v3530 = vpop.f32.mrf.mxu0
      %v3531 = vadd.f32 %v3416, %v3530
      %v3532 = vand.u32 %v2984, 4294901760
      %3533 = vmatmul.f32.gmra.mxu0 %v3532
      %v3534 = vpop.f32.mrf.mxu0
      %v3535 = vadd.f32 %v3422, %v3534
      %v3536 = vand.u32 %v2987, 4294901760
      %3537 = vmatmul.f32.gmra.mxu0 %v3536
      %v3538 = vpop.f32.mrf.mxu0
      %v3539 = vadd.f32 %v3428, %v3538
      %v3540 = vand.u32 %v2990, 4294901760
      %3541 = vmatmul.f32.gmra.mxu0 %v3540
      %v3542 = vpop.f32.mrf.mxu0
      %v3543 = vadd.f32 %v3434, %v3542
      %v3544 = vand.u32 %v2993, 4294901760
      %3545 = vmatmul.f32.gmra.mxu0 %v3544
      %v3546 = vpop.f32.mrf.mxu0
      %v3547 = vadd.f32 %v3440, %v3546
      %v3548 = vand.u32 %v2996, 4294901760
      %3549 = vmatmul.f32.gmra.mxu0 %v3548
      %v3550 = vpop.f32.mrf.mxu0
      %v3551 = vadd.f32 %v3446, %v3550
      %v3552 = vand.u32 %v2999, 4294901760
      %3553 = vmatmul.f32.gmra.mxu0 %v3552
      %v3554 = vpop.f32.mrf.mxu0
      %v3555 = vadd.f32 %v3452, %v3554
      %v3556 = vand.u32 %v3002, 4294901760
      %3557 = vmatmul.f32.gmra.mxu0 %v3556
      %v3558 = vpop.f32.mrf.mxu0
      %v3559 = vadd.f32 %v3458, %v3558
      %v3560 = vand.u32 %v3005, 4294901760
      %3561 = vmatmul.f32.gmra.mxu0 %v3560
      %v3562 = vpop.f32.mrf.mxu0
      %v3563 = vadd.f32 %v3464, %v3562
      %v3564 = vand.u32 %v3008, 4294901760
      %3565 = vmatmul.f32.gmra.mxu0 %v3564
      %v3566 = vpop.f32.mrf.mxu0
      %v3567 = vadd.f32 %v3470, %v3566
      %3568 = vdwg.mxu0
      %3569 = vmatpush.msra.mxu0 0.0
      %3570 = vmatpush.msra.mxu0 0.0
      %3571 = vmatpush.msra.mxu0 0.0
      %3572 = vmatpush.msra.mxu0 0.0
      %3573 = vmatpush.msra.mxu0 0.0
      %3574 = vmatpush.msra.mxu0 0.0
      %3575 = vmatpush.msra.mxu0 0.0
      %3576 = vmatpush.msra.mxu0 0.0
      %v3577 = vand.u32 %v2966, 4294901760
      %3578 = vmatpush.msra.mxu0 %v3577
      %v3579 = vand.u32 %v2965, 4294901760
      %3580 = vmatpush.msra.mxu0 %v3579
      %v3581 = vand.u32 %v2964, 4294901760
      %3582 = vmatpush.msra.mxu0 %v3581
      %v3583 = vand.u32 %v2963, 4294901760
      %3584 = vmatpush.msra.mxu0 %v3583
      %v3585 = vand.u32 %v2962, 4294901760
      %3586 = vmatpush.msra.mxu0 %v3585
      %v3587 = vand.u32 %v2961, 4294901760
      %3588 = vmatpush.msra.mxu0 %v3587
      %v3589 = vand.u32 %v2960, 4294901760
      %3590 = vmatpush.msra.mxu0 %v3589
      %v3591 = vand.u32 %v2959, 4294901760
      %3592 = vmatpush.msra.mxu0 %v3591
      %v3593 = vand.u32 %v2969, 4294901760
      %3594 = vmatmul.f32.gmra.mxu0 %v3593
      %v3595 = vpop.f32.mrf.mxu0
      %v3596 = vadd.f32 %v3515, %v3595
      %v3597 = vand.u32 %v2972, 4294901760
      %3598 = vmatmul.f32.gmra.mxu0 %v3597
      %v3599 = vpop.f32.mrf.mxu0
      %v3600 = vadd.f32 %v3519, %v3599
      %v3601 = vand.u32 %v2975, 4294901760
      %3602 = vmatmul.f32.gmra.mxu0 %v3601
      %v3603 = vpop.f32.mrf.mxu0
      %v3604 = vadd.f32 %v3523, %v3603
      %v3605 = vand.u32 %v2978, 4294901760
      %3606 = vmatmul.f32.gmra.mxu0 %v3605
      %v3607 = vpop.f32.mrf.mxu0
      %v3608 = vadd.f32 %v3527, %v3607
      %v3609 = vand.u32 %v2981, 4294901760
      %3610 = vmatmul.f32.gmra.mxu0 %v3609
      %v3611 = vpop.f32.mrf.mxu0
      %v3612 = vadd.f32 %v3531, %v3611
      %v3613 = vand.u32 %v2984, 4294901760
      %3614 = vmatmul.f32.gmra.mxu0 %v3613
      %v3615 = vpop.f32.mrf.mxu0
      %v3616 = vadd.f32 %v3535, %v3615
      %v3617 = vand.u32 %v2987, 4294901760
      %3618 = vmatmul.f32.gmra.mxu0 %v3617
      %v3619 = vpop.f32.mrf.mxu0
      %v3620 = vadd.f32 %v3539, %v3619
      %v3621 = vand.u32 %v2990, 4294901760
      %3622 = vmatmul.f32.gmra.mxu0 %v3621
      %v3623 = vpop.f32.mrf.mxu0
      %v3624 = vadd.f32 %v3543, %v3623
      %v3625 = vand.u32 %v2993, 4294901760
      %3626 = vmatmul.f32.gmra.mxu0 %v3625
      %v3627 = vpop.f32.mrf.mxu0
      %v3628 = vadd.f32 %v3547, %v3627
      %v3629 = vand.u32 %v2996, 4294901760
      %3630 = vmatmul.f32.gmra.mxu0 %v3629
      %v3631 = vpop.f32.mrf.mxu0
      %v3632 = vadd.f32 %v3551, %v3631
      %v3633 = vand.u32 %v2999, 4294901760
      %3634 = vmatmul.f32.gmra.mxu0 %v3633
      %v3635 = vpop.f32.mrf.mxu0
      %v3636 = vadd.f32 %v3555, %v3635
      %v3637 = vand.u32 %v3002, 4294901760
      %3638 = vmatmul.f32.gmra.mxu0 %v3637
      %v3639 = vpop.f32.mrf.mxu0
      %v3640 = vadd.f32 %v3559, %v3639
      %v3641 = vand.u32 %v3005, 4294901760
      %3642 = vmatmul.f32.gmra.mxu0 %v3641
      %v3643 = vpop.f32.mrf.mxu0
      %v3644 = vadd.f32 %v3563, %v3643
      %v3645 = vand.u32 %v3008, 4294901760
      %3646 = vmatmul.f32.gmra.mxu0 %v3645
      %v3647 = vpop.f32.mrf.mxu0
      %v3648 = vadd.f32 %v3567, %v3647
      %3649 = vdwg.mxu0
      %3650 = vst.msk [vmem:[%s396] sm:$0xff] %vm424, %v3596
      %3651 = vst.msk [vmem:[%s396 + $0x8] sm:$0xff] %vm424, %v3600
      %3652 = vst.msk [vmem:[%s396 + $0x10] sm:$0xff] %vm424, %v3604
      %3653 = vst.msk [vmem:[%s396 + $0x18] sm:$0xff] %vm424, %v3608
      %3654 = vst.msk [vmem:[%s396 + $0x20] sm:$0xff] %vm424, %v3612
      %3655 = vst.msk [vmem:[%s396 + $0x28] sm:$0xff] %vm424, %v3616
      %3656 = vst.msk [vmem:[%s396 + $0x30] sm:$0xff] %vm424, %v3620
      %3657 = vst.msk [vmem:[%s396 + $0x38] sm:$0xff] %vm424, %v3624
      %3658 = vst.msk [vmem:[%s396 + $0x40] sm:$0xff] %vm424, %v3628
      %3659 = vst.msk [vmem:[%s396 + $0x48] sm:$0xff] %vm424, %v3632
      %3660 = vst.msk [vmem:[%s396 + $0x50] sm:$0xff] %vm424, %v3636
      %3661 = vst.msk [vmem:[%s396 + $0x58] sm:$0xff] %vm424, %v3640
      %3662 = vst.msk [vmem:[%s396 + $0x60] sm:$0xff] %vm424, %v3644
      %3663 = vst.msk [vmem:[%s396 + $0x68] sm:$0xff] %vm424, %v3648
      %s3664 = smul.u32 14, %s23
      %p3665 = scmp.lt.s32.totalorder %s3664, 27
      %s3666 = scalar_select %p3665, %s3664, 27
      %s3667 = smul.addr %s3666, 8
      %s3668 = scalar_lea.vmem %s10, %s3667
      %s3669 = smul.u32 14, %s23
      %p3670 = scmp.lt.s32.totalorder %s3669, 27
      %s3671 = scalar_select %p3670, %s3669, 27
      %s3672 = smul.addr %s3671, 8
      %s3673 = scalar_lea.vmem %s11, %s3672
      // Predicated region
      $region61: #{tpu_custom_call.1} parent=59 // pred_check
        %p3674 = pneg %p256
      $region62: #{tpu_custom_call.1} parent=59 // pred_check_branch
        %3676 = sbr.rel (%p3674) target = $region64
      $region63: #{tpu_custom_call.1} parent=59 // pred_region
        %s3677 = smul.u32 14, %s23
      $region64: #{tpu_custom_call.1} parent=59 // pred_fallthru
        _
      // Predicated region
      $region65: #{tpu_custom_call.1} parent=59 // pred_check
        %p3678 = pneg %p282
      $region66: #{tpu_custom_call.1} parent=59 // pred_check_branch
        %3680 = sbr.rel (%p3678) target = $region68
      $region67: #{tpu_custom_call.1} parent=59 // pred_region
        %s3681 = smul.u32 14, %s23
      $region68: #{tpu_custom_call.1} parent=59 // pred_fallthru
        _
    $region60: #{tpu_custom_call.1} parent=5 // pred_fallthru
      _
    %p3682 = scmp.le.s32.totalorder 2, %s18
    // Predicated region
    $region69: #{tpu_custom_call.1} parent=5 // pred_check
      %p3683 = pneg %p3682
    $region70: #{tpu_custom_call.1} parent=5 // pred_check_branch
      %3685 = sbr.rel (%p3683) target = $region72
    $region71: #{tpu_custom_call.1} parent=5 // pred_region
      %s3686 = ssub.s32 %s18, 2
      // Predicated region
      $region73: #{tpu_custom_call.1} parent=71 // pred_check
        %p3687 = pneg %p262
      $region74: #{tpu_custom_call.1} parent=71 // pred_check_branch
        %3689 = sbr.rel (%p3687) target = $region76
      $region75: #{tpu_custom_call.1} parent=71 // pred_region
        %s3690 = smul.u32 14, %s24
        %p3691 = scmp.lt.s32.totalorder %s3690, 27
        %s3692 = scalar_select %p3691, %s3690, 27
        %s3693 = smul.addr %s3692, 8
        %s3694 = scalar_lea.vmem %s10, %s3693
      $region76: #{tpu_custom_call.1} parent=71 // pred_fallthru
        _
      // Predicated region
      $region77: #{tpu_custom_call.1} parent=71 // pred_check
        %p3695 = pneg %p288
      $region78: #{tpu_custom_call.1} parent=71 // pred_check_branch
        %3697 = sbr.rel (%p3695) target = $region80
      $region79: #{tpu_custom_call.1} parent=71 // pred_region
        %s3698 = smul.u32 14, %s24
        %p3699 = scmp.lt.s32.totalorder %s3698, 27
        %s3700 = scalar_select %p3699, %s3698, 27
        %s3701 = smul.addr %s3700, 8
        %s3702 = scalar_lea.vmem %s11, %s3701
      $region80: #{tpu_custom_call.1} parent=71 // pred_fallthru
        _
    $region72: #{tpu_custom_call.1} parent=5 // pred_fallthru
      _
  $region6: #{tpu_custom_call.1} parent=0 // loop_footer
    %s22 = sadd.s32 1, %s18
  $region7: #{tpu_custom_call.1} parent=0 // loop_footer_branch
    %17 = sbr.rel target = $region3
  $region8: #{tpu_custom_call.1} parent=0 // loop_exit
    _

</llo_original>
